<compile_context>
chip_gen: v6e
topology: v6e:2x2x1
jax: 0.10.0
libtpu: 0.0.40
codegen_flags: <defaults>
</compile_context>

<pallas_src>
import functools

import jax
import jax.numpy as jnp
import numpy as np
from jax.experimental import pallas as pl
from jax.experimental.pallas import tpu as pltpu


# -----------------------------------------------------------------------------
# Fused whole-network kernel.  Single invocation (no grid): everything lives in
# VMEM (~2.5 MiB) for the duration of one call.
# -----------------------------------------------------------------------------
def _fused_kernel(x_ref, m1w, wslab, whhs, vec, o_ref, l0_scr, l1_scr,
                  *, T, B, H, D):
    f32 = jnp.float32
    bf16 = jnp.bfloat16
    H2, H3, H6 = 2 * H, 3 * H, 6 * H

    # ---- small-vector slab rows (f32, broadcast over the T*B row axis) -------
    b1 = vec[0:1, 0:D]                       # mlp1 bias (BN folded)
    b2 = vec[0:1, D:2 * D]                   # mlp2 bias (BN folded)
    bt = vec[0:1, 2 * D:3 * D]               # transform bias
    bih0 = vec[1:2, :]                       # GRU-0 b_ih (both dirs, trBN folded)
    bih1 = vec[2:3, :]                       # GRU-1 b_ih (both dirs)
    bhh0_f, bhh0_b = vec[3:4, 0:H3], vec[3:4, H3:H6]
    bhh1_f, bhh1_b = vec[4:5, 0:H3], vec[4:5, H3:H6]
    cw = vec[5:6, 0:D]                       # classifier weight (BN folded)
    cb = vec[5:6, D:D + 1]                   # classifier bias   (BN folded)

    # ---- MLP layer 1: Linear(2048,256) [BN folded] -> ReLU  (bf16 MXU, f32 acc)
    x = x_ref[...].astype(bf16)
    y = jnp.maximum(jnp.dot(x, m1w[...], preferred_element_type=f32) + b1, 0.0)

    # ---- MLP layer 2: Linear(256,256) [BN folded] -> ReLU
    y = jnp.maximum(
        jnp.dot(y.astype(bf16), wslab[:, 0:D], preferred_element_type=f32) + b2,
        0.0)

    # ---- transform: Linear(256,256) -> ReLU (its BN is folded into GRU-0 W_ih)
    feats = jnp.maximum(
        jnp.dot(y.astype(bf16), wslab[:, D:2 * D], preferred_element_type=f32)
        + bt, 0.0)                           # (T*B, 256)

    def bigru_layer(xin, wih_cols, whh_rows, bih, bhh_f, bhh_b, out_scr):
        # Hoisted input projection for BOTH directions at once: (T*B, 6H).
        gi = jnp.dot(xin.astype(bf16), wslab[:, wih_cols[0]:wih_cols[1]],
                     preferred_element_type=f32) + bih
        # Ref-views (no load yet); the cell streams them into the MXU per step,
        # avoiding a long-lived VMEM copy of the (H,3H) recurrent matrices.
        whh_f = whhs.at[whh_rows[0]:whh_rows[1], 0:H3]
        whh_b = whhs.at[whh_rows[0]:whh_rows[1], H3:H6]

        def cell(gi_t, h_prev, whh_ref, bhh):
            # PyTorch GRU gate order (r, z, n); H=128 keeps every gate slice on
            # 128-lane boundaries.  Gate math stays f32 (v5e: no bf16 VPU/EUP).
            gh = jnp.dot(h_prev.astype(bf16), whh_ref[...],
                         preferred_element_type=f32) + bhh
            r = jax.nn.sigmoid(gi_t[:, 0:H] + gh[:, 0:H])
            z = jax.nn.sigmoid(gi_t[:, H:H2] + gh[:, H:H2])
            n = jnp.tanh(gi_t[:, H2:H3] + r * gh[:, H2:H3])
            return (1.0 - z) * n + z * h_prev

        hf = jnp.zeros((B, H), f32)
        hb = jnp.zeros((B, H), f32)
        # T = bs is tiny (seq axis = bs due to the batch_first=False quirk); a
        # static unrolled loop keeps the critical path to one recurrent matmul +
        # gates per step.  Outputs go straight into VMEM scratch (one vreg each).
        # TODO(synk): switch to lax.fori_loop + dynamic scratch writes if T grows.
        for s in range(T):
            tb = T - 1 - s
            hf = cell(gi[s * B:(s + 1) * B, 0:H3], hf, whh_f, bhh_f)
            out_scr[s * B:(s + 1) * B, 0:H] = hf
            hb = cell(gi[tb * B:(tb + 1) * B, H3:H6], hb, whh_b, bhh_b)
            out_scr[tb * B:(tb + 1) * B, H:H2] = hb
        return out_scr[...]                  # (T*B, 2H)

    l0 = bigru_layer(feats, (2 * D, 2 * D + H6), (0, H),
                     bih0, bhh0_f, bhh0_b, l0_scr)
    l1 = bigru_layer(l0, (2 * D + H6, 2 * D + 2 * H6), (H, 2 * H),
                     bih1, bhh1_f, bhh1_b, l1_scr)

    # ---- classifier: Linear(256,1)+BN1d(1) folded into (cw, cb); lane-reduce.
    o_ref[...] = (jnp.sum(l1 * cw, axis=-1, keepdims=True) + cb).astype(o_ref.dtype)


def two_stream_rnn_forward(rgb, packed, *, hidden=128):
    bs, nf, feat = rgb.shape
    N = bs * nf
    x = rgb.reshape(N, feat)
    m1w, wslab, whhs, vec = packed
    D = wslab.shape[0]

    kernel = functools.partial(_fused_kernel, T=bs, B=nf, H=hidden, D=D)
    out = pl.pallas_call(
        kernel,
        out_shape=jax.ShapeDtypeStruct((N, 1), jnp.float32),
        in_specs=[pl.BlockSpec(memory_space=pltpu.MemorySpace.VMEM)] * 5,
        out_specs=pl.BlockSpec(memory_space=pltpu.MemorySpace.VMEM),
        scratch_shapes=[pltpu.VMEM((N, 2 * hidden), jnp.float32),
                        pltpu.VMEM((N, 2 * hidden), jnp.float32)],
    )(x, m1w, wslab, whhs, vec)
    return out.reshape(bs, nf, 1)


# -----------------------------------------------------------------------------
# Parameter packing (one-time, outside jit):
#   * fold every BatchNorm affine into the adjacent linear,
#   * fold the transform BN (post-ReLU) forward into GRU layer-0's W_ih / b_ih,
#   * concatenate fwd/bwd GRU matrices, pack all weights into 3 bf16 slabs and
#     all small vectors into one (8, 768) f32 slab.
# -----------------------------------------------------------------------------
def pack_params(params, *, hidden=128):
    bf16 = jnp.bfloat16
    H = hidden
    H3, H6 = 3 * H, 6 * H

    def fold_linear_bn(w, b, s, h):
        # y = (x@w + b)*s + h  ->  x@(w*s) + (b*s + h)
        return w * s, b * s + h

    w1, b1 = fold_linear_bn(*params["mlp1"])
    w2, b2 = fold_linear_bn(*params["mlp2"])
    wt, bt, trs, trh = params["transform"]

    def cat_dirs(pf, pb):
        wih_f, whh_f, bih_f, bhh_f = pf
        wih_b, whh_b, bih_b, bhh_b = pb
        return (jnp.concatenate([wih_f, wih_b], axis=1),   # (D, 6H)
                jnp.concatenate([bih_f, bih_b], axis=1),   # (1, 6H)
                jnp.concatenate([whh_f, whh_b], axis=1),   # (H, 6H)
                jnp.concatenate([bhh_f, bhh_b], axis=1))   # (1, 6H)

    wih0, bih0, whh0, bhh0 = cat_dirs(params["gru_l0_f"], params["gru_l0_b"])
    wih1, bih1, whh1, bhh1 = cat_dirs(params["gru_l1_f"], params["gru_l1_b"])

    # transform BN (applied AFTER its ReLU) folded forward into GRU-0 input proj:
    #   (relu(y)*trs + trh) @ wih0 + bih0 = relu(y) @ (trs^T*wih0) + (trh@wih0+bih0)
    bih0 = trh @ wih0 + bih0
    wih0 = trs.reshape(-1, 1) * wih0

    # classifier Linear(256,1) + BatchNorm1d(1) fold.
    cw, cb, cs, ch = params["classifier"]
    cwf = (cw * cs).reshape(-1)                 # (256,)
    cbf = (cb * cs + ch).reshape(())            # scalar

    D = w2.shape[0]                             # 256
    # Weight slabs (bf16; column offsets are multiples of 128):
    #   wslab: [ m2w | trw | gru0_wih | gru1_wih ]  -> (256, 2048)
    #   whhs : [ gru0_whh ; gru1_whh ]              -> (2H, 6H)
    wslab = jnp.concatenate([w2, wt, wih0, wih1], axis=1).astype(bf16)
    whhs = jnp.concatenate([whh0, whh1], axis=0).astype(bf16)

    # Small-vector slab (f32).
    vec = jnp.zeros((8, H6), jnp.float32)
    vec = vec.at[0, 0:D].set(b1.reshape(-1))
    vec = vec.at[0, D:2 * D].set(b2.reshape(-1))
    vec = vec.at[0, 2 * D:3 * D].set(bt.reshape(-1))
    vec = vec.at[1, :].set(bih0.reshape(-1))
    vec = vec.at[2, :].set(bih1.reshape(-1))
    vec = vec.at[3, :].set(bhh0.reshape(-1))
    vec = vec.at[4, :].set(bhh1.reshape(-1))
    vec = vec.at[5, 0:D].set(cwf)
    vec = vec.at[5, D].set(cbf)

    return (w1.astype(bf16), wslab, whhs, vec)


# -----------------------------------------------------------------------------
# Reference 1: pure-JAX model using the SAME packed/folded bf16 parameters and
# the same cast points -> tight apples-to-apples check of the kernel.
# -----------------------------------------------------------------------------
def packed_ref_forward(rgb, packed, *, hidden=128):
    m1w, wslab, whhs, vec = packed
    bs, nf, feat = rgb.shape
    H = hidden
    H3, H6 = 3 * H, 6 * H
    D = wslab.shape[0]
    bf16, f32 = jnp.bfloat16, jnp.float32
    x = rgb.reshape(bs * nf, feat)

    def mm(a, b):
        return jnp.dot(a.astype(bf16), b, preferred_element_type=f32)

    y = jnp.maximum(mm(x, m1w) + vec[0:1, 0:D], 0.0)
    y = jnp.maximum(mm(y, wslab[:, 0:D]) + vec[0:1, D:2 * D], 0.0)
    feats = jnp.maximum(mm(y, wslab[:, D:2 * D]) + vec[0:1, 2 * D:3 * D], 0.0)

    def bigru(xin, wih, whh, bih, bhh):
        gi = mm(xin, wih) + bih

        def cell(gi_t, h, whh_d, bhh_d):
            gh = mm(h, whh_d) + bhh_d
            r = jax.nn.sigmoid(gi_t[:, 0:H] + gh[:, 0:H])
            z = jax.nn.sigmoid(gi_t[:, H:2 * H] + gh[:, H:2 * H])
            n = jnp.tanh(gi_t[:, 2 * H:H3] + r * gh[:, 2 * H:H3])
            return (1.0 - z) * n + z * h

        T, B = bs, nf
        hf = jnp.zeros((B, H), f32)
        hb = jnp.zeros((B, H), f32)
        outf = [None] * T
        outb = [None] * T
        for s in range(T):
            tb = T - 1 - s
            hf = cell(gi[s * B:(s + 1) * B, 0:H3], hf, whh[:, 0:H3], bhh[:, 0:H3])
            outf[s] = hf
            hb = cell(gi[tb * B:(tb + 1) * B, H3:H6], hb, whh[:, H3:H6], bhh[:, H3:H6])
            outb[tb] = hb
        return jnp.concatenate(
            [jnp.concatenate([outf[t], outb[t]], -1) for t in range(T)], 0)

    l0 = bigru(feats, wslab[:, 2 * D:2 * D + H6], whhs[0:H], vec[1:2, :], vec[3:4, :])
    l1 = bigru(l0, wslab[:, 2 * D + H6:2 * D + 2 * H6], whhs[H:2 * H],
               vec[2:3, :], vec[4:5, :])
    out = jnp.sum(l1 * vec[5:6, 0:D], axis=-1, keepdims=True) + vec[5, D]
    return out.reshape(bs, nf, 1)


# -----------------------------------------------------------------------------
# Reference 2: original-semantics f32 model (no folding rounding, no bf16) as a
# loose sanity check that the bf16/fold deviation stays small.
# -----------------------------------------------------------------------------
def _ref_linear_bn(x, w, b, scale, shift, relu_mode):
    y = jnp.dot(x, w, preferred_element_type=jnp.float32) + b
    if relu_mode == "before_bn":
        y = jnp.maximum(y, 0.0)
    y = y * scale + shift
    if relu_mode == "after_bn":
        y = jnp.maximum(y, 0.0)
    return y


def _ref_gru_dir(x, wih, whh, bih, bhh, reverse):
    T, B, _ = x.shape
    H = whh.shape[0]
    xs = x[::-1] if reverse else x

    def step(h, xt):
        gi = xt @ wih + bih
        gh = h @ whh + bhh
        r = jax.nn.sigmoid(gi[:, :H] + gh[:, :H])
        z = jax.nn.sigmoid(gi[:, H:2 * H] + gh[:, H:2 * H])
        n = jnp.tanh(gi[:, 2 * H:] + r * gh[:, 2 * H:])
        h_new = (1.0 - z) * n + z * h
        return h_new, h_new

    _, ys = jax.lax.scan(step, jnp.zeros((B, H), jnp.float32), xs)
    return ys[::-1] if reverse else ys


def ref_forward(rgb, params):
    bs, nf, feat = rgb.shape
    h = rgb.reshape(bs * nf, feat)
    h = _ref_linear_bn(h, *params["mlp1"], "after_bn")
    h = _ref_linear_bn(h, *params["mlp2"], "after_bn")
    h = _ref_linear_bn(h, *params["transform"], "before_bn")
    feats = h.reshape(bs, nf, 256)
    f0 = _ref_gru_dir(feats, *params["gru_l0_f"], False)
    b0 = _ref_gru_dir(feats, *params["gru_l0_b"], True)
    l0 = jnp.concatenate([f0, b0], axis=-1)
    f1 = _ref_gru_dir(l0, *params["gru_l1_f"], False)
    b1 = _ref_gru_dir(l0, *params["gru_l1_b"], True)
    l1 = jnp.concatenate([f1, b1], axis=-1)
    out = _ref_linear_bn(l1.reshape(bs * nf, 256), *params["classifier"], "none")
    return out.reshape(bs, nf, -1)


# -----------------------------------------------------------------------------
# Deterministic parameter construction (all f32; bf16 happens at pack time).
# -----------------------------------------------------------------------------
def _dense_init(key, fan_in, fan_out):
    k1, k2 = jax.random.split(key)
    lim = 1.0 / np.sqrt(fan_in)
    w = jax.random.uniform(k1, (fan_in, fan_out), jnp.float32, -lim, lim)
    b = jax.random.uniform(k2, (1, fan_out), jnp.float32, -lim, lim)
    return w, b


def _bn_fold_init(key, dim, eps=1e-5):
    k1, k2, k3, k4 = jax.random.split(key, 4)
    gamma = 1.0 + 0.1 * jax.random.normal(k1, (dim,), jnp.float32)
    beta = 0.1 * jax.random.normal(k2, (dim,), jnp.float32)
    mean = 0.1 * jax.random.normal(k3, (dim,), jnp.float32)
    var = 1.0 + 0.1 * jax.random.uniform(k4, (dim,), jnp.float32)
    scale = gamma / jnp.sqrt(var + eps)
    shift = beta - mean * scale
    return scale.reshape(1, dim), shift.reshape(1, dim)


def _gru_dir_init(key, input_size, hidden):
    k1, k2, k3, k4 = jax.random.split(key, 4)
    lim = 1.0 / np.sqrt(hidden)
    wih = jax.random.uniform(k1, (input_size, 3 * hidden), jnp.float32, -lim, lim)
    whh = jax.random.uniform(k2, (hidden, 3 * hidden), jnp.float32, -lim, lim)
    bih = jax.random.uniform(k3, (1, 3 * hidden), jnp.float32, -lim, lim)
    bhh = jax.random.uniform(k4, (1, 3 * hidden), jnp.float32, -lim, lim)
    return wih, whh, bih, bhh


def make_params(key):
    ks = jax.random.split(key, 16)
    params = {}
    # MLP([2048, 256, 256])
    w1, b1 = _dense_init(ks[0], 2048, 256)
    s1, sh1 = _bn_fold_init(ks[1], 256)
    params["mlp1"] = (w1, b1, s1, sh1)
    w2, b2 = _dense_init(ks[2], 256, 256)
    s2, sh2 = _bn_fold_init(ks[3], 256)
    params["mlp2"] = (w2, b2, s2, sh2)
    # transform
    wt, bt = _dense_init(ks[4], 256, 256)
    st, sht = _bn_fold_init(ks[5], 256)
    params["transform"] = (wt, bt, st, sht)
    # GRU(256, 128, bidirectional, 2 layers)
    params["gru_l0_f"] = _gru_dir_init(ks[6], 256, 128)
    params["gru_l0_b"] = _gru_dir_init(ks[7], 256, 128)
    params["gru_l1_f"] = _gru_dir_init(ks[8], 256, 128)
    params["gru_l1_b"] = _gru_dir_init(ks[9], 256, 128)
    # classifier: Linear(256, 1) + BatchNorm1d(1)   (label_name='arousal' -> 1)
    wc, bc = _dense_init(ks[10], 256, 1)
    sc, shc = _bn_fold_init(ks[11], 1)
    params["classifier"] = (wc, bc, sc, shc)
    return params


if __name__ == "__main__":
    bs, num_frames, feat_dim = 2, 8, 2048   # rgb_data: (bs, num_frames, 2048)
    key = jax.random.PRNGKey(0)
    kp, kx = jax.random.split(key)
    params = make_params(kp)
    packed = pack_params(params)
    rgb = jax.random.normal(kx, (bs, num_frames, feat_dim), jnp.float32)

    fwd = jax.jit(lambda x: two_stream_rnn_forward(x, packed))
    out = jax.block_until_ready(fwd(rgb))

    assert out.shape == (bs, num_frames, 1), out.shape
    # Tight check: kernel vs pure-JAX model with identical packing / bf16 casts.
    ref_packed = packed_ref_forward(rgb, packed)
    np.testing.assert_allclose(np.asarray(out), np.asarray(ref_packed),
                               rtol=2e-3, atol=2e-3)
    # Loose check: kernel vs original f32, unfolded model semantics (bf16 drift).
    ref_f32 = ref_forward(rgb, params)
    np.testing.assert_allclose(np.asarray(out), np.asarray(ref_f32),
                               rtol=5e-2, atol=5e-2)
    assert np.all(np.isfinite(np.asarray(out)))
    print("KERNEL_OK")
</pallas_src>

<mosaic_0001>
module attributes {stable_mosaic.version = 11 : i64} {
  func.func @_fused_kernel(%arg0: memref<16x2048xf32, #tpu.memory_space<vmem>>, %arg1: memref<2048x256xbf16, #tpu.memory_space<vmem>>, %arg2: memref<256x2048xbf16, #tpu.memory_space<vmem>>, %arg3: memref<256x768xbf16, #tpu.memory_space<vmem>>, %arg4: memref<8x768xf32, #tpu.memory_space<vmem>>, %arg5: memref<16x1xf32, #tpu.memory_space<vmem>>, %arg6: memref<16x256xf32, #tpu.memory_space<vmem>>, %arg7: memref<16x256xf32, #tpu.memory_space<vmem>>) attributes {dimension_semantics = [], scalar_prefetch = 0 : i64, scratch_operands = 2 : i64, tpu.core_type = #tpu.core_type<tc>} {
    %c0 = arith.constant 0 : index
    %c0_0 = arith.constant 0 : index
    %0 = vector.load %arg4[%c0, %c0_0] : memref<8x768xf32, #tpu.memory_space<vmem>>, vector<1x256xf32>
    %c0_1 = arith.constant 0 : index
    %c256 = arith.constant 256 : index
    %1 = vector.load %arg4[%c0_1, %c256] : memref<8x768xf32, #tpu.memory_space<vmem>>, vector<1x256xf32>
    %c0_2 = arith.constant 0 : index
    %c512 = arith.constant 512 : index
    %2 = vector.load %arg4[%c0_2, %c512] : memref<8x768xf32, #tpu.memory_space<vmem>>, vector<1x256xf32>
    %c1 = arith.constant 1 : index
    %c0_3 = arith.constant 0 : index
    %3 = vector.load %arg4[%c1, %c0_3] : memref<8x768xf32, #tpu.memory_space<vmem>>, vector<1x768xf32>
    %c2 = arith.constant 2 : index
    %c0_4 = arith.constant 0 : index
    %4 = vector.load %arg4[%c2, %c0_4] : memref<8x768xf32, #tpu.memory_space<vmem>>, vector<1x768xf32>
    %c3 = arith.constant 3 : index
    %c0_5 = arith.constant 0 : index
    %5 = vector.load %arg4[%c3, %c0_5] : memref<8x768xf32, #tpu.memory_space<vmem>>, vector<1x384xf32>
    %c3_6 = arith.constant 3 : index
    %c384 = arith.constant 384 : index
    %6 = vector.load %arg4[%c3_6, %c384] : memref<8x768xf32, #tpu.memory_space<vmem>>, vector<1x384xf32>
    %c4 = arith.constant 4 : index
    %c0_7 = arith.constant 0 : index
    %7 = vector.load %arg4[%c4, %c0_7] : memref<8x768xf32, #tpu.memory_space<vmem>>, vector<1x384xf32>
    %c4_8 = arith.constant 4 : index
    %c384_9 = arith.constant 384 : index
    %8 = vector.load %arg4[%c4_8, %c384_9] : memref<8x768xf32, #tpu.memory_space<vmem>>, vector<1x384xf32>
    %c5 = arith.constant 5 : index
    %c0_10 = arith.constant 0 : index
    %9 = vector.load %arg4[%c5, %c0_10] : memref<8x768xf32, #tpu.memory_space<vmem>>, vector<1x256xf32>
    %c5_11 = arith.constant 5 : index
    %c256_12 = arith.constant 256 : index
    %10 = vector.load %arg4[%c5_11, %c256_12] : memref<8x768xf32, #tpu.memory_space<vmem>>, vector<1x1xf32>
    %c0_13 = arith.constant 0 : index
    %c0_14 = arith.constant 0 : index
    %11 = vector.load %arg0[%c0_13, %c0_14] : memref<16x2048xf32, #tpu.memory_space<vmem>>, vector<16x2048xf32>
    %12 = arith.truncf %11 : vector<16x2048xf32> to vector<16x2048xbf16>
    %c0_15 = arith.constant 0 : index
    %c0_16 = arith.constant 0 : index
    %13 = vector.load %arg1[%c0_15, %c0_16] : memref<2048x256xbf16, #tpu.memory_space<vmem>>, vector<2048x256xbf16>
    %cst = arith.constant dense<0.000000e+00> : vector<16x256xf32>
    %14 = tpu.matmul %12, %13, %cst {dimension_numbers = #tpu.dot_dimension_numbers<[1], [0], [0], [1], [0, 0, 1, 1], [], []>} : vector<16x2048xbf16>, vector<2048x256xbf16>, vector<16x256xf32> -> vector<16x256xf32>
    %15 = vector.broadcast %0 : vector<1x256xf32> to vector<16x256xf32>
    %16 = arith.addf %14, %15 : vector<16x256xf32>
    %cst_17 = arith.constant 0.000000e+00 : f32
    %17 = vector.broadcast %cst_17 : f32 to vector<16x256xf32>
    %18 = arith.maximumf %16, %17 : vector<16x256xf32>
    %19 = arith.truncf %18 : vector<16x256xf32> to vector<16x256xbf16>
    %c0_18 = arith.constant 0 : index
    %c0_19 = arith.constant 0 : index
    %20 = vector.load %arg2[%c0_18, %c0_19] : memref<256x2048xbf16, #tpu.memory_space<vmem>>, vector<256x256xbf16>
    %cst_20 = arith.constant dense<0.000000e+00> : vector<16x256xf32>
    %21 = tpu.matmul %19, %20, %cst_20 {dimension_numbers = #tpu.dot_dimension_numbers<[1], [0], [0], [1], [0, 0, 1, 1], [], []>} : vector<16x256xbf16>, vector<256x256xbf16>, vector<16x256xf32> -> vector<16x256xf32>
    %22 = vector.broadcast %1 : vector<1x256xf32> to vector<16x256xf32>
    %23 = arith.addf %21, %22 : vector<16x256xf32>
    %cst_21 = arith.constant 0.000000e+00 : f32
    %24 = vector.broadcast %cst_21 : f32 to vector<16x256xf32>
    %25 = arith.maximumf %23, %24 : vector<16x256xf32>
    %26 = arith.truncf %25 : vector<16x256xf32> to vector<16x256xbf16>
    %c0_22 = arith.constant 0 : index
    %c256_23 = arith.constant 256 : index
    %27 = vector.load %arg2[%c0_22, %c256_23] : memref<256x2048xbf16, #tpu.memory_space<vmem>>, vector<256x256xbf16>
    %cst_24 = arith.constant dense<0.000000e+00> : vector<16x256xf32>
    %28 = tpu.matmul %26, %27, %cst_24 {dimension_numbers = #tpu.dot_dimension_numbers<[1], [0], [0], [1], [0, 0, 1, 1], [], []>} : vector<16x256xbf16>, vector<256x256xbf16>, vector<16x256xf32> -> vector<16x256xf32>
    %29 = vector.broadcast %2 : vector<1x256xf32> to vector<16x256xf32>
    %30 = arith.addf %28, %29 : vector<16x256xf32>
    %cst_25 = arith.constant 0.000000e+00 : f32
    %31 = vector.broadcast %cst_25 : f32 to vector<16x256xf32>
    %32 = arith.maximumf %30, %31 : vector<16x256xf32>
    %33 = arith.truncf %32 : vector<16x256xf32> to vector<16x256xbf16>
    %c0_26 = arith.constant 0 : index
    %c512_27 = arith.constant 512 : index
    %34 = vector.load %arg2[%c0_26, %c512_27] : memref<256x2048xbf16, #tpu.memory_space<vmem>>, vector<256x768xbf16>
    %cst_28 = arith.constant dense<0.000000e+00> : vector<16x768xf32>
    %35 = tpu.matmul %33, %34, %cst_28 {dimension_numbers = #tpu.dot_dimension_numbers<[1], [0], [0], [1], [0, 0, 1, 1], [], []>} : vector<16x256xbf16>, vector<256x768xbf16>, vector<16x768xf32> -> vector<16x768xf32>
    %36 = vector.broadcast %3 : vector<1x768xf32> to vector<16x768xf32>
    %37 = arith.addf %35, %36 : vector<16x768xf32>
    %cst_29 = arith.constant 0.000000e+00 : f32
    %38 = vector.broadcast %cst_29 : f32 to vector<8x128xf32>
    %cst_30 = arith.constant 0.000000e+00 : f32
    %39 = vector.broadcast %cst_30 : f32 to vector<8x128xf32>
    %40 = vector.extract_strided_slice %37 {offsets = [0, 0], sizes = [8, 384], strides = [1, 1]} : vector<16x768xf32> to vector<8x384xf32>
    %41 = arith.truncf %38 : vector<8x128xf32> to vector<8x128xbf16>
    %c0_31 = arith.constant 0 : index
    %c0_32 = arith.constant 0 : index
    %42 = vector.load %arg3[%c0_31, %c0_32] : memref<256x768xbf16, #tpu.memory_space<vmem>>, vector<128x384xbf16>
    %cst_33 = arith.constant dense<0.000000e+00> : vector<8x384xf32>
    %43 = tpu.matmul %41, %42, %cst_33 {dimension_numbers = #tpu.dot_dimension_numbers<[1], [0], [0], [1], [0, 0, 1, 1], [], []>} : vector<8x128xbf16>, vector<128x384xbf16>, vector<8x384xf32> -> vector<8x384xf32>
    %44 = vector.broadcast %5 : vector<1x384xf32> to vector<8x384xf32>
    %45 = arith.addf %43, %44 : vector<8x384xf32>
    %46 = vector.extract_strided_slice %40 {offsets = [0, 0], sizes = [8, 128], strides = [1, 1]} : vector<8x384xf32> to vector<8x128xf32>
    %47 = vector.extract_strided_slice %45 {offsets = [0, 0], sizes = [8, 128], strides = [1, 1]} : vector<8x384xf32> to vector<8x128xf32>
    %48 = arith.addf %46, %47 : vector<8x128xf32>
    %49 = arith.negf %48 : vector<8x128xf32>
    %50 = math.exp %49 : vector<8x128xf32>
    %cst_34 = arith.constant 1.000000e+00 : f32
    %51 = vector.broadcast %cst_34 : f32 to vector<8x128xf32>
    %52 = arith.addf %51, %50 : vector<8x128xf32>
    %53 = arith.divf %51, %52 : vector<8x128xf32>
    %54 = vector.extract_strided_slice %40 {offsets = [0, 128], sizes = [8, 128], strides = [1, 1]} : vector<8x384xf32> to vector<8x128xf32>
    %55 = vector.extract_strided_slice %45 {offsets = [0, 128], sizes = [8, 128], strides = [1, 1]} : vector<8x384xf32> to vector<8x128xf32>
    %56 = arith.addf %54, %55 : vector<8x128xf32>
    %57 = arith.negf %56 : vector<8x128xf32>
    %58 = math.exp %57 : vector<8x128xf32>
    %cst_35 = arith.constant 1.000000e+00 : f32
    %59 = vector.broadcast %cst_35 : f32 to vector<8x128xf32>
    %60 = arith.addf %59, %58 : vector<8x128xf32>
    %61 = arith.divf %59, %60 : vector<8x128xf32>
    %62 = vector.extract_strided_slice %40 {offsets = [0, 256], sizes = [8, 128], strides = [1, 1]} : vector<8x384xf32> to vector<8x128xf32>
    %63 = vector.extract_strided_slice %45 {offsets = [0, 256], sizes = [8, 128], strides = [1, 1]} : vector<8x384xf32> to vector<8x128xf32>
    %64 = arith.mulf %53, %63 : vector<8x128xf32>
    %65 = arith.addf %62, %64 : vector<8x128xf32>
    %66 = math.tanh %65 : vector<8x128xf32>
    %cst_36 = arith.constant 1.000000e+00 : f32
    %67 = vector.broadcast %cst_36 : f32 to vector<8x128xf32>
    %68 = arith.subf %67, %61 : vector<8x128xf32>
    %69 = arith.mulf %68, %66 : vector<8x128xf32>
    %70 = arith.mulf %61, %38 : vector<8x128xf32>
    %71 = arith.addf %69, %70 : vector<8x128xf32>
    %c0_37 = arith.constant 0 : index
    %c0_38 = arith.constant 0 : index
    %72 = vector.load %arg6[%c0_37, %c0_38] : memref<16x256xf32, #tpu.memory_space<vmem>>, vector<8x128xf32>
    tpu.vector_store %arg6[%c0_37, %c0_38], %71 {strides = array<i32>} : memref<16x256xf32, #tpu.memory_space<vmem>>, vector<8x128xf32>,
    %73 = vector.extract_strided_slice %37 {offsets = [8, 384], sizes = [8, 384], strides = [1, 1]} : vector<16x768xf32> to vector<8x384xf32>
    %74 = arith.truncf %39 : vector<8x128xf32> to vector<8x128xbf16>
    %c0_39 = arith.constant 0 : index
    %c384_40 = arith.constant 384 : index
    %75 = vector.load %arg3[%c0_39, %c384_40] : memref<256x768xbf16, #tpu.memory_space<vmem>>, vector<128x384xbf16>
    %cst_41 = arith.constant dense<0.000000e+00> : vector<8x384xf32>
    %76 = tpu.matmul %74, %75, %cst_41 {dimension_numbers = #tpu.dot_dimension_numbers<[1], [0], [0], [1], [0, 0, 1, 1], [], []>} : vector<8x128xbf16>, vector<128x384xbf16>, vector<8x384xf32> -> vector<8x384xf32>
    %77 = vector.broadcast %6 : vector<1x384xf32> to vector<8x384xf32>
    %78 = arith.addf %76, %77 : vector<8x384xf32>
    %79 = vector.extract_strided_slice %73 {offsets = [0, 0], sizes = [8, 128], strides = [1, 1]} : vector<8x384xf32> to vector<8x128xf32>
    %80 = vector.extract_strided_slice %78 {offsets = [0, 0], sizes = [8, 128], strides = [1, 1]} : vector<8x384xf32> to vector<8x128xf32>
    %81 = arith.addf %79, %80 : vector<8x128xf32>
    %82 = arith.negf %81 : vector<8x128xf32>
    %83 = math.exp %82 : vector<8x128xf32>
    %cst_42 = arith.constant 1.000000e+00 : f32
    %84 = vector.broadcast %cst_42 : f32 to vector<8x128xf32>
    %85 = arith.addf %84, %83 : vector<8x128xf32>
    %86 = arith.divf %84, %85 : vector<8x128xf32>
    %87 = vector.extract_strided_slice %73 {offsets = [0, 128], sizes = [8, 128], strides = [1, 1]} : vector<8x384xf32> to vector<8x128xf32>
    %88 = vector.extract_strided_slice %78 {offsets = [0, 128], sizes = [8, 128], strides = [1, 1]} : vector<8x384xf32> to vector<8x128xf32>
    %89 = arith.addf %87, %88 : vector<8x128xf32>
    %90 = arith.negf %89 : vector<8x128xf32>
    %91 = math.exp %90 : vector<8x128xf32>
    %cst_43 = arith.constant 1.000000e+00 : f32
    %92 = vector.broadcast %cst_43 : f32 to vector<8x128xf32>
    %93 = arith.addf %92, %91 : vector<8x128xf32>
    %94 = arith.divf %92, %93 : vector<8x128xf32>
    %95 = vector.extract_strided_slice %73 {offsets = [0, 256], sizes = [8, 128], strides = [1, 1]} : vector<8x384xf32> to vector<8x128xf32>
    %96 = vector.extract_strided_slice %78 {offsets = [0, 256], sizes = [8, 128], strides = [1, 1]} : vector<8x384xf32> to vector<8x128xf32>
    %97 = arith.mulf %86, %96 : vector<8x128xf32>
    %98 = arith.addf %95, %97 : vector<8x128xf32>
    %99 = math.tanh %98 : vector<8x128xf32>
    %cst_44 = arith.constant 1.000000e+00 : f32
    %100 = vector.broadcast %cst_44 : f32 to vector<8x128xf32>
    %101 = arith.subf %100, %94 : vector<8x128xf32>
    %102 = arith.mulf %101, %99 : vector<8x128xf32>
    %103 = arith.mulf %94, %39 : vector<8x128xf32>
    %104 = arith.addf %102, %103 : vector<8x128xf32>
    %c8 = arith.constant 8 : index
    %c128 = arith.constant 128 : index
    %105 = vector.load %arg6[%c8, %c128] : memref<16x256xf32, #tpu.memory_space<vmem>>, vector<8x128xf32>
    tpu.vector_store %arg6[%c8, %c128], %104 {strides = array<i32>} : memref<16x256xf32, #tpu.memory_space<vmem>>, vector<8x128xf32>,
    %106 = vector.extract_strided_slice %37 {offsets = [8, 0], sizes = [8, 384], strides = [1, 1]} : vector<16x768xf32> to vector<8x384xf32>
    %107 = arith.truncf %71 : vector<8x128xf32> to vector<8x128xbf16>
    %c0_45 = arith.constant 0 : index
    %c0_46 = arith.constant 0 : index
    %108 = vector.load %arg3[%c0_45, %c0_46] : memref<256x768xbf16, #tpu.memory_space<vmem>>, vector<128x384xbf16>
    %cst_47 = arith.constant dense<0.000000e+00> : vector<8x384xf32>
    %109 = tpu.matmul %107, %108, %cst_47 {dimension_numbers = #tpu.dot_dimension_numbers<[1], [0], [0], [1], [0, 0, 1, 1], [], []>} : vector<8x128xbf16>, vector<128x384xbf16>, vector<8x384xf32> -> vector<8x384xf32>
    %110 = vector.broadcast %5 : vector<1x384xf32> to vector<8x384xf32>
    %111 = arith.addf %109, %110 : vector<8x384xf32>
    %112 = vector.extract_strided_slice %106 {offsets = [0, 0], sizes = [8, 128], strides = [1, 1]} : vector<8x384xf32> to vector<8x128xf32>
    %113 = vector.extract_strided_slice %111 {offsets = [0, 0], sizes = [8, 128], strides = [1, 1]} : vector<8x384xf32> to vector<8x128xf32>
    %114 = arith.addf %112, %113 : vector<8x128xf32>
    %115 = arith.negf %114 : vector<8x128xf32>
    %116 = math.exp %115 : vector<8x128xf32>
    %cst_48 = arith.constant 1.000000e+00 : f32
    %117 = vector.broadcast %cst_48 : f32 to vector<8x128xf32>
    %118 = arith.addf %117, %116 : vector<8x128xf32>
    %119 = arith.divf %117, %118 : vector<8x128xf32>
    %120 = vector.extract_strided_slice %106 {offsets = [0, 128], sizes = [8, 128], strides = [1, 1]} : vector<8x384xf32> to vector<8x128xf32>
    %121 = vector.extract_strided_slice %111 {offsets = [0, 128], sizes = [8, 128], strides = [1, 1]} : vector<8x384xf32> to vector<8x128xf32>
    %122 = arith.addf %120, %121 : vector<8x128xf32>
    %123 = arith.negf %122 : vector<8x128xf32>
    %124 = math.exp %123 : vector<8x128xf32>
    %cst_49 = arith.constant 1.000000e+00 : f32
    %125 = vector.broadcast %cst_49 : f32 to vector<8x128xf32>
    %126 = arith.addf %125, %124 : vector<8x128xf32>
    %127 = arith.divf %125, %126 : vector<8x128xf32>
    %128 = vector.extract_strided_slice %106 {offsets = [0, 256], sizes = [8, 128], strides = [1, 1]} : vector<8x384xf32> to vector<8x128xf32>
    %129 = vector.extract_strided_slice %111 {offsets = [0, 256], sizes = [8, 128], strides = [1, 1]} : vector<8x384xf32> to vector<8x128xf32>
    %130 = arith.mulf %119, %129 : vector<8x128xf32>
    %131 = arith.addf %128, %130 : vector<8x128xf32>
    %132 = math.tanh %131 : vector<8x128xf32>
    %cst_50 = arith.constant 1.000000e+00 : f32
    %133 = vector.broadcast %cst_50 : f32 to vector<8x128xf32>
    %134 = arith.subf %133, %127 : vector<8x128xf32>
    %135 = arith.mulf %134, %132 : vector<8x128xf32>
    %136 = arith.mulf %127, %71 : vector<8x128xf32>
    %137 = arith.addf %135, %136 : vector<8x128xf32>
    %c8_51 = arith.constant 8 : index
    %c0_52 = arith.constant 0 : index
    %138 = vector.load %arg6[%c8_51, %c0_52] : memref<16x256xf32, #tpu.memory_space<vmem>>, vector<8x128xf32>
    tpu.vector_store %arg6[%c8_51, %c0_52], %137 {strides = array<i32>} : memref<16x256xf32, #tpu.memory_space<vmem>>, vector<8x128xf32>,
    %139 = vector.extract_strided_slice %37 {offsets = [0, 384], sizes = [8, 384], strides = [1, 1]} : vector<16x768xf32> to vector<8x384xf32>
    %140 = arith.truncf %104 : vector<8x128xf32> to vector<8x128xbf16>
    %c0_53 = arith.constant 0 : index
    %c384_54 = arith.constant 384 : index
    %141 = vector.load %arg3[%c0_53, %c384_54] : memref<256x768xbf16, #tpu.memory_space<vmem>>, vector<128x384xbf16>
    %cst_55 = arith.constant dense<0.000000e+00> : vector<8x384xf32>
    %142 = tpu.matmul %140, %141, %cst_55 {dimension_numbers = #tpu.dot_dimension_numbers<[1], [0], [0], [1], [0, 0, 1, 1], [], []>} : vector<8x128xbf16>, vector<128x384xbf16>, vector<8x384xf32> -> vector<8x384xf32>
    %143 = vector.broadcast %6 : vector<1x384xf32> to vector<8x384xf32>
    %144 = arith.addf %142, %143 : vector<8x384xf32>
    %145 = vector.extract_strided_slice %139 {offsets = [0, 0], sizes = [8, 128], strides = [1, 1]} : vector<8x384xf32> to vector<8x128xf32>
    %146 = vector.extract_strided_slice %144 {offsets = [0, 0], sizes = [8, 128], strides = [1, 1]} : vector<8x384xf32> to vector<8x128xf32>
    %147 = arith.addf %145, %146 : vector<8x128xf32>
    %148 = arith.negf %147 : vector<8x128xf32>
    %149 = math.exp %148 : vector<8x128xf32>
    %cst_56 = arith.constant 1.000000e+00 : f32
    %150 = vector.broadcast %cst_56 : f32 to vector<8x128xf32>
    %151 = arith.addf %150, %149 : vector<8x128xf32>
    %152 = arith.divf %150, %151 : vector<8x128xf32>
    %153 = vector.extract_strided_slice %139 {offsets = [0, 128], sizes = [8, 128], strides = [1, 1]} : vector<8x384xf32> to vector<8x128xf32>
    %154 = vector.extract_strided_slice %144 {offsets = [0, 128], sizes = [8, 128], strides = [1, 1]} : vector<8x384xf32> to vector<8x128xf32>
    %155 = arith.addf %153, %154 : vector<8x128xf32>
    %156 = arith.negf %155 : vector<8x128xf32>
    %157 = math.exp %156 : vector<8x128xf32>
    %cst_57 = arith.constant 1.000000e+00 : f32
    %158 = vector.broadcast %cst_57 : f32 to vector<8x128xf32>
    %159 = arith.addf %158, %157 : vector<8x128xf32>
    %160 = arith.divf %158, %159 : vector<8x128xf32>
    %161 = vector.extract_strided_slice %139 {offsets = [0, 256], sizes = [8, 128], strides = [1, 1]} : vector<8x384xf32> to vector<8x128xf32>
    %162 = vector.extract_strided_slice %144 {offsets = [0, 256], sizes = [8, 128], strides = [1, 1]} : vector<8x384xf32> to vector<8x128xf32>
    %163 = arith.mulf %152, %162 : vector<8x128xf32>
    %164 = arith.addf %161, %163 : vector<8x128xf32>
    %165 = math.tanh %164 : vector<8x128xf32>
    %cst_58 = arith.constant 1.000000e+00 : f32
    %166 = vector.broadcast %cst_58 : f32 to vector<8x128xf32>
    %167 = arith.subf %166, %160 : vector<8x128xf32>
    %168 = arith.mulf %167, %165 : vector<8x128xf32>
    %169 = arith.mulf %160, %104 : vector<8x128xf32>
    %170 = arith.addf %168, %169 : vector<8x128xf32>
    %c0_59 = arith.constant 0 : index
    %c128_60 = arith.constant 128 : index
    %171 = vector.load %arg6[%c0_59, %c128_60] : memref<16x256xf32, #tpu.memory_space<vmem>>, vector<8x128xf32>
    tpu.vector_store %arg6[%c0_59, %c128_60], %170 {strides = array<i32>} : memref<16x256xf32, #tpu.memory_space<vmem>>, vector<8x128xf32>,
    %c0_61 = arith.constant 0 : index
    %c0_62 = arith.constant 0 : index
    %172 = vector.load %arg6[%c0_61, %c0_62] : memref<16x256xf32, #tpu.memory_space<vmem>>, vector<16x256xf32>
    %173 = arith.truncf %172 : vector<16x256xf32> to vector<16x256xbf16>
    %c0_63 = arith.constant 0 : index
    %c1280 = arith.constant 1280 : index
    %174 = vector.load %arg2[%c0_63, %c1280] : memref<256x2048xbf16, #tpu.memory_space<vmem>>, vector<256x768xbf16>
    %cst_64 = arith.constant dense<0.000000e+00> : vector<16x768xf32>
    %175 = tpu.matmul %173, %174, %cst_64 {dimension_numbers = #tpu.dot_dimension_numbers<[1], [0], [0], [1], [0, 0, 1, 1], [], []>} : vector<16x256xbf16>, vector<256x768xbf16>, vector<16x768xf32> -> vector<16x768xf32>
    %176 = vector.broadcast %4 : vector<1x768xf32> to vector<16x768xf32>
    %177 = arith.addf %175, %176 : vector<16x768xf32>
    %cst_65 = arith.constant 0.000000e+00 : f32
    %178 = vector.broadcast %cst_65 : f32 to vector<8x128xf32>
    %cst_66 = arith.constant 0.000000e+00 : f32
    %179 = vector.broadcast %cst_66 : f32 to vector<8x128xf32>
    %180 = vector.extract_strided_slice %177 {offsets = [0, 0], sizes = [8, 384], strides = [1, 1]} : vector<16x768xf32> to vector<8x384xf32>
    %181 = arith.truncf %178 : vector<8x128xf32> to vector<8x128xbf16>
    %c128_67 = arith.constant 128 : index
    %c0_68 = arith.constant 0 : index
    %182 = vector.load %arg3[%c128_67, %c0_68] : memref<256x768xbf16, #tpu.memory_space<vmem>>, vector<128x384xbf16>
    %cst_69 = arith.constant dense<0.000000e+00> : vector<8x384xf32>
    %183 = tpu.matmul %181, %182, %cst_69 {dimension_numbers = #tpu.dot_dimension_numbers<[1], [0], [0], [1], [0, 0, 1, 1], [], []>} : vector<8x128xbf16>, vector<128x384xbf16>, vector<8x384xf32> -> vector<8x384xf32>
    %184 = vector.broadcast %7 : vector<1x384xf32> to vector<8x384xf32>
    %185 = arith.addf %183, %184 : vector<8x384xf32>
    %186 = vector.extract_strided_slice %180 {offsets = [0, 0], sizes = [8, 128], strides = [1, 1]} : vector<8x384xf32> to vector<8x128xf32>
    %187 = vector.extract_strided_slice %185 {offsets = [0, 0], sizes = [8, 128], strides = [1, 1]} : vector<8x384xf32> to vector<8x128xf32>
    %188 = arith.addf %186, %187 : vector<8x128xf32>
    %189 = arith.negf %188 : vector<8x128xf32>
    %190 = math.exp %189 : vector<8x128xf32>
    %cst_70 = arith.constant 1.000000e+00 : f32
    %191 = vector.broadcast %cst_70 : f32 to vector<8x128xf32>
    %192 = arith.addf %191, %190 : vector<8x128xf32>
    %193 = arith.divf %191, %192 : vector<8x128xf32>
    %194 = vector.extract_strided_slice %180 {offsets = [0, 128], sizes = [8, 128], strides = [1, 1]} : vector<8x384xf32> to vector<8x128xf32>
    %195 = vector.extract_strided_slice %185 {offsets = [0, 128], sizes = [8, 128], strides = [1, 1]} : vector<8x384xf32> to vector<8x128xf32>
    %196 = arith.addf %194, %195 : vector<8x128xf32>
    %197 = arith.negf %196 : vector<8x128xf32>
    %198 = math.exp %197 : vector<8x128xf32>
    %cst_71 = arith.constant 1.000000e+00 : f32
    %199 = vector.broadcast %cst_71 : f32 to vector<8x128xf32>
    %200 = arith.addf %199, %198 : vector<8x128xf32>
    %201 = arith.divf %199, %200 : vector<8x128xf32>
    %202 = vector.extract_strided_slice %180 {offsets = [0, 256], sizes = [8, 128], strides = [1, 1]} : vector<8x384xf32> to vector<8x128xf32>
    %203 = vector.extract_strided_slice %185 {offsets = [0, 256], sizes = [8, 128], strides = [1, 1]} : vector<8x384xf32> to vector<8x128xf32>
    %204 = arith.mulf %193, %203 : vector<8x128xf32>
    %205 = arith.addf %202, %204 : vector<8x128xf32>
    %206 = math.tanh %205 : vector<8x128xf32>
    %cst_72 = arith.constant 1.000000e+00 : f32
    %207 = vector.broadcast %cst_72 : f32 to vector<8x128xf32>
    %208 = arith.subf %207, %201 : vector<8x128xf32>
    %209 = arith.mulf %208, %206 : vector<8x128xf32>
    %210 = arith.mulf %201, %178 : vector<8x128xf32>
    %211 = arith.addf %209, %210 : vector<8x128xf32>
    %c0_73 = arith.constant 0 : index
    %c0_74 = arith.constant 0 : index
    %212 = vector.load %arg7[%c0_73, %c0_74] : memref<16x256xf32, #tpu.memory_space<vmem>>, vector<8x128xf32>
    tpu.vector_store %arg7[%c0_73, %c0_74], %211 {strides = array<i32>} : memref<16x256xf32, #tpu.memory_space<vmem>>, vector<8x128xf32>,
    %213 = vector.extract_strided_slice %177 {offsets = [8, 384], sizes = [8, 384], strides = [1, 1]} : vector<16x768xf32> to vector<8x384xf32>
    %214 = arith.truncf %179 : vector<8x128xf32> to vector<8x128xbf16>
    %c128_75 = arith.constant 128 : index
    %c384_76 = arith.constant 384 : index
    %215 = vector.load %arg3[%c128_75, %c384_76] : memref<256x768xbf16, #tpu.memory_space<vmem>>, vector<128x384xbf16>
    %cst_77 = arith.constant dense<0.000000e+00> : vector<8x384xf32>
    %216 = tpu.matmul %214, %215, %cst_77 {dimension_numbers = #tpu.dot_dimension_numbers<[1], [0], [0], [1], [0, 0, 1, 1], [], []>} : vector<8x128xbf16>, vector<128x384xbf16>, vector<8x384xf32> -> vector<8x384xf32>
    %217 = vector.broadcast %8 : vector<1x384xf32> to vector<8x384xf32>
    %218 = arith.addf %216, %217 : vector<8x384xf32>
    %219 = vector.extract_strided_slice %213 {offsets = [0, 0], sizes = [8, 128], strides = [1, 1]} : vector<8x384xf32> to vector<8x128xf32>
    %220 = vector.extract_strided_slice %218 {offsets = [0, 0], sizes = [8, 128], strides = [1, 1]} : vector<8x384xf32> to vector<8x128xf32>
    %221 = arith.addf %219, %220 : vector<8x128xf32>
    %222 = arith.negf %221 : vector<8x128xf32>
    %223 = math.exp %222 : vector<8x128xf32>
    %cst_78 = arith.constant 1.000000e+00 : f32
    %224 = vector.broadcast %cst_78 : f32 to vector<8x128xf32>
    %225 = arith.addf %224, %223 : vector<8x128xf32>
    %226 = arith.divf %224, %225 : vector<8x128xf32>
    %227 = vector.extract_strided_slice %213 {offsets = [0, 128], sizes = [8, 128], strides = [1, 1]} : vector<8x384xf32> to vector<8x128xf32>
    %228 = vector.extract_strided_slice %218 {offsets = [0, 128], sizes = [8, 128], strides = [1, 1]} : vector<8x384xf32> to vector<8x128xf32>
    %229 = arith.addf %227, %228 : vector<8x128xf32>
    %230 = arith.negf %229 : vector<8x128xf32>
    %231 = math.exp %230 : vector<8x128xf32>
    %cst_79 = arith.constant 1.000000e+00 : f32
    %232 = vector.broadcast %cst_79 : f32 to vector<8x128xf32>
    %233 = arith.addf %232, %231 : vector<8x128xf32>
    %234 = arith.divf %232, %233 : vector<8x128xf32>
    %235 = vector.extract_strided_slice %213 {offsets = [0, 256], sizes = [8, 128], strides = [1, 1]} : vector<8x384xf32> to vector<8x128xf32>
    %236 = vector.extract_strided_slice %218 {offsets = [0, 256], sizes = [8, 128], strides = [1, 1]} : vector<8x384xf32> to vector<8x128xf32>
    %237 = arith.mulf %226, %236 : vector<8x128xf32>
    %238 = arith.addf %235, %237 : vector<8x128xf32>
    %239 = math.tanh %238 : vector<8x128xf32>
    %cst_80 = arith.constant 1.000000e+00 : f32
    %240 = vector.broadcast %cst_80 : f32 to vector<8x128xf32>
    %241 = arith.subf %240, %234 : vector<8x128xf32>
    %242 = arith.mulf %241, %239 : vector<8x128xf32>
    %243 = arith.mulf %234, %179 : vector<8x128xf32>
    %244 = arith.addf %242, %243 : vector<8x128xf32>
    %c8_81 = arith.constant 8 : index
    %c128_82 = arith.constant 128 : index
    %245 = vector.load %arg7[%c8_81, %c128_82] : memref<16x256xf32, #tpu.memory_space<vmem>>, vector<8x128xf32>
    tpu.vector_store %arg7[%c8_81, %c128_82], %244 {strides = array<i32>} : memref<16x256xf32, #tpu.memory_space<vmem>>, vector<8x128xf32>,
    %246 = vector.extract_strided_slice %177 {offsets = [8, 0], sizes = [8, 384], strides = [1, 1]} : vector<16x768xf32> to vector<8x384xf32>
    %247 = arith.truncf %211 : vector<8x128xf32> to vector<8x128xbf16>
    %c128_83 = arith.constant 128 : index
    %c0_84 = arith.constant 0 : index
    %248 = vector.load %arg3[%c128_83, %c0_84] : memref<256x768xbf16, #tpu.memory_space<vmem>>, vector<128x384xbf16>
    %cst_85 = arith.constant dense<0.000000e+00> : vector<8x384xf32>
    %249 = tpu.matmul %247, %248, %cst_85 {dimension_numbers = #tpu.dot_dimension_numbers<[1], [0], [0], [1], [0, 0, 1, 1], [], []>} : vector<8x128xbf16>, vector<128x384xbf16>, vector<8x384xf32> -> vector<8x384xf32>
    %250 = vector.broadcast %7 : vector<1x384xf32> to vector<8x384xf32>
    %251 = arith.addf %249, %250 : vector<8x384xf32>
    %252 = vector.extract_strided_slice %246 {offsets = [0, 0], sizes = [8, 128], strides = [1, 1]} : vector<8x384xf32> to vector<8x128xf32>
    %253 = vector.extract_strided_slice %251 {offsets = [0, 0], sizes = [8, 128], strides = [1, 1]} : vector<8x384xf32> to vector<8x128xf32>
    %254 = arith.addf %252, %253 : vector<8x128xf32>
    %255 = arith.negf %254 : vector<8x128xf32>
    %256 = math.exp %255 : vector<8x128xf32>
    %cst_86 = arith.constant 1.000000e+00 : f32
    %257 = vector.broadcast %cst_86 : f32 to vector<8x128xf32>
    %258 = arith.addf %257, %256 : vector<8x128xf32>
    %259 = arith.divf %257, %258 : vector<8x128xf32>
    %260 = vector.extract_strided_slice %246 {offsets = [0, 128], sizes = [8, 128], strides = [1, 1]} : vector<8x384xf32> to vector<8x128xf32>
    %261 = vector.extract_strided_slice %251 {offsets = [0, 128], sizes = [8, 128], strides = [1, 1]} : vector<8x384xf32> to vector<8x128xf32>
    %262 = arith.addf %260, %261 : vector<8x128xf32>
    %263 = arith.negf %262 : vector<8x128xf32>
    %264 = math.exp %263 : vector<8x128xf32>
    %cst_87 = arith.constant 1.000000e+00 : f32
    %265 = vector.broadcast %cst_87 : f32 to vector<8x128xf32>
    %266 = arith.addf %265, %264 : vector<8x128xf32>
    %267 = arith.divf %265, %266 : vector<8x128xf32>
    %268 = vector.extract_strided_slice %246 {offsets = [0, 256], sizes = [8, 128], strides = [1, 1]} : vector<8x384xf32> to vector<8x128xf32>
    %269 = vector.extract_strided_slice %251 {offsets = [0, 256], sizes = [8, 128], strides = [1, 1]} : vector<8x384xf32> to vector<8x128xf32>
    %270 = arith.mulf %259, %269 : vector<8x128xf32>
    %271 = arith.addf %268, %270 : vector<8x128xf32>
    %272 = math.tanh %271 : vector<8x128xf32>
    %cst_88 = arith.constant 1.000000e+00 : f32
    %273 = vector.broadcast %cst_88 : f32 to vector<8x128xf32>
    %274 = arith.subf %273, %267 : vector<8x128xf32>
    %275 = arith.mulf %274, %272 : vector<8x128xf32>
    %276 = arith.mulf %267, %211 : vector<8x128xf32>
    %277 = arith.addf %275, %276 : vector<8x128xf32>
    %c8_89 = arith.constant 8 : index
    %c0_90 = arith.constant 0 : index
    %278 = vector.load %arg7[%c8_89, %c0_90] : memref<16x256xf32, #tpu.memory_space<vmem>>, vector<8x128xf32>
    tpu.vector_store %arg7[%c8_89, %c0_90], %277 {strides = array<i32>} : memref<16x256xf32, #tpu.memory_space<vmem>>, vector<8x128xf32>,
    %279 = vector.extract_strided_slice %177 {offsets = [0, 384], sizes = [8, 384], strides = [1, 1]} : vector<16x768xf32> to vector<8x384xf32>
    %280 = arith.truncf %244 : vector<8x128xf32> to vector<8x128xbf16>
    %c128_91 = arith.constant 128 : index
    %c384_92 = arith.constant 384 : index
    %281 = vector.load %arg3[%c128_91, %c384_92] : memref<256x768xbf16, #tpu.memory_space<vmem>>, vector<128x384xbf16>
    %cst_93 = arith.constant dense<0.000000e+00> : vector<8x384xf32>
    %282 = tpu.matmul %280, %281, %cst_93 {dimension_numbers = #tpu.dot_dimension_numbers<[1], [0], [0], [1], [0, 0, 1, 1], [], []>} : vector<8x128xbf16>, vector<128x384xbf16>, vector<8x384xf32> -> vector<8x384xf32>
    %283 = vector.broadcast %8 : vector<1x384xf32> to vector<8x384xf32>
    %284 = arith.addf %282, %283 : vector<8x384xf32>
    %285 = vector.extract_strided_slice %279 {offsets = [0, 0], sizes = [8, 128], strides = [1, 1]} : vector<8x384xf32> to vector<8x128xf32>
    %286 = vector.extract_strided_slice %284 {offsets = [0, 0], sizes = [8, 128], strides = [1, 1]} : vector<8x384xf32> to vector<8x128xf32>
    %287 = arith.addf %285, %286 : vector<8x128xf32>
    %288 = arith.negf %287 : vector<8x128xf32>
    %289 = math.exp %288 : vector<8x128xf32>
    %cst_94 = arith.constant 1.000000e+00 : f32
    %290 = vector.broadcast %cst_94 : f32 to vector<8x128xf32>
    %291 = arith.addf %290, %289 : vector<8x128xf32>
    %292 = arith.divf %290, %291 : vector<8x128xf32>
    %293 = vector.extract_strided_slice %279 {offsets = [0, 128], sizes = [8, 128], strides = [1, 1]} : vector<8x384xf32> to vector<8x128xf32>
    %294 = vector.extract_strided_slice %284 {offsets = [0, 128], sizes = [8, 128], strides = [1, 1]} : vector<8x384xf32> to vector<8x128xf32>
    %295 = arith.addf %293, %294 : vector<8x128xf32>
    %296 = arith.negf %295 : vector<8x128xf32>
    %297 = math.exp %296 : vector<8x128xf32>
    %cst_95 = arith.constant 1.000000e+00 : f32
    %298 = vector.broadcast %cst_95 : f32 to vector<8x128xf32>
    %299 = arith.addf %298, %297 : vector<8x128xf32>
    %300 = arith.divf %298, %299 : vector<8x128xf32>
    %301 = vector.extract_strided_slice %279 {offsets = [0, 256], sizes = [8, 128], strides = [1, 1]} : vector<8x384xf32> to vector<8x128xf32>
    %302 = vector.extract_strided_slice %284 {offsets = [0, 256], sizes = [8, 128], strides = [1, 1]} : vector<8x384xf32> to vector<8x128xf32>
    %303 = arith.mulf %292, %302 : vector<8x128xf32>
    %304 = arith.addf %301, %303 : vector<8x128xf32>
    %305 = math.tanh %304 : vector<8x128xf32>
    %cst_96 = arith.constant 1.000000e+00 : f32
    %306 = vector.broadcast %cst_96 : f32 to vector<8x128xf32>
    %307 = arith.subf %306, %300 : vector<8x128xf32>
    %308 = arith.mulf %307, %305 : vector<8x128xf32>
    %309 = arith.mulf %300, %244 : vector<8x128xf32>
    %310 = arith.addf %308, %309 : vector<8x128xf32>
    %c0_97 = arith.constant 0 : index
    %c128_98 = arith.constant 128 : index
    %311 = vector.load %arg7[%c0_97, %c128_98] : memref<16x256xf32, #tpu.memory_space<vmem>>, vector<8x128xf32>
    tpu.vector_store %arg7[%c0_97, %c128_98], %310 {strides = array<i32>} : memref<16x256xf32, #tpu.memory_space<vmem>>, vector<8x128xf32>,
    %c0_99 = arith.constant 0 : index
    %c0_100 = arith.constant 0 : index
    %312 = vector.load %arg7[%c0_99, %c0_100] : memref<16x256xf32, #tpu.memory_space<vmem>>, vector<16x256xf32>
    %313 = vector.broadcast %9 : vector<1x256xf32> to vector<16x256xf32>
    %314 = arith.mulf %312, %313 : vector<16x256xf32>
    %cst_101 = arith.constant dense<0.000000e+00> : vector<16xf32>
    %315 = vector.multi_reduction <add>, %314, %cst_101 [1] : vector<16x256xf32> to vector<16xf32>
    %316 = vector.shape_cast %315 : vector<16xf32> to vector<16x1xf32>
    %317 = vector.broadcast %10 : vector<1x1xf32> to vector<16x1xf32>
    %318 = arith.addf %316, %317 : vector<16x1xf32>
    %c0_102 = arith.constant 0 : index
    %c0_103 = arith.constant 0 : index
    %319 = vector.load %arg5[%c0_102, %c0_103] : memref<16x1xf32, #tpu.memory_space<vmem>>, vector<16x1xf32>
    tpu.vector_store %arg5[%c0_102, %c0_103], %318 {strides = array<i32>} : memref<16x1xf32, #tpu.memory_space<vmem>>, vector<16x1xf32>,
    return
  }
}

</mosaic_0001>

<llo_original>
// kernel: _lambda_.1
$region0: #{_lambda_.1}
  #allocation0 [shape = 'u32[]', space=smem, size = 0x4, offset = 0x4, fixed_abs, tag = 'smem constant byte address 0x4 - core index']
  #allocation1 [shape = 'u32[144,128]{1,0:T(1,128)}', space=vmem, size = 0x12000, scoped, tag = 'internal scratch']
  #allocation2 [shape = 'f32[16,256]{1,0:T(8,128)}', space=vmem, size = 0x4000, scoped, tag = 'scratch operand']
  #allocation3 [shape = 'f32[16,256]{1,0:T(8,128)}', space=vmem, size = 0x4000, scoped, tag = 'scratch operand']
  %s0 = inlined_call_operand.hbm [shape: f32[16,2048], index: 0, kind: input, shape index: {}]
  %s1 = inlined_call_operand.hbm [shape: bf16[2048,256], index: 1, kind: input, shape index: {}]
  %s2 = inlined_call_operand.hbm [shape: bf16[256,2048], index: 2, kind: input, shape index: {}]
  %s3 = inlined_call_operand.hbm [shape: bf16[256,768], index: 3, kind: input, shape index: {}]
  %s4 = inlined_call_operand.hbm [shape: f32[8,768], index: 4, kind: input, shape index: {}]
  %s5 = inlined_call_operand.vmem [shape: f32[16,1], index: 5, kind: output, shape index: {}]
  %s6 = sld [smem:[#allocation0]]
  $region50: #{_lambda_.1} parent=0
    _
  %s8 = ssub.s32 1, %s6
  %s9 = scalar_select 0, %s8, %s6
  $region1: #{_lambda_.1} parent=0
    #allocation4 [shape = 'u8[131072]{0}', space=vmem, size = 0x20000, scoped, tag = 'input window, operand 0, single buffered']
    #allocation5 [shape = 's32[1]{0}', space=sflag, size = 0x4, scoped, tag = 'scoped memory for _lambda_.1']
    #allocation6 [shape = 'u8[1048576]{0}', space=vmem, size = 0x100000, scoped, tag = 'input window, operand 1, single buffered']
    #allocation7 [shape = 's32[1]{0}', space=sflag, size = 0x4, scoped, tag = 'scoped memory for _lambda_.1']
    #allocation8 [shape = 'u8[1048576]{0}', space=vmem, size = 0x100000, scoped, tag = 'input window, operand 2, single buffered']
    #allocation9 [shape = 'u8[393216]{0}', space=vmem, size = 0x60000, scoped, tag = 'input window, operand 3, single buffered']
    #allocation10 [shape = 's32[1]{0}', space=sflag, size = 0x4, scoped, tag = 'scoped memory for _lambda_.1']
    #allocation11 [shape = 'u8[24576]{0}', space=vmem, size = 0x6000, scoped, tag = 'input window, operand 4, single buffered']
    %10 = vsyncpa [#allocation5], 0
    %11 = vsyncpa [#allocation7], 0
    %12 = vsyncpa [#allocation10], 0
    // Predicated region
    $region2: #{_lambda_.1} parent=1 // pred_check
      _
    $region3: #{_lambda_.1} parent=1 // pred_check_branch
      %14 = sbr.rel (0) target = $region5
    $region4: #{_lambda_.1} parent=1 // pred_region
      %s16 = ssub.s32 4096, 4096
      %17 = vsyncadd [#allocation5], %s16
      %s18 = sshll.u32 [#allocation4], 4
      %s19 = int_to_ptr.vmem [resolvable:$true] %s18
      %24 = dma.hbm_to_vmem [thread:$0]  %s0, 4096, %s19, [#allocation5], 2048, 2048, 128
    $region5: #{_lambda_.1} parent=1 // pred_fallthru
      _
    // Predicated region
    $region6: #{_lambda_.1} parent=1 // pred_check
      _
    $region7: #{_lambda_.1} parent=1 // pred_check_branch
      %26 = sbr.rel (0) target = $region9
    $region8: #{_lambda_.1} parent=1 // pred_region
      %s28 = ssub.s32 32768, 32768
      %29 = vsyncadd [#allocation7], %s28
      %s30 = sshll.u32 [#allocation6], 4
      %s31 = int_to_ptr.vmem [resolvable:$true] %s30
      %36 = dma.hbm_to_vmem [thread:$0]  %s1, 32768, %s31, [#allocation7], 128, 128, 8
    $region9: #{_lambda_.1} parent=1 // pred_fallthru
      _
    // Predicated region
    $region10: #{_lambda_.1} parent=1 // pred_check
      _
    $region11: #{_lambda_.1} parent=1 // pred_check_branch
      %38 = sbr.rel (0) target = $region13
    $region12: #{_lambda_.1} parent=1 // pred_region
      %s40 = ssub.s32 32768, 32768
      %41 = vsyncadd [#allocation7], %s40
      %s42 = sshll.u32 [#allocation8], 4
      %s43 = int_to_ptr.vmem [resolvable:$true] %s42
      %48 = dma.hbm_to_vmem [thread:$0]  %s2, 32768, %s43, [#allocation7], 1024, 1024, 64
    $region13: #{_lambda_.1} parent=1 // pred_fallthru
      _
    // Predicated region
    $region14: #{_lambda_.1} parent=1 // pred_check
      _
    $region15: #{_lambda_.1} parent=1 // pred_check_branch
      %50 = sbr.rel (0) target = $region17
    $region16: #{_lambda_.1} parent=1 // pred_region
      %s52 = ssub.s32 12288, 12288
      %53 = vsyncadd [#allocation10], %s52
      %s54 = sshll.u32 [#allocation9], 4
      %s55 = int_to_ptr.vmem [resolvable:$true] %s54
      %60 = dma.hbm_to_vmem [thread:$0]  %s3, 12288, %s55, [#allocation10], 384, 384, 24
    $region17: #{_lambda_.1} parent=1 // pred_fallthru
      _
    // Predicated region
    $region18: #{_lambda_.1} parent=1 // pred_check
      _
    $region19: #{_lambda_.1} parent=1 // pred_check_branch
      %62 = sbr.rel (0) target = $region21
    $region20: #{_lambda_.1} parent=1 // pred_region
      %s64 = ssub.s32 768, 768
      %65 = vsyncadd [#allocation10], %s64
      %s67 = sshll.u32 [#allocation11], 4
      %s68 = int_to_ptr.vmem [resolvable:$true] %s67
      %70 = dma.hbm_to_vmem [thread:$0]  %s4, 768, %s68, [#allocation10]
    $region21: #{_lambda_.1} parent=1 // pred_fallthru
      _
    // Predicated region
    $region22: #{_lambda_.1} parent=1 // pred_check
      _
    $region23: #{_lambda_.1} parent=1 // pred_check_branch
      %72 = sbr.rel (0) target = $region25
    $region24: #{_lambda_.1} parent=1 // pred_region
      %73 = dma.done [#allocation5], 4096
    $region25: #{_lambda_.1} parent=1 // pred_fallthru
      _
    // Predicated region
    $region26: #{_lambda_.1} parent=1 // pred_check
      _
    $region27: #{_lambda_.1} parent=1 // pred_check_branch
      %75 = sbr.rel (0) target = $region29
    $region28: #{_lambda_.1} parent=1 // pred_region
      %76 = dma.done [#allocation7], 32768
    $region29: #{_lambda_.1} parent=1 // pred_fallthru
      _
    // Predicated region
    $region30: #{_lambda_.1} parent=1 // pred_check
      _
    $region31: #{_lambda_.1} parent=1 // pred_check_branch
      %78 = sbr.rel (0) target = $region33
    $region32: #{_lambda_.1} parent=1 // pred_region
      %79 = dma.done [#allocation7], 32768
    $region33: #{_lambda_.1} parent=1 // pred_fallthru
      _
    // Predicated region
    $region34: #{_lambda_.1} parent=1 // pred_check
      _
    $region35: #{_lambda_.1} parent=1 // pred_check_branch
      %81 = sbr.rel (0) target = $region37
    $region36: #{_lambda_.1} parent=1 // pred_region
      %82 = dma.done [#allocation10], 12288
    $region37: #{_lambda_.1} parent=1 // pred_fallthru
      _
    // Predicated region
    $region38: #{_lambda_.1} parent=1 // pred_check
      _
    $region39: #{_lambda_.1} parent=1 // pred_check_branch
      %84 = sbr.rel (0) target = $region41
    $region40: #{_lambda_.1} parent=1 // pred_region
      %85 = dma.done [#allocation10], 768
    $region41: #{_lambda_.1} parent=1 // pred_fallthru
      _
    %v87 = vld [vmem:[#allocation11] ss:$8 sm:$0x3]
    %s88 = scalar_lea.vmem [#allocation11], 16
    %v89 = vld [vmem:[%s88] ss:$8 sm:$0x3]
    %s90 = scalar_lea.vmem [#allocation11], 32
    %v91 = vld [vmem:[%s90] ss:$8 sm:$0x3]
    %s92 = scalar_lea.vmem [#allocation11], 1
    %v93 = vld [vmem:[%s92] ss:$8 sm:$0xf]
    %v94 = vld [vmem:[%s92] ss:$8 sm:$0x30]
    %v95 = vor.u32 %v93, %v94
    %s96 = scalar_lea.vmem [#allocation11], 2
    %v97 = vld [vmem:[%s96] ss:$8 sm:$0xf]
    %v98 = vld [vmem:[%s96] ss:$8 sm:$0x30]
    %v99 = vor.u32 %v97, %v98
    %s100 = scalar_lea.vmem [#allocation11], 3
    %v101 = vld [vmem:[%s100] ss:$8 sm:$0x7]
    %s102 = scalar_lea.vmem [#allocation11], 27
    %v103 = vld [vmem:[%s102] ss:$8 sm:$0x7]
    %s104 = scalar_lea.vmem [#allocation11], 4
    %v105 = vld [vmem:[%s104] ss:$8 sm:$0x7]
    %s106 = scalar_lea.vmem [#allocation11], 28
    %v107 = vld [vmem:[%s106] ss:$8 sm:$0x7]
    %s108 = scalar_lea.vmem [#allocation11], 5
    %v109 = vld [vmem:[%s108] ss:$8 sm:$0x3]
    %v110 = vld [vmem:[#allocation11 + $0x15] ss:$0 sm:$0xff]
    %v111 = vld [vmem:[#allocation4] sm:$0xff]
    %v112 = vld [vmem:[#allocation4 + $0x8] sm:$0xff]
    %v113 = vld [vmem:[#allocation4 + $0x10] sm:$0xff]
    %v114 = vld [vmem:[#allocation4 + $0x18] sm:$0xff]
    %v115 = vld [vmem:[#allocation4 + $0x20] sm:$0xff]
    %v116 = vld [vmem:[#allocation4 + $0x28] sm:$0xff]
    %v117 = vld [vmem:[#allocation4 + $0x30] sm:$0xff]
    %v118 = vld [vmem:[#allocation4 + $0x38] sm:$0xff]
    %v119 = vld [vmem:[#allocation4 + $0x40] sm:$0xff]
    %v120 = vld [vmem:[#allocation4 + $0x48] sm:$0xff]
    %v121 = vld [vmem:[#allocation4 + $0x50] sm:$0xff]
    %v122 = vld [vmem:[#allocation4 + $0x58] sm:$0xff]
    %v123 = vld [vmem:[#allocation4 + $0x60] sm:$0xff]
    %v124 = vld [vmem:[#allocation4 + $0x68] sm:$0xff]
    %v125 = vld [vmem:[#allocation4 + $0x70] sm:$0xff]
    %v126 = vld [vmem:[#allocation4 + $0x78] sm:$0xff]
    %v127 = vld [vmem:[#allocation4 + $0x80] sm:$0xff]
    %v128 = vld [vmem:[#allocation4 + $0x88] sm:$0xff]
    %v129 = vld [vmem:[#allocation4 + $0x90] sm:$0xff]
    %v130 = vld [vmem:[#allocation4 + $0x98] sm:$0xff]
    %v131 = vld [vmem:[#allocation4 + $0xa0] sm:$0xff]
    %v132 = vld [vmem:[#allocation4 + $0xa8] sm:$0xff]
    %v133 = vld [vmem:[#allocation4 + $0xb0] sm:$0xff]
    %v134 = vld [vmem:[#allocation4 + $0xb8] sm:$0xff]
    %v135 = vld [vmem:[#allocation4 + $0xc0] sm:$0xff]
    %v136 = vld [vmem:[#allocation4 + $0xc8] sm:$0xff]
    %v137 = vld [vmem:[#allocation4 + $0xd0] sm:$0xff]
    %v138 = vld [vmem:[#allocation4 + $0xd8] sm:$0xff]
    %v139 = vld [vmem:[#allocation4 + $0xe0] sm:$0xff]
    %v140 = vld [vmem:[#allocation4 + $0xe8] sm:$0xff]
    %v141 = vld [vmem:[#allocation4 + $0xf0] sm:$0xff]
    %v142 = vld [vmem:[#allocation4 + $0xf8] sm:$0xff]
    %v143 = vpack.c.bf16 %v127, %v111
    %v144 = vpack.c.bf16 %v128, %v112
    %v145 = vpack.c.bf16 %v129, %v113
    %v146 = vpack.c.bf16 %v130, %v114
    %v147 = vpack.c.bf16 %v131, %v115
    %v148 = vpack.c.bf16 %v132, %v116
    %v149 = vpack.c.bf16 %v133, %v117
    %v150 = vpack.c.bf16 %v134, %v118
    %v151 = vpack.c.bf16 %v135, %v119
    %v152 = vpack.c.bf16 %v136, %v120
    %v153 = vpack.c.bf16 %v137, %v121
    %v154 = vpack.c.bf16 %v138, %v122
    %v155 = vpack.c.bf16 %v139, %v123
    %v156 = vpack.c.bf16 %v140, %v124
    %v157 = vpack.c.bf16 %v141, %v125
    %v158 = vpack.c.bf16 %v142, %v126
    %v159 = vld [vmem:[#allocation6] sm:$0xff]
    %v160 = vld [vmem:[#allocation6 + $0x8] sm:$0xff]
    %v161 = vld [vmem:[#allocation6 + $0x10] sm:$0xff]
    %v162 = vld [vmem:[#allocation6 + $0x18] sm:$0xff]
    %v163 = vld [vmem:[#allocation6 + $0x20] sm:$0xff]
    %v164 = vld [vmem:[#allocation6 + $0x28] sm:$0xff]
    %v165 = vld [vmem:[#allocation6 + $0x30] sm:$0xff]
    %v166 = vld [vmem:[#allocation6 + $0x38] sm:$0xff]
    %v167 = vld [vmem:[#allocation6 + $0x40] sm:$0xff]
    %v168 = vld [vmem:[#allocation6 + $0x48] sm:$0xff]
    %v169 = vld [vmem:[#allocation6 + $0x50] sm:$0xff]
    %v170 = vld [vmem:[#allocation6 + $0x58] sm:$0xff]
    %v171 = vld [vmem:[#allocation6 + $0x60] sm:$0xff]
    %v172 = vld [vmem:[#allocation6 + $0x68] sm:$0xff]
    %v173 = vld [vmem:[#allocation6 + $0x70] sm:$0xff]
    %v174 = vld [vmem:[#allocation6 + $0x78] sm:$0xff]
    %v175 = vld [vmem:[#allocation6 + $0x80] sm:$0xff]
    %v176 = vld [vmem:[#allocation6 + $0x88] sm:$0xff]
    %v177 = vld [vmem:[#allocation6 + $0x90] sm:$0xff]
    %v178 = vld [vmem:[#allocation6 + $0x98] sm:$0xff]
    %v179 = vld [vmem:[#allocation6 + $0xa0] sm:$0xff]
    %v180 = vld [vmem:[#allocation6 + $0xa8] sm:$0xff]
    %v181 = vld [vmem:[#allocation6 + $0xb0] sm:$0xff]
    %v182 = vld [vmem:[#allocation6 + $0xb8] sm:$0xff]
    %v183 = vld [vmem:[#allocation6 + $0xc0] sm:$0xff]
    %v184 = vld [vmem:[#allocation6 + $0xc8] sm:$0xff]
    %v185 = vld [vmem:[#allocation6 + $0xd0] sm:$0xff]
    %v186 = vld [vmem:[#allocation6 + $0xd8] sm:$0xff]
    %v187 = vld [vmem:[#allocation6 + $0xe0] sm:$0xff]
    %v188 = vld [vmem:[#allocation6 + $0xe8] sm:$0xff]
    %v189 = vld [vmem:[#allocation6 + $0xf0] sm:$0xff]
    %v190 = vld [vmem:[#allocation6 + $0xf8] sm:$0xff]
    %v191 = vld [vmem:[#allocation6 + $0x100] sm:$0xff]
    %v192 = vld [vmem:[#allocation6 + $0x108] sm:$0xff]
    %v193 = vld [vmem:[#allocation6 + $0x110] sm:$0xff]
    %v194 = vld [vmem:[#allocation6 + $0x118] sm:$0xff]
    %v195 = vld [vmem:[#allocation6 + $0x120] sm:$0xff]
    %v196 = vld [vmem:[#allocation6 + $0x128] sm:$0xff]
    %v197 = vld [vmem:[#allocation6 + $0x130] sm:$0xff]
    %v198 = vld [vmem:[#allocation6 + $0x138] sm:$0xff]
    %v199 = vld [vmem:[#allocation6 + $0x140] sm:$0xff]
    %v200 = vld [vmem:[#allocation6 + $0x148] sm:$0xff]
    %v201 = vld [vmem:[#allocation6 + $0x150] sm:$0xff]
    %v202 = vld [vmem:[#allocation6 + $0x158] sm:$0xff]
    %v203 = vld [vmem:[#allocation6 + $0x160] sm:$0xff]
    %v204 = vld [vmem:[#allocation6 + $0x168] sm:$0xff]
    %v205 = vld [vmem:[#allocation6 + $0x170] sm:$0xff]
    %v206 = vld [vmem:[#allocation6 + $0x178] sm:$0xff]
    %v207 = vld [vmem:[#allocation6 + $0x180] sm:$0xff]
    %v208 = vld [vmem:[#allocation6 + $0x188] sm:$0xff]
    %v209 = vld [vmem:[#allocation6 + $0x190] sm:$0xff]
    %v210 = vld [vmem:[#allocation6 + $0x198] sm:$0xff]
    %v211 = vld [vmem:[#allocation6 + $0x1a0] sm:$0xff]
    %v212 = vld [vmem:[#allocation6 + $0x1a8] sm:$0xff]
    %v213 = vld [vmem:[#allocation6 + $0x1b0] sm:$0xff]
    %v214 = vld [vmem:[#allocation6 + $0x1b8] sm:$0xff]
    %v215 = vld [vmem:[#allocation6 + $0x1c0] sm:$0xff]
    %v216 = vld [vmem:[#allocation6 + $0x1c8] sm:$0xff]
    %v217 = vld [vmem:[#allocation6 + $0x1d0] sm:$0xff]
    %v218 = vld [vmem:[#allocation6 + $0x1d8] sm:$0xff]
    %v219 = vld [vmem:[#allocation6 + $0x1e0] sm:$0xff]
    %v220 = vld [vmem:[#allocation6 + $0x1e8] sm:$0xff]
    %v221 = vld [vmem:[#allocation6 + $0x1f0] sm:$0xff]
    %v222 = vld [vmem:[#allocation6 + $0x1f8] sm:$0xff]
    %v223 = vld [vmem:[#allocation6 + $0x200] sm:$0xff]
    %v224 = vld [vmem:[#allocation6 + $0x208] sm:$0xff]
    %v225 = vld [vmem:[#allocation6 + $0x210] sm:$0xff]
    %v226 = vld [vmem:[#allocation6 + $0x218] sm:$0xff]
    %v227 = vld [vmem:[#allocation6 + $0x220] sm:$0xff]
    %v228 = vld [vmem:[#allocation6 + $0x228] sm:$0xff]
    %v229 = vld [vmem:[#allocation6 + $0x230] sm:$0xff]
    %v230 = vld [vmem:[#allocation6 + $0x238] sm:$0xff]
    %v231 = vld [vmem:[#allocation6 + $0x240] sm:$0xff]
    %v232 = vld [vmem:[#allocation6 + $0x248] sm:$0xff]
    %v233 = vld [vmem:[#allocation6 + $0x250] sm:$0xff]
    %v234 = vld [vmem:[#allocation6 + $0x258] sm:$0xff]
    %v235 = vld [vmem:[#allocation6 + $0x260] sm:$0xff]
    %v236 = vld [vmem:[#allocation6 + $0x268] sm:$0xff]
    %v237 = vld [vmem:[#allocation6 + $0x270] sm:$0xff]
    %v238 = vld [vmem:[#allocation6 + $0x278] sm:$0xff]
    %v239 = vld [vmem:[#allocation6 + $0x280] sm:$0xff]
    %v240 = vld [vmem:[#allocation6 + $0x288] sm:$0xff]
    %v241 = vld [vmem:[#allocation6 + $0x290] sm:$0xff]
    %v242 = vld [vmem:[#allocation6 + $0x298] sm:$0xff]
    %v243 = vld [vmem:[#allocation6 + $0x2a0] sm:$0xff]
    %v244 = vld [vmem:[#allocation6 + $0x2a8] sm:$0xff]
    %v245 = vld [vmem:[#allocation6 + $0x2b0] sm:$0xff]
    %v246 = vld [vmem:[#allocation6 + $0x2b8] sm:$0xff]
    %v247 = vld [vmem:[#allocation6 + $0x2c0] sm:$0xff]
    %v248 = vld [vmem:[#allocation6 + $0x2c8] sm:$0xff]
    %v249 = vld [vmem:[#allocation6 + $0x2d0] sm:$0xff]
    %v250 = vld [vmem:[#allocation6 + $0x2d8] sm:$0xff]
    %v251 = vld [vmem:[#allocation6 + $0x2e0] sm:$0xff]
    %v252 = vld [vmem:[#allocation6 + $0x2e8] sm:$0xff]
    %v253 = vld [vmem:[#allocation6 + $0x2f0] sm:$0xff]
    %v254 = vld [vmem:[#allocation6 + $0x2f8] sm:$0xff]
    %v255 = vld [vmem:[#allocation6 + $0x300] sm:$0xff]
    %v256 = vld [vmem:[#allocation6 + $0x308] sm:$0xff]
    %v257 = vld [vmem:[#allocation6 + $0x310] sm:$0xff]
    %v258 = vld [vmem:[#allocation6 + $0x318] sm:$0xff]
    %v259 = vld [vmem:[#allocation6 + $0x320] sm:$0xff]
    %v260 = vld [vmem:[#allocation6 + $0x328] sm:$0xff]
    %v261 = vld [vmem:[#allocation6 + $0x330] sm:$0xff]
    %v262 = vld [vmem:[#allocation6 + $0x338] sm:$0xff]
    %v263 = vld [vmem:[#allocation6 + $0x340] sm:$0xff]
    %v264 = vld [vmem:[#allocation6 + $0x348] sm:$0xff]
    %v265 = vld [vmem:[#allocation6 + $0x350] sm:$0xff]
    %v266 = vld [vmem:[#allocation6 + $0x358] sm:$0xff]
    %v267 = vld [vmem:[#allocation6 + $0x360] sm:$0xff]
    %v268 = vld [vmem:[#allocation6 + $0x368] sm:$0xff]
    %v269 = vld [vmem:[#allocation6 + $0x370] sm:$0xff]
    %v270 = vld [vmem:[#allocation6 + $0x378] sm:$0xff]
    %v271 = vld [vmem:[#allocation6 + $0x380] sm:$0xff]
    %v272 = vld [vmem:[#allocation6 + $0x388] sm:$0xff]
    %v273 = vld [vmem:[#allocation6 + $0x390] sm:$0xff]
    %v274 = vld [vmem:[#allocation6 + $0x398] sm:$0xff]
    %v275 = vld [vmem:[#allocation6 + $0x3a0] sm:$0xff]
    %v276 = vld [vmem:[#allocation6 + $0x3a8] sm:$0xff]
    %v277 = vld [vmem:[#allocation6 + $0x3b0] sm:$0xff]
    %v278 = vld [vmem:[#allocation6 + $0x3b8] sm:$0xff]
    %v279 = vld [vmem:[#allocation6 + $0x3c0] sm:$0xff]
    %v280 = vld [vmem:[#allocation6 + $0x3c8] sm:$0xff]
    %v281 = vld [vmem:[#allocation6 + $0x3d0] sm:$0xff]
    %v282 = vld [vmem:[#allocation6 + $0x3d8] sm:$0xff]
    %v283 = vld [vmem:[#allocation6 + $0x3e0] sm:$0xff]
    %v284 = vld [vmem:[#allocation6 + $0x3e8] sm:$0xff]
    %v285 = vld [vmem:[#allocation6 + $0x3f0] sm:$0xff]
    %v286 = vld [vmem:[#allocation6 + $0x3f8] sm:$0xff]
    %v287 = vld [vmem:[#allocation6 + $0x400] sm:$0xff]
    %v288 = vld [vmem:[#allocation6 + $0x408] sm:$0xff]
    %v289 = vld [vmem:[#allocation6 + $0x410] sm:$0xff]
    %v290 = vld [vmem:[#allocation6 + $0x418] sm:$0xff]
    %v291 = vld [vmem:[#allocation6 + $0x420] sm:$0xff]
    %v292 = vld [vmem:[#allocation6 + $0x428] sm:$0xff]
    %v293 = vld [vmem:[#allocation6 + $0x430] sm:$0xff]
    %v294 = vld [vmem:[#allocation6 + $0x438] sm:$0xff]
    %v295 = vld [vmem:[#allocation6 + $0x440] sm:$0xff]
    %v296 = vld [vmem:[#allocation6 + $0x448] sm:$0xff]
    %v297 = vld [vmem:[#allocation6 + $0x450] sm:$0xff]
    %v298 = vld [vmem:[#allocation6 + $0x458] sm:$0xff]
    %v299 = vld [vmem:[#allocation6 + $0x460] sm:$0xff]
    %v300 = vld [vmem:[#allocation6 + $0x468] sm:$0xff]
    %v301 = vld [vmem:[#allocation6 + $0x470] sm:$0xff]
    %v302 = vld [vmem:[#allocation6 + $0x478] sm:$0xff]
    %v303 = vld [vmem:[#allocation6 + $0x480] sm:$0xff]
    %v304 = vld [vmem:[#allocation6 + $0x488] sm:$0xff]
    %v305 = vld [vmem:[#allocation6 + $0x490] sm:$0xff]
    %v306 = vld [vmem:[#allocation6 + $0x498] sm:$0xff]
    %v307 = vld [vmem:[#allocation6 + $0x4a0] sm:$0xff]
    %v308 = vld [vmem:[#allocation6 + $0x4a8] sm:$0xff]
    %v309 = vld [vmem:[#allocation6 + $0x4b0] sm:$0xff]
    %v310 = vld [vmem:[#allocation6 + $0x4b8] sm:$0xff]
    %v311 = vld [vmem:[#allocation6 + $0x4c0] sm:$0xff]
    %v312 = vld [vmem:[#allocation6 + $0x4c8] sm:$0xff]
    %v313 = vld [vmem:[#allocation6 + $0x4d0] sm:$0xff]
    %v314 = vld [vmem:[#allocation6 + $0x4d8] sm:$0xff]
    %v315 = vld [vmem:[#allocation6 + $0x4e0] sm:$0xff]
    %v316 = vld [vmem:[#allocation6 + $0x4e8] sm:$0xff]
    %v317 = vld [vmem:[#allocation6 + $0x4f0] sm:$0xff]
    %v318 = vld [vmem:[#allocation6 + $0x4f8] sm:$0xff]
    %v319 = vld [vmem:[#allocation6 + $0x500] sm:$0xff]
    %v320 = vld [vmem:[#allocation6 + $0x508] sm:$0xff]
    %v321 = vld [vmem:[#allocation6 + $0x510] sm:$0xff]
    %v322 = vld [vmem:[#allocation6 + $0x518] sm:$0xff]
    %v323 = vld [vmem:[#allocation6 + $0x520] sm:$0xff]
    %v324 = vld [vmem:[#allocation6 + $0x528] sm:$0xff]
    %v325 = vld [vmem:[#allocation6 + $0x530] sm:$0xff]
    %v326 = vld [vmem:[#allocation6 + $0x538] sm:$0xff]
    %v327 = vld [vmem:[#allocation6 + $0x540] sm:$0xff]
    %v328 = vld [vmem:[#allocation6 + $0x548] sm:$0xff]
    %v329 = vld [vmem:[#allocation6 + $0x550] sm:$0xff]
    %v330 = vld [vmem:[#allocation6 + $0x558] sm:$0xff]
    %v331 = vld [vmem:[#allocation6 + $0x560] sm:$0xff]
    %v332 = vld [vmem:[#allocation6 + $0x568] sm:$0xff]
    %v333 = vld [vmem:[#allocation6 + $0x570] sm:$0xff]
    %v334 = vld [vmem:[#allocation6 + $0x578] sm:$0xff]
    %v335 = vld [vmem:[#allocation6 + $0x580] sm:$0xff]
    %v336 = vld [vmem:[#allocation6 + $0x588] sm:$0xff]
    %v337 = vld [vmem:[#allocation6 + $0x590] sm:$0xff]
    %v338 = vld [vmem:[#allocation6 + $0x598] sm:$0xff]
    %v339 = vld [vmem:[#allocation6 + $0x5a0] sm:$0xff]
    %v340 = vld [vmem:[#allocation6 + $0x5a8] sm:$0xff]
    %v341 = vld [vmem:[#allocation6 + $0x5b0] sm:$0xff]
    %v342 = vld [vmem:[#allocation6 + $0x5b8] sm:$0xff]
    %v343 = vld [vmem:[#allocation6 + $0x5c0] sm:$0xff]
    %v344 = vld [vmem:[#allocation6 + $0x5c8] sm:$0xff]
    %v345 = vld [vmem:[#allocation6 + $0x5d0] sm:$0xff]
    %v346 = vld [vmem:[#allocation6 + $0x5d8] sm:$0xff]
    %v347 = vld [vmem:[#allocation6 + $0x5e0] sm:$0xff]
    %v348 = vld [vmem:[#allocation6 + $0x5e8] sm:$0xff]
    %v349 = vld [vmem:[#allocation6 + $0x5f0] sm:$0xff]
    %v350 = vld [vmem:[#allocation6 + $0x5f8] sm:$0xff]
    %v351 = vld [vmem:[#allocation6 + $0x600] sm:$0xff]
    %v352 = vld [vmem:[#allocation6 + $0x608] sm:$0xff]
    %v353 = vld [vmem:[#allocation6 + $0x610] sm:$0xff]
    %v354 = vld [vmem:[#allocation6 + $0x618] sm:$0xff]
    %v355 = vld [vmem:[#allocation6 + $0x620] sm:$0xff]
    %v356 = vld [vmem:[#allocation6 + $0x628] sm:$0xff]
    %v357 = vld [vmem:[#allocation6 + $0x630] sm:$0xff]
    %v358 = vld [vmem:[#allocation6 + $0x638] sm:$0xff]
    %v359 = vld [vmem:[#allocation6 + $0x640] sm:$0xff]
    %v360 = vld [vmem:[#allocation6 + $0x648] sm:$0xff]
    %v361 = vld [vmem:[#allocation6 + $0x650] sm:$0xff]
    %v362 = vld [vmem:[#allocation6 + $0x658] sm:$0xff]
    %v363 = vld [vmem:[#allocation6 + $0x660] sm:$0xff]
    %v364 = vld [vmem:[#allocation6 + $0x668] sm:$0xff]
    %v365 = vld [vmem:[#allocation6 + $0x670] sm:$0xff]
    %v366 = vld [vmem:[#allocation6 + $0x678] sm:$0xff]
    %v367 = vld [vmem:[#allocation6 + $0x680] sm:$0xff]
    %v368 = vld [vmem:[#allocation6 + $0x688] sm:$0xff]
    %v369 = vld [vmem:[#allocation6 + $0x690] sm:$0xff]
    %v370 = vld [vmem:[#allocation6 + $0x698] sm:$0xff]
    %v371 = vld [vmem:[#allocation6 + $0x6a0] sm:$0xff]
    %v372 = vld [vmem:[#allocation6 + $0x6a8] sm:$0xff]
    %v373 = vld [vmem:[#allocation6 + $0x6b0] sm:$0xff]
    %v374 = vld [vmem:[#allocation6 + $0x6b8] sm:$0xff]
    %v375 = vld [vmem:[#allocation6 + $0x6c0] sm:$0xff]
    %v376 = vld [vmem:[#allocation6 + $0x6c8] sm:$0xff]
    %v377 = vld [vmem:[#allocation6 + $0x6d0] sm:$0xff]
    %v378 = vld [vmem:[#allocation6 + $0x6d8] sm:$0xff]
    %v379 = vld [vmem:[#allocation6 + $0x6e0] sm:$0xff]
    %v380 = vld [vmem:[#allocation6 + $0x6e8] sm:$0xff]
    %v381 = vld [vmem:[#allocation6 + $0x6f0] sm:$0xff]
    %v382 = vld [vmem:[#allocation6 + $0x6f8] sm:$0xff]
    %v383 = vld [vmem:[#allocation6 + $0x700] sm:$0xff]
    %v384 = vld [vmem:[#allocation6 + $0x708] sm:$0xff]
    %v385 = vld [vmem:[#allocation6 + $0x710] sm:$0xff]
    %v386 = vld [vmem:[#allocation6 + $0x718] sm:$0xff]
    %v387 = vld [vmem:[#allocation6 + $0x720] sm:$0xff]
    %v388 = vld [vmem:[#allocation6 + $0x728] sm:$0xff]
    %v389 = vld [vmem:[#allocation6 + $0x730] sm:$0xff]
    %v390 = vld [vmem:[#allocation6 + $0x738] sm:$0xff]
    %v391 = vld [vmem:[#allocation6 + $0x740] sm:$0xff]
    %v392 = vld [vmem:[#allocation6 + $0x748] sm:$0xff]
    %v393 = vld [vmem:[#allocation6 + $0x750] sm:$0xff]
    %v394 = vld [vmem:[#allocation6 + $0x758] sm:$0xff]
    %v395 = vld [vmem:[#allocation6 + $0x760] sm:$0xff]
    %v396 = vld [vmem:[#allocation6 + $0x768] sm:$0xff]
    %v397 = vld [vmem:[#allocation6 + $0x770] sm:$0xff]
    %v398 = vld [vmem:[#allocation6 + $0x778] sm:$0xff]
    %v399 = vld [vmem:[#allocation6 + $0x780] sm:$0xff]
    %v400 = vld [vmem:[#allocation6 + $0x788] sm:$0xff]
    %v401 = vld [vmem:[#allocation6 + $0x790] sm:$0xff]
    %v402 = vld [vmem:[#allocation6 + $0x798] sm:$0xff]
    %v403 = vld [vmem:[#allocation6 + $0x7a0] sm:$0xff]
    %v404 = vld [vmem:[#allocation6 + $0x7a8] sm:$0xff]
    %v405 = vld [vmem:[#allocation6 + $0x7b0] sm:$0xff]
    %v406 = vld [vmem:[#allocation6 + $0x7b8] sm:$0xff]
    %v407 = vld [vmem:[#allocation6 + $0x7c0] sm:$0xff]
    %v408 = vld [vmem:[#allocation6 + $0x7c8] sm:$0xff]
    %v409 = vld [vmem:[#allocation6 + $0x7d0] sm:$0xff]
    %v410 = vld [vmem:[#allocation6 + $0x7d8] sm:$0xff]
    %v411 = vld [vmem:[#allocation6 + $0x7e0] sm:$0xff]
    %v412 = vld [vmem:[#allocation6 + $0x7e8] sm:$0xff]
    %v413 = vld [vmem:[#allocation6 + $0x7f0] sm:$0xff]
    %v414 = vld [vmem:[#allocation6 + $0x7f8] sm:$0xff]
    %v416 = vlaneseq
    %v417 = vshrl.u32 %v416, 7
    %v418 = vsub.s32 0, %v417
    %v419 = vrot.slane %v87, %v418
    %v420 = vlaneseq
    %v421 = vshrl.u32 %v420, 7
    %v422 = vsub.s32 1, %v421
    %v423 = vrot.slane %v87, %v422
    %v682 = vunpack.c.l.b16 %v159
    %v683 = vunpack.c.h.b16 %v159
    %v684 = vunpack.c.l.b16 %v160
    %v685 = vunpack.c.h.b16 %v160
    %v686 = vunpack.c.l.b16 %v161
    %v687 = vunpack.c.h.b16 %v161
    %v688 = vunpack.c.l.b16 %v162
    %v689 = vunpack.c.h.b16 %v162
    %v690 = vunpack.c.l.b16 %v163
    %v691 = vunpack.c.h.b16 %v163
    %v692 = vunpack.c.l.b16 %v164
    %v693 = vunpack.c.h.b16 %v164
    %v694 = vunpack.c.l.b16 %v165
    %v695 = vunpack.c.h.b16 %v165
    %v696 = vunpack.c.l.b16 %v166
    %v697 = vunpack.c.h.b16 %v166
    %v698 = vunpack.c.l.b16 %v167
    %v699 = vunpack.c.h.b16 %v167
    %v700 = vunpack.c.l.b16 %v168
    %v701 = vunpack.c.h.b16 %v168
    %v702 = vunpack.c.l.b16 %v169
    %v703 = vunpack.c.h.b16 %v169
    %v704 = vunpack.c.l.b16 %v170
    %v705 = vunpack.c.h.b16 %v170
    %v706 = vunpack.c.l.b16 %v171
    %v707 = vunpack.c.h.b16 %v171
    %v708 = vunpack.c.l.b16 %v172
    %v709 = vunpack.c.h.b16 %v172
    %v710 = vunpack.c.l.b16 %v173
    %v711 = vunpack.c.h.b16 %v173
    %v712 = vunpack.c.l.b16 %v174
    %v713 = vunpack.c.h.b16 %v174
    %v714 = vunpack.c.l.b16 %v175
    %v715 = vunpack.c.h.b16 %v175
    %v716 = vunpack.c.l.b16 %v176
    %v717 = vunpack.c.h.b16 %v176
    %v718 = vunpack.c.l.b16 %v177
    %v719 = vunpack.c.h.b16 %v177
    %v720 = vunpack.c.l.b16 %v178
    %v721 = vunpack.c.h.b16 %v178
    %v722 = vunpack.c.l.b16 %v179
    %v723 = vunpack.c.h.b16 %v179
    %v724 = vunpack.c.l.b16 %v180
    %v725 = vunpack.c.h.b16 %v180
    %v726 = vunpack.c.l.b16 %v181
    %v727 = vunpack.c.h.b16 %v181
    %v728 = vunpack.c.l.b16 %v182
    %v729 = vunpack.c.h.b16 %v182
    %v730 = vunpack.c.l.b16 %v183
    %v731 = vunpack.c.h.b16 %v183
    %v732 = vunpack.c.l.b16 %v184
    %v733 = vunpack.c.h.b16 %v184
    %v734 = vunpack.c.l.b16 %v185
    %v735 = vunpack.c.h.b16 %v185
    %v736 = vunpack.c.l.b16 %v186
    %v737 = vunpack.c.h.b16 %v186
    %v738 = vunpack.c.l.b16 %v187
    %v739 = vunpack.c.h.b16 %v187
    %v740 = vunpack.c.l.b16 %v188
    %v741 = vunpack.c.h.b16 %v188
    %v742 = vunpack.c.l.b16 %v189
    %v743 = vunpack.c.h.b16 %v189
    %v744 = vunpack.c.l.b16 %v190
    %v745 = vunpack.c.h.b16 %v190
    %v746 = vunpack.c.l.b16 %v191
    %v747 = vunpack.c.h.b16 %v191
    %v748 = vunpack.c.l.b16 %v192
    %v749 = vunpack.c.h.b16 %v192
    %v750 = vunpack.c.l.b16 %v193
    %v751 = vunpack.c.h.b16 %v193
    %v752 = vunpack.c.l.b16 %v194
    %v753 = vunpack.c.h.b16 %v194
    %v754 = vunpack.c.l.b16 %v195
    %v755 = vunpack.c.h.b16 %v195
    %v756 = vunpack.c.l.b16 %v196
    %v757 = vunpack.c.h.b16 %v196
    %v758 = vunpack.c.l.b16 %v197
    %v759 = vunpack.c.h.b16 %v197
    %v760 = vunpack.c.l.b16 %v198
    %v761 = vunpack.c.h.b16 %v198
    %v762 = vunpack.c.l.b16 %v199
    %v763 = vunpack.c.h.b16 %v199
    %v764 = vunpack.c.l.b16 %v200
    %v765 = vunpack.c.h.b16 %v200
    %v766 = vunpack.c.l.b16 %v201
    %v767 = vunpack.c.h.b16 %v201
    %v768 = vunpack.c.l.b16 %v202
    %v769 = vunpack.c.h.b16 %v202
    %v770 = vunpack.c.l.b16 %v203
    %v771 = vunpack.c.h.b16 %v203
    %v772 = vunpack.c.l.b16 %v204
    %v773 = vunpack.c.h.b16 %v204
    %v774 = vunpack.c.l.b16 %v205
    %v775 = vunpack.c.h.b16 %v205
    %v776 = vunpack.c.l.b16 %v206
    %v777 = vunpack.c.h.b16 %v206
    %v778 = vunpack.c.l.b16 %v207
    %v779 = vunpack.c.h.b16 %v207
    %v780 = vunpack.c.l.b16 %v208
    %v781 = vunpack.c.h.b16 %v208
    %v782 = vunpack.c.l.b16 %v209
    %v783 = vunpack.c.h.b16 %v209
    %v784 = vunpack.c.l.b16 %v210
    %v785 = vunpack.c.h.b16 %v210
    %v786 = vunpack.c.l.b16 %v211
    %v787 = vunpack.c.h.b16 %v211
    %v788 = vunpack.c.l.b16 %v212
    %v789 = vunpack.c.h.b16 %v212
    %v790 = vunpack.c.l.b16 %v213
    %v791 = vunpack.c.h.b16 %v213
    %v792 = vunpack.c.l.b16 %v214
    %v793 = vunpack.c.h.b16 %v214
    %v794 = vunpack.c.l.b16 %v215
    %v795 = vunpack.c.h.b16 %v215
    %v796 = vunpack.c.l.b16 %v216
    %v797 = vunpack.c.h.b16 %v216
    %v798 = vunpack.c.l.b16 %v217
    %v799 = vunpack.c.h.b16 %v217
    %v800 = vunpack.c.l.b16 %v218
    %v801 = vunpack.c.h.b16 %v218
    %v802 = vunpack.c.l.b16 %v219
    %v803 = vunpack.c.h.b16 %v219
    %v804 = vunpack.c.l.b16 %v220
    %v805 = vunpack.c.h.b16 %v220
    %v806 = vunpack.c.l.b16 %v221
    %v807 = vunpack.c.h.b16 %v221
    %v808 = vunpack.c.l.b16 %v222
    %v809 = vunpack.c.h.b16 %v222
    %v810 = vunpack.c.l.b16 %v223
    %v811 = vunpack.c.h.b16 %v223
    %v812 = vunpack.c.l.b16 %v224
    %v813 = vunpack.c.h.b16 %v224
    %v814 = vunpack.c.l.b16 %v225
    %v815 = vunpack.c.h.b16 %v225
    %v816 = vunpack.c.l.b16 %v226
    %v817 = vunpack.c.h.b16 %v226
    %v818 = vunpack.c.l.b16 %v227
    %v819 = vunpack.c.h.b16 %v227
    %v820 = vunpack.c.l.b16 %v228
    %v821 = vunpack.c.h.b16 %v228
    %v822 = vunpack.c.l.b16 %v229
    %v823 = vunpack.c.h.b16 %v229
    %v824 = vunpack.c.l.b16 %v230
    %v825 = vunpack.c.h.b16 %v230
    %v826 = vunpack.c.l.b16 %v231
    %v827 = vunpack.c.h.b16 %v231
    %v828 = vunpack.c.l.b16 %v232
    %v829 = vunpack.c.h.b16 %v232
    %v830 = vunpack.c.l.b16 %v233
    %v831 = vunpack.c.h.b16 %v233
    %v832 = vunpack.c.l.b16 %v234
    %v833 = vunpack.c.h.b16 %v234
    %v834 = vunpack.c.l.b16 %v235
    %v835 = vunpack.c.h.b16 %v235
    %v836 = vunpack.c.l.b16 %v236
    %v837 = vunpack.c.h.b16 %v236
    %v838 = vunpack.c.l.b16 %v237
    %v839 = vunpack.c.h.b16 %v237
    %v840 = vunpack.c.l.b16 %v238
    %v841 = vunpack.c.h.b16 %v238
    %v842 = vunpack.c.l.b16 %v239
    %v843 = vunpack.c.h.b16 %v239
    %v844 = vunpack.c.l.b16 %v240
    %v845 = vunpack.c.h.b16 %v240
    %v846 = vunpack.c.l.b16 %v241
    %v847 = vunpack.c.h.b16 %v241
    %v848 = vunpack.c.l.b16 %v242
    %v849 = vunpack.c.h.b16 %v242
    %v850 = vunpack.c.l.b16 %v243
    %v851 = vunpack.c.h.b16 %v243
    %v852 = vunpack.c.l.b16 %v244
    %v853 = vunpack.c.h.b16 %v244
    %v854 = vunpack.c.l.b16 %v245
    %v855 = vunpack.c.h.b16 %v245
    %v856 = vunpack.c.l.b16 %v246
    %v857 = vunpack.c.h.b16 %v246
    %v858 = vunpack.c.l.b16 %v247
    %v859 = vunpack.c.h.b16 %v247
    %v860 = vunpack.c.l.b16 %v248
    %v861 = vunpack.c.h.b16 %v248
    %v862 = vunpack.c.l.b16 %v249
    %v863 = vunpack.c.h.b16 %v249
    %v864 = vunpack.c.l.b16 %v250
    %v865 = vunpack.c.h.b16 %v250
    %v866 = vunpack.c.l.b16 %v251
    %v867 = vunpack.c.h.b16 %v251
    %v868 = vunpack.c.l.b16 %v252
    %v869 = vunpack.c.h.b16 %v252
    %v870 = vunpack.c.l.b16 %v253
    %v871 = vunpack.c.h.b16 %v253
    %v872 = vunpack.c.l.b16 %v254
    %v873 = vunpack.c.h.b16 %v254
    %v874 = vunpack.c.l.b16 %v255
    %v875 = vunpack.c.h.b16 %v255
    %v876 = vunpack.c.l.b16 %v256
    %v877 = vunpack.c.h.b16 %v256
    %v878 = vunpack.c.l.b16 %v257
    %v879 = vunpack.c.h.b16 %v257
    %v880 = vunpack.c.l.b16 %v258
    %v881 = vunpack.c.h.b16 %v258
    %v882 = vunpack.c.l.b16 %v259
    %v883 = vunpack.c.h.b16 %v259
    %v884 = vunpack.c.l.b16 %v260
    %v885 = vunpack.c.h.b16 %v260
    %v886 = vunpack.c.l.b16 %v261
    %v887 = vunpack.c.h.b16 %v261
    %v888 = vunpack.c.l.b16 %v262
    %v889 = vunpack.c.h.b16 %v262
    %v890 = vunpack.c.l.b16 %v263
    %v891 = vunpack.c.h.b16 %v263
    %v892 = vunpack.c.l.b16 %v264
    %v893 = vunpack.c.h.b16 %v264
    %v894 = vunpack.c.l.b16 %v265
    %v895 = vunpack.c.h.b16 %v265
    %v896 = vunpack.c.l.b16 %v266
    %v897 = vunpack.c.h.b16 %v266
    %v898 = vunpack.c.l.b16 %v267
    %v899 = vunpack.c.h.b16 %v267
    %v900 = vunpack.c.l.b16 %v268
    %v901 = vunpack.c.h.b16 %v268
    %v902 = vunpack.c.l.b16 %v269
    %v903 = vunpack.c.h.b16 %v269
    %v904 = vunpack.c.l.b16 %v270
    %v905 = vunpack.c.h.b16 %v270
    %v906 = vunpack.c.l.b16 %v271
    %v907 = vunpack.c.h.b16 %v271
    %v908 = vunpack.c.l.b16 %v272
    %v909 = vunpack.c.h.b16 %v272
    %v910 = vunpack.c.l.b16 %v273
    %v911 = vunpack.c.h.b16 %v273
    %v912 = vunpack.c.l.b16 %v274
    %v913 = vunpack.c.h.b16 %v274
    %v914 = vunpack.c.l.b16 %v275
    %v915 = vunpack.c.h.b16 %v275
    %v916 = vunpack.c.l.b16 %v276
    %v917 = vunpack.c.h.b16 %v276
    %v918 = vunpack.c.l.b16 %v277
    %v919 = vunpack.c.h.b16 %v277
    %v920 = vunpack.c.l.b16 %v278
    %v921 = vunpack.c.h.b16 %v278
    %v922 = vunpack.c.l.b16 %v279
    %v923 = vunpack.c.h.b16 %v279
    %v924 = vunpack.c.l.b16 %v280
    %v925 = vunpack.c.h.b16 %v280
    %v926 = vunpack.c.l.b16 %v281
    %v927 = vunpack.c.h.b16 %v281
    %v928 = vunpack.c.l.b16 %v282
    %v929 = vunpack.c.h.b16 %v282
    %v930 = vunpack.c.l.b16 %v283
    %v931 = vunpack.c.h.b16 %v283
    %v932 = vunpack.c.l.b16 %v284
    %v933 = vunpack.c.h.b16 %v284
    %v934 = vunpack.c.l.b16 %v285
    %v935 = vunpack.c.h.b16 %v285
    %v936 = vunpack.c.l.b16 %v286
    %v937 = vunpack.c.h.b16 %v286
    %v938 = vunpack.c.l.b16 %v287
    %v939 = vunpack.c.h.b16 %v287
    %v940 = vunpack.c.l.b16 %v288
    %v941 = vunpack.c.h.b16 %v288
    %v942 = vunpack.c.l.b16 %v289
    %v943 = vunpack.c.h.b16 %v289
    %v944 = vunpack.c.l.b16 %v290
    %v945 = vunpack.c.h.b16 %v290
    %v946 = vunpack.c.l.b16 %v291
    %v947 = vunpack.c.h.b16 %v291
    %v948 = vunpack.c.l.b16 %v292
    %v949 = vunpack.c.h.b16 %v292
    %v950 = vunpack.c.l.b16 %v293
    %v951 = vunpack.c.h.b16 %v293
    %v952 = vunpack.c.l.b16 %v294
    %v953 = vunpack.c.h.b16 %v294
    %v954 = vunpack.c.l.b16 %v295
    %v955 = vunpack.c.h.b16 %v295
    %v956 = vunpack.c.l.b16 %v296
    %v957 = vunpack.c.h.b16 %v296
    %v958 = vunpack.c.l.b16 %v297
    %v959 = vunpack.c.h.b16 %v297
    %v960 = vunpack.c.l.b16 %v298
    %v961 = vunpack.c.h.b16 %v298
    %v962 = vunpack.c.l.b16 %v299
    %v963 = vunpack.c.h.b16 %v299
    %v964 = vunpack.c.l.b16 %v300
    %v965 = vunpack.c.h.b16 %v300
    %v966 = vunpack.c.l.b16 %v301
    %v967 = vunpack.c.h.b16 %v301
    %v968 = vunpack.c.l.b16 %v302
    %v969 = vunpack.c.h.b16 %v302
    %v970 = vunpack.c.l.b16 %v303
    %v971 = vunpack.c.h.b16 %v303
    %v972 = vunpack.c.l.b16 %v304
    %v973 = vunpack.c.h.b16 %v304
    %v974 = vunpack.c.l.b16 %v305
    %v975 = vunpack.c.h.b16 %v305
    %v976 = vunpack.c.l.b16 %v306
    %v977 = vunpack.c.h.b16 %v306
    %v978 = vunpack.c.l.b16 %v307
    %v979 = vunpack.c.h.b16 %v307
    %v980 = vunpack.c.l.b16 %v308
    %v981 = vunpack.c.h.b16 %v308
    %v982 = vunpack.c.l.b16 %v309
    %v983 = vunpack.c.h.b16 %v309
    %v984 = vunpack.c.l.b16 %v310
    %v985 = vunpack.c.h.b16 %v310
    %v986 = vunpack.c.l.b16 %v311
    %v987 = vunpack.c.h.b16 %v311
    %v988 = vunpack.c.l.b16 %v312
    %v989 = vunpack.c.h.b16 %v312
    %v990 = vunpack.c.l.b16 %v313
    %v991 = vunpack.c.h.b16 %v313
    %v992 = vunpack.c.l.b16 %v314
    %v993 = vunpack.c.h.b16 %v314
    %v994 = vunpack.c.l.b16 %v315
    %v995 = vunpack.c.h.b16 %v315
    %v996 = vunpack.c.l.b16 %v316
    %v997 = vunpack.c.h.b16 %v316
    %v998 = vunpack.c.l.b16 %v317
    %v999 = vunpack.c.h.b16 %v317
    %v1000 = vunpack.c.l.b16 %v318
    %v1001 = vunpack.c.h.b16 %v318
    %v1002 = vunpack.c.l.b16 %v319
    %v1003 = vunpack.c.h.b16 %v319
    %v1004 = vunpack.c.l.b16 %v320
    %v1005 = vunpack.c.h.b16 %v320
    %v1006 = vunpack.c.l.b16 %v321
    %v1007 = vunpack.c.h.b16 %v321
    %v1008 = vunpack.c.l.b16 %v322
    %v1009 = vunpack.c.h.b16 %v322
    %v1010 = vunpack.c.l.b16 %v323
    %v1011 = vunpack.c.h.b16 %v323
    %v1012 = vunpack.c.l.b16 %v324
    %v1013 = vunpack.c.h.b16 %v324
    %v1014 = vunpack.c.l.b16 %v325
    %v1015 = vunpack.c.h.b16 %v325
    %v1016 = vunpack.c.l.b16 %v326
    %v1017 = vunpack.c.h.b16 %v326
    %v1018 = vunpack.c.l.b16 %v327
    %v1019 = vunpack.c.h.b16 %v327
    %v1020 = vunpack.c.l.b16 %v328
    %v1021 = vunpack.c.h.b16 %v328
    %v1022 = vunpack.c.l.b16 %v329
    %v1023 = vunpack.c.h.b16 %v329
    %v1024 = vunpack.c.l.b16 %v330
    %v1025 = vunpack.c.h.b16 %v330
    %v1026 = vunpack.c.l.b16 %v331
    %v1027 = vunpack.c.h.b16 %v331
    %v1028 = vunpack.c.l.b16 %v332
    %v1029 = vunpack.c.h.b16 %v332
    %v1030 = vunpack.c.l.b16 %v333
    %v1031 = vunpack.c.h.b16 %v333
    %v1032 = vunpack.c.l.b16 %v334
    %v1033 = vunpack.c.h.b16 %v334
    %v1034 = vunpack.c.l.b16 %v335
    %v1035 = vunpack.c.h.b16 %v335
    %v1036 = vunpack.c.l.b16 %v336
    %v1037 = vunpack.c.h.b16 %v336
    %v1038 = vunpack.c.l.b16 %v337
    %v1039 = vunpack.c.h.b16 %v337
    %v1040 = vunpack.c.l.b16 %v338
    %v1041 = vunpack.c.h.b16 %v338
    %v1042 = vunpack.c.l.b16 %v339
    %v1043 = vunpack.c.h.b16 %v339
    %v1044 = vunpack.c.l.b16 %v340
    %v1045 = vunpack.c.h.b16 %v340
    %v1046 = vunpack.c.l.b16 %v341
    %v1047 = vunpack.c.h.b16 %v341
    %v1048 = vunpack.c.l.b16 %v342
    %v1049 = vunpack.c.h.b16 %v342
    %v1050 = vunpack.c.l.b16 %v343
    %v1051 = vunpack.c.h.b16 %v343
    %v1052 = vunpack.c.l.b16 %v344
    %v1053 = vunpack.c.h.b16 %v344
    %v1054 = vunpack.c.l.b16 %v345
    %v1055 = vunpack.c.h.b16 %v345
    %v1056 = vunpack.c.l.b16 %v346
    %v1057 = vunpack.c.h.b16 %v346
    %v1058 = vunpack.c.l.b16 %v347
    %v1059 = vunpack.c.h.b16 %v347
    %v1060 = vunpack.c.l.b16 %v348
    %v1061 = vunpack.c.h.b16 %v348
    %v1062 = vunpack.c.l.b16 %v349
    %v1063 = vunpack.c.h.b16 %v349
    %v1064 = vunpack.c.l.b16 %v350
    %v1065 = vunpack.c.h.b16 %v350
    %v1066 = vunpack.c.l.b16 %v351
    %v1067 = vunpack.c.h.b16 %v351
    %v1068 = vunpack.c.l.b16 %v352
    %v1069 = vunpack.c.h.b16 %v352
    %v1070 = vunpack.c.l.b16 %v353
    %v1071 = vunpack.c.h.b16 %v353
    %v1072 = vunpack.c.l.b16 %v354
    %v1073 = vunpack.c.h.b16 %v354
    %v1074 = vunpack.c.l.b16 %v355
    %v1075 = vunpack.c.h.b16 %v355
    %v1076 = vunpack.c.l.b16 %v356
    %v1077 = vunpack.c.h.b16 %v356
    %v1078 = vunpack.c.l.b16 %v357
    %v1079 = vunpack.c.h.b16 %v357
    %v1080 = vunpack.c.l.b16 %v358
    %v1081 = vunpack.c.h.b16 %v358
    %v1082 = vunpack.c.l.b16 %v359
    %v1083 = vunpack.c.h.b16 %v359
    %v1084 = vunpack.c.l.b16 %v360
    %v1085 = vunpack.c.h.b16 %v360
    %v1086 = vunpack.c.l.b16 %v361
    %v1087 = vunpack.c.h.b16 %v361
    %v1088 = vunpack.c.l.b16 %v362
    %v1089 = vunpack.c.h.b16 %v362
    %v1090 = vunpack.c.l.b16 %v363
    %v1091 = vunpack.c.h.b16 %v363
    %v1092 = vunpack.c.l.b16 %v364
    %v1093 = vunpack.c.h.b16 %v364
    %v1094 = vunpack.c.l.b16 %v365
    %v1095 = vunpack.c.h.b16 %v365
    %v1096 = vunpack.c.l.b16 %v366
    %v1097 = vunpack.c.h.b16 %v366
    %v1098 = vunpack.c.l.b16 %v367
    %v1099 = vunpack.c.h.b16 %v367
    %v1100 = vunpack.c.l.b16 %v368
    %v1101 = vunpack.c.h.b16 %v368
    %v1102 = vunpack.c.l.b16 %v369
    %v1103 = vunpack.c.h.b16 %v369
    %v1104 = vunpack.c.l.b16 %v370
    %v1105 = vunpack.c.h.b16 %v370
    %v1106 = vunpack.c.l.b16 %v371
    %v1107 = vunpack.c.h.b16 %v371
    %v1108 = vunpack.c.l.b16 %v372
    %v1109 = vunpack.c.h.b16 %v372
    %v1110 = vunpack.c.l.b16 %v373
    %v1111 = vunpack.c.h.b16 %v373
    %v1112 = vunpack.c.l.b16 %v374
    %v1113 = vunpack.c.h.b16 %v374
    %v1114 = vunpack.c.l.b16 %v375
    %v1115 = vunpack.c.h.b16 %v375
    %v1116 = vunpack.c.l.b16 %v376
    %v1117 = vunpack.c.h.b16 %v376
    %v1118 = vunpack.c.l.b16 %v377
    %v1119 = vunpack.c.h.b16 %v377
    %v1120 = vunpack.c.l.b16 %v378
    %v1121 = vunpack.c.h.b16 %v378
    %v1122 = vunpack.c.l.b16 %v379
    %v1123 = vunpack.c.h.b16 %v379
    %v1124 = vunpack.c.l.b16 %v380
    %v1125 = vunpack.c.h.b16 %v380
    %v1126 = vunpack.c.l.b16 %v381
    %v1127 = vunpack.c.h.b16 %v381
    %v1128 = vunpack.c.l.b16 %v382
    %v1129 = vunpack.c.h.b16 %v382
    %v1130 = vunpack.c.l.b16 %v383
    %v1131 = vunpack.c.h.b16 %v383
    %v1132 = vunpack.c.l.b16 %v384
    %v1133 = vunpack.c.h.b16 %v384
    %v1134 = vunpack.c.l.b16 %v385
    %v1135 = vunpack.c.h.b16 %v385
    %v1136 = vunpack.c.l.b16 %v386
    %v1137 = vunpack.c.h.b16 %v386
    %v1138 = vunpack.c.l.b16 %v387
    %v1139 = vunpack.c.h.b16 %v387
    %v1140 = vunpack.c.l.b16 %v388
    %v1141 = vunpack.c.h.b16 %v388
    %v1142 = vunpack.c.l.b16 %v389
    %v1143 = vunpack.c.h.b16 %v389
    %v1144 = vunpack.c.l.b16 %v390
    %v1145 = vunpack.c.h.b16 %v390
    %v1146 = vunpack.c.l.b16 %v391
    %v1147 = vunpack.c.h.b16 %v391
    %v1148 = vunpack.c.l.b16 %v392
    %v1149 = vunpack.c.h.b16 %v392
    %v1150 = vunpack.c.l.b16 %v393
    %v1151 = vunpack.c.h.b16 %v393
    %v1152 = vunpack.c.l.b16 %v394
    %v1153 = vunpack.c.h.b16 %v394
    %v1154 = vunpack.c.l.b16 %v395
    %v1155 = vunpack.c.h.b16 %v395
    %v1156 = vunpack.c.l.b16 %v396
    %v1157 = vunpack.c.h.b16 %v396
    %v1158 = vunpack.c.l.b16 %v397
    %v1159 = vunpack.c.h.b16 %v397
    %v1160 = vunpack.c.l.b16 %v398
    %v1161 = vunpack.c.h.b16 %v398
    %v1162 = vunpack.c.l.b16 %v399
    %v1163 = vunpack.c.h.b16 %v399
    %v1164 = vunpack.c.l.b16 %v400
    %v1165 = vunpack.c.h.b16 %v400
    %v1166 = vunpack.c.l.b16 %v401
    %v1167 = vunpack.c.h.b16 %v401
    %v1168 = vunpack.c.l.b16 %v402
    %v1169 = vunpack.c.h.b16 %v402
    %v1170 = vunpack.c.l.b16 %v403
    %v1171 = vunpack.c.h.b16 %v403
    %v1172 = vunpack.c.l.b16 %v404
    %v1173 = vunpack.c.h.b16 %v404
    %v1174 = vunpack.c.l.b16 %v405
    %v1175 = vunpack.c.h.b16 %v405
    %v1176 = vunpack.c.l.b16 %v406
    %v1177 = vunpack.c.h.b16 %v406
    %v1178 = vunpack.c.l.b16 %v407
    %v1179 = vunpack.c.h.b16 %v407
    %v1180 = vunpack.c.l.b16 %v408
    %v1181 = vunpack.c.h.b16 %v408
    %v1182 = vunpack.c.l.b16 %v409
    %v1183 = vunpack.c.h.b16 %v409
    %v1184 = vunpack.c.l.b16 %v410
    %v1185 = vunpack.c.h.b16 %v410
    %v1186 = vunpack.c.l.b16 %v411
    %v1187 = vunpack.c.h.b16 %v411
    %v1188 = vunpack.c.l.b16 %v412
    %v1189 = vunpack.c.h.b16 %v412
    %v1190 = vunpack.c.l.b16 %v413
    %v1191 = vunpack.c.h.b16 %v413
    %v1192 = vunpack.c.l.b16 %v414
    %v1193 = vunpack.c.h.b16 %v414
    %v1194 = vpack.c.b16 %v684, %v682
    %v1195 = vpack.c.b16 %v685, %v683
    %v1196 = vpack.c.b16 %v688, %v686
    %v1197 = vpack.c.b16 %v689, %v687
    %v1198 = vpack.c.b16 %v692, %v690
    %v1199 = vpack.c.b16 %v693, %v691
    %v1200 = vpack.c.b16 %v696, %v694
    %v1201 = vpack.c.b16 %v697, %v695
    %v1202 = vpack.c.b16 %v700, %v698
    %v1203 = vpack.c.b16 %v701, %v699
    %v1204 = vpack.c.b16 %v704, %v702
    %v1205 = vpack.c.b16 %v705, %v703
    %v1206 = vpack.c.b16 %v708, %v706
    %v1207 = vpack.c.b16 %v709, %v707
    %v1208 = vpack.c.b16 %v712, %v710
    %v1209 = vpack.c.b16 %v713, %v711
    %v1210 = vpack.c.b16 %v716, %v714
    %v1211 = vpack.c.b16 %v717, %v715
    %v1212 = vpack.c.b16 %v720, %v718
    %v1213 = vpack.c.b16 %v721, %v719
    %v1214 = vpack.c.b16 %v724, %v722
    %v1215 = vpack.c.b16 %v725, %v723
    %v1216 = vpack.c.b16 %v728, %v726
    %v1217 = vpack.c.b16 %v729, %v727
    %v1218 = vpack.c.b16 %v732, %v730
    %v1219 = vpack.c.b16 %v733, %v731
    %v1220 = vpack.c.b16 %v736, %v734
    %v1221 = vpack.c.b16 %v737, %v735
    %v1222 = vpack.c.b16 %v740, %v738
    %v1223 = vpack.c.b16 %v741, %v739
    %v1224 = vpack.c.b16 %v744, %v742
    %v1225 = vpack.c.b16 %v745, %v743
    %v1226 = vpack.c.b16 %v748, %v746
    %v1227 = vpack.c.b16 %v749, %v747
    %v1228 = vpack.c.b16 %v752, %v750
    %v1229 = vpack.c.b16 %v753, %v751
    %v1230 = vpack.c.b16 %v756, %v754
    %v1231 = vpack.c.b16 %v757, %v755
    %v1232 = vpack.c.b16 %v760, %v758
    %v1233 = vpack.c.b16 %v761, %v759
    %v1234 = vpack.c.b16 %v764, %v762
    %v1235 = vpack.c.b16 %v765, %v763
    %v1236 = vpack.c.b16 %v768, %v766
    %v1237 = vpack.c.b16 %v769, %v767
    %v1238 = vpack.c.b16 %v772, %v770
    %v1239 = vpack.c.b16 %v773, %v771
    %v1240 = vpack.c.b16 %v776, %v774
    %v1241 = vpack.c.b16 %v777, %v775
    %v1242 = vpack.c.b16 %v780, %v778
    %v1243 = vpack.c.b16 %v781, %v779
    %v1244 = vpack.c.b16 %v784, %v782
    %v1245 = vpack.c.b16 %v785, %v783
    %v1246 = vpack.c.b16 %v788, %v786
    %v1247 = vpack.c.b16 %v789, %v787
    %v1248 = vpack.c.b16 %v792, %v790
    %v1249 = vpack.c.b16 %v793, %v791
    %v1250 = vpack.c.b16 %v796, %v794
    %v1251 = vpack.c.b16 %v797, %v795
    %v1252 = vpack.c.b16 %v800, %v798
    %v1253 = vpack.c.b16 %v801, %v799
    %v1254 = vpack.c.b16 %v804, %v802
    %v1255 = vpack.c.b16 %v805, %v803
    %v1256 = vpack.c.b16 %v808, %v806
    %v1257 = vpack.c.b16 %v809, %v807
    %v1258 = vpack.c.b16 %v812, %v810
    %v1259 = vpack.c.b16 %v813, %v811
    %v1260 = vpack.c.b16 %v816, %v814
    %v1261 = vpack.c.b16 %v817, %v815
    %v1262 = vpack.c.b16 %v820, %v818
    %v1263 = vpack.c.b16 %v821, %v819
    %v1264 = vpack.c.b16 %v824, %v822
    %v1265 = vpack.c.b16 %v825, %v823
    %v1266 = vpack.c.b16 %v828, %v826
    %v1267 = vpack.c.b16 %v829, %v827
    %v1268 = vpack.c.b16 %v832, %v830
    %v1269 = vpack.c.b16 %v833, %v831
    %v1270 = vpack.c.b16 %v836, %v834
    %v1271 = vpack.c.b16 %v837, %v835
    %v1272 = vpack.c.b16 %v840, %v838
    %v1273 = vpack.c.b16 %v841, %v839
    %v1274 = vpack.c.b16 %v844, %v842
    %v1275 = vpack.c.b16 %v845, %v843
    %v1276 = vpack.c.b16 %v848, %v846
    %v1277 = vpack.c.b16 %v849, %v847
    %v1278 = vpack.c.b16 %v852, %v850
    %v1279 = vpack.c.b16 %v853, %v851
    %v1280 = vpack.c.b16 %v856, %v854
    %v1281 = vpack.c.b16 %v857, %v855
    %v1282 = vpack.c.b16 %v860, %v858
    %v1283 = vpack.c.b16 %v861, %v859
    %v1284 = vpack.c.b16 %v864, %v862
    %v1285 = vpack.c.b16 %v865, %v863
    %v1286 = vpack.c.b16 %v868, %v866
    %v1287 = vpack.c.b16 %v869, %v867
    %v1288 = vpack.c.b16 %v872, %v870
    %v1289 = vpack.c.b16 %v873, %v871
    %v1290 = vpack.c.b16 %v876, %v874
    %v1291 = vpack.c.b16 %v877, %v875
    %v1292 = vpack.c.b16 %v880, %v878
    %v1293 = vpack.c.b16 %v881, %v879
    %v1294 = vpack.c.b16 %v884, %v882
    %v1295 = vpack.c.b16 %v885, %v883
    %v1296 = vpack.c.b16 %v888, %v886
    %v1297 = vpack.c.b16 %v889, %v887
    %v1298 = vpack.c.b16 %v892, %v890
    %v1299 = vpack.c.b16 %v893, %v891
    %v1300 = vpack.c.b16 %v896, %v894
    %v1301 = vpack.c.b16 %v897, %v895
    %v1302 = vpack.c.b16 %v900, %v898
    %v1303 = vpack.c.b16 %v901, %v899
    %v1304 = vpack.c.b16 %v904, %v902
    %v1305 = vpack.c.b16 %v905, %v903
    %v1306 = vpack.c.b16 %v908, %v906
    %v1307 = vpack.c.b16 %v909, %v907
    %v1308 = vpack.c.b16 %v912, %v910
    %v1309 = vpack.c.b16 %v913, %v911
    %v1310 = vpack.c.b16 %v916, %v914
    %v1311 = vpack.c.b16 %v917, %v915
    %v1312 = vpack.c.b16 %v920, %v918
    %v1313 = vpack.c.b16 %v921, %v919
    %v1314 = vpack.c.b16 %v924, %v922
    %v1315 = vpack.c.b16 %v925, %v923
    %v1316 = vpack.c.b16 %v928, %v926
    %v1317 = vpack.c.b16 %v929, %v927
    %v1318 = vpack.c.b16 %v932, %v930
    %v1319 = vpack.c.b16 %v933, %v931
    %v1320 = vpack.c.b16 %v936, %v934
    %v1321 = vpack.c.b16 %v937, %v935
    %v1322 = vpack.c.b16 %v940, %v938
    %v1323 = vpack.c.b16 %v941, %v939
    %v1324 = vpack.c.b16 %v944, %v942
    %v1325 = vpack.c.b16 %v945, %v943
    %v1326 = vpack.c.b16 %v948, %v946
    %v1327 = vpack.c.b16 %v949, %v947
    %v1328 = vpack.c.b16 %v952, %v950
    %v1329 = vpack.c.b16 %v953, %v951
    %v1330 = vpack.c.b16 %v956, %v954
    %v1331 = vpack.c.b16 %v957, %v955
    %v1332 = vpack.c.b16 %v960, %v958
    %v1333 = vpack.c.b16 %v961, %v959
    %v1334 = vpack.c.b16 %v964, %v962
    %v1335 = vpack.c.b16 %v965, %v963
    %v1336 = vpack.c.b16 %v968, %v966
    %v1337 = vpack.c.b16 %v969, %v967
    %v1338 = vpack.c.b16 %v972, %v970
    %v1339 = vpack.c.b16 %v973, %v971
    %v1340 = vpack.c.b16 %v976, %v974
    %v1341 = vpack.c.b16 %v977, %v975
    %v1342 = vpack.c.b16 %v980, %v978
    %v1343 = vpack.c.b16 %v981, %v979
    %v1344 = vpack.c.b16 %v984, %v982
    %v1345 = vpack.c.b16 %v985, %v983
    %v1346 = vpack.c.b16 %v988, %v986
    %v1347 = vpack.c.b16 %v989, %v987
    %v1348 = vpack.c.b16 %v992, %v990
    %v1349 = vpack.c.b16 %v993, %v991
    %v1350 = vpack.c.b16 %v996, %v994
    %v1351 = vpack.c.b16 %v997, %v995
    %v1352 = vpack.c.b16 %v1000, %v998
    %v1353 = vpack.c.b16 %v1001, %v999
    %v1354 = vpack.c.b16 %v1004, %v1002
    %v1355 = vpack.c.b16 %v1005, %v1003
    %v1356 = vpack.c.b16 %v1008, %v1006
    %v1357 = vpack.c.b16 %v1009, %v1007
    %v1358 = vpack.c.b16 %v1012, %v1010
    %v1359 = vpack.c.b16 %v1013, %v1011
    %v1360 = vpack.c.b16 %v1016, %v1014
    %v1361 = vpack.c.b16 %v1017, %v1015
    %v1362 = vpack.c.b16 %v1020, %v1018
    %v1363 = vpack.c.b16 %v1021, %v1019
    %v1364 = vpack.c.b16 %v1024, %v1022
    %v1365 = vpack.c.b16 %v1025, %v1023
    %v1366 = vpack.c.b16 %v1028, %v1026
    %v1367 = vpack.c.b16 %v1029, %v1027
    %v1368 = vpack.c.b16 %v1032, %v1030
    %v1369 = vpack.c.b16 %v1033, %v1031
    %v1370 = vpack.c.b16 %v1036, %v1034
    %v1371 = vpack.c.b16 %v1037, %v1035
    %v1372 = vpack.c.b16 %v1040, %v1038
    %v1373 = vpack.c.b16 %v1041, %v1039
    %v1374 = vpack.c.b16 %v1044, %v1042
    %v1375 = vpack.c.b16 %v1045, %v1043
    %v1376 = vpack.c.b16 %v1048, %v1046
    %v1377 = vpack.c.b16 %v1049, %v1047
    %v1378 = vpack.c.b16 %v1052, %v1050
    %v1379 = vpack.c.b16 %v1053, %v1051
    %v1380 = vpack.c.b16 %v1056, %v1054
    %v1381 = vpack.c.b16 %v1057, %v1055
    %v1382 = vpack.c.b16 %v1060, %v1058
    %v1383 = vpack.c.b16 %v1061, %v1059
    %v1384 = vpack.c.b16 %v1064, %v1062
    %v1385 = vpack.c.b16 %v1065, %v1063
    %v1386 = vpack.c.b16 %v1068, %v1066
    %v1387 = vpack.c.b16 %v1069, %v1067
    %v1388 = vpack.c.b16 %v1072, %v1070
    %v1389 = vpack.c.b16 %v1073, %v1071
    %v1390 = vpack.c.b16 %v1076, %v1074
    %v1391 = vpack.c.b16 %v1077, %v1075
    %v1392 = vpack.c.b16 %v1080, %v1078
    %v1393 = vpack.c.b16 %v1081, %v1079
    %v1394 = vpack.c.b16 %v1084, %v1082
    %v1395 = vpack.c.b16 %v1085, %v1083
    %v1396 = vpack.c.b16 %v1088, %v1086
    %v1397 = vpack.c.b16 %v1089, %v1087
    %v1398 = vpack.c.b16 %v1092, %v1090
    %v1399 = vpack.c.b16 %v1093, %v1091
    %v1400 = vpack.c.b16 %v1096, %v1094
    %v1401 = vpack.c.b16 %v1097, %v1095
    %v1402 = vpack.c.b16 %v1100, %v1098
    %v1403 = vpack.c.b16 %v1101, %v1099
    %v1404 = vpack.c.b16 %v1104, %v1102
    %v1405 = vpack.c.b16 %v1105, %v1103
    %v1406 = vpack.c.b16 %v1108, %v1106
    %v1407 = vpack.c.b16 %v1109, %v1107
    %v1408 = vpack.c.b16 %v1112, %v1110
    %v1409 = vpack.c.b16 %v1113, %v1111
    %v1410 = vpack.c.b16 %v1116, %v1114
    %v1411 = vpack.c.b16 %v1117, %v1115
    %v1412 = vpack.c.b16 %v1120, %v1118
    %v1413 = vpack.c.b16 %v1121, %v1119
    %v1414 = vpack.c.b16 %v1124, %v1122
    %v1415 = vpack.c.b16 %v1125, %v1123
    %v1416 = vpack.c.b16 %v1128, %v1126
    %v1417 = vpack.c.b16 %v1129, %v1127
    %v1418 = vpack.c.b16 %v1132, %v1130
    %v1419 = vpack.c.b16 %v1133, %v1131
    %v1420 = vpack.c.b16 %v1136, %v1134
    %v1421 = vpack.c.b16 %v1137, %v1135
    %v1422 = vpack.c.b16 %v1140, %v1138
    %v1423 = vpack.c.b16 %v1141, %v1139
    %v1424 = vpack.c.b16 %v1144, %v1142
    %v1425 = vpack.c.b16 %v1145, %v1143
    %v1426 = vpack.c.b16 %v1148, %v1146
    %v1427 = vpack.c.b16 %v1149, %v1147
    %v1428 = vpack.c.b16 %v1152, %v1150
    %v1429 = vpack.c.b16 %v1153, %v1151
    %v1430 = vpack.c.b16 %v1156, %v1154
    %v1431 = vpack.c.b16 %v1157, %v1155
    %v1432 = vpack.c.b16 %v1160, %v1158
    %v1433 = vpack.c.b16 %v1161, %v1159
    %v1434 = vpack.c.b16 %v1164, %v1162
    %v1435 = vpack.c.b16 %v1165, %v1163
    %v1436 = vpack.c.b16 %v1168, %v1166
    %v1437 = vpack.c.b16 %v1169, %v1167
    %v1438 = vpack.c.b16 %v1172, %v1170
    %v1439 = vpack.c.b16 %v1173, %v1171
    %v1440 = vpack.c.b16 %v1176, %v1174
    %v1441 = vpack.c.b16 %v1177, %v1175
    %v1442 = vpack.c.b16 %v1180, %v1178
    %v1443 = vpack.c.b16 %v1181, %v1179
    %v1444 = vpack.c.b16 %v1184, %v1182
    %v1445 = vpack.c.b16 %v1185, %v1183
    %v1446 = vpack.c.b16 %v1188, %v1186
    %v1447 = vpack.c.b16 %v1189, %v1187
    %v1448 = vpack.c.b16 %v1192, %v1190
    %v1449 = vpack.c.b16 %v1193, %v1191
    %1706 = vmatprep.subr.bf16.mxu0 %v1209
    %1707 = vmatpush1.bf16.msra.mxu0 %v1208
    %1708 = vmatprep.subr.bf16.mxu0 %v1207
    %1709 = vmatpush1.bf16.msra.mxu0 %v1206
    %1710 = vmatprep.subr.bf16.mxu0 %v1205
    %1711 = vmatpush1.bf16.msra.mxu0 %v1204
    %1712 = vmatprep.subr.bf16.mxu0 %v1203
    %1713 = vmatpush1.bf16.msra.mxu0 %v1202
    %1714 = vmatprep.subr.bf16.mxu0 %v1201
    %1715 = vmatpush1.bf16.msra.mxu0 %v1200
    %1716 = vmatprep.subr.bf16.mxu0 %v1199
    %1717 = vmatpush1.bf16.msra.mxu0 %v1198
    %1718 = vmatprep.subr.bf16.mxu0 %v1197
    %1719 = vmatpush1.bf16.msra.mxu0 %v1196
    %1720 = vmatprep.subr.bf16.mxu0 %v1195
    %1721 = vmatpush1.bf16.msra.mxu0 %v1194
    %1722 = vmatprep.subr.bf16.mxu0 %v1225
    %1723 = vmatpush2.bf16.msra.mxu0 %v1224
    %1724 = vmatprep.subr.bf16.mxu0 %v1223
    %1725 = vmatpush2.bf16.msra.mxu0 %v1222
    %1726 = vmatprep.subr.bf16.mxu0 %v1221
    %1727 = vmatpush2.bf16.msra.mxu0 %v1220
    %1728 = vmatprep.subr.bf16.mxu0 %v1219
    %1729 = vmatpush2.bf16.msra.mxu0 %v1218
    %1730 = vmatprep.subr.bf16.mxu0 %v1217
    %1731 = vmatpush2.bf16.msra.mxu0 %v1216
    %1732 = vmatprep.subr.bf16.mxu0 %v1215
    %1733 = vmatpush2.bf16.msra.mxu0 %v1214
    %1734 = vmatprep.subr.bf16.mxu0 %v1213
    %1735 = vmatpush2.bf16.msra.mxu0 %v1212
    %1736 = vmatprep.subr.bf16.mxu0 %v1211
    %1737 = vmatpush2.bf16.msra.mxu0 %v1210
    %1738 = vmatprep.mubr.bf16.mxu0 %v144
    %1739 = vmatmul.mubr.bf16.gmra.mxu0 %v143
    %v1740 = vpop.f32.mrf.mxu0
    %v1741 = vadd.f32 %v419, %v1740
    %v1742 = vpop.f32.mrf.mxu0
    %v1743 = vadd.f32 %v423, %v1742
    %v1744 = vpop.f32.mrf.mxu0
    %v1745 = vadd.f32 %v419, %v1744
    %v1746 = vpop.f32.mrf.mxu0
    %v1747 = vadd.f32 %v423, %v1746
    %1748 = vdwg.mxu0
    %1749 = vmatprep.subr.bf16.mxu0 %v1241
    %1750 = vmatpush1.bf16.msra.mxu0 %v1240
    %1751 = vmatprep.subr.bf16.mxu0 %v1239
    %1752 = vmatpush1.bf16.msra.mxu0 %v1238
    %1753 = vmatprep.subr.bf16.mxu0 %v1237
    %1754 = vmatpush1.bf16.msra.mxu0 %v1236
    %1755 = vmatprep.subr.bf16.mxu0 %v1235
    %1756 = vmatpush1.bf16.msra.mxu0 %v1234
    %1757 = vmatprep.subr.bf16.mxu0 %v1233
    %1758 = vmatpush1.bf16.msra.mxu0 %v1232
    %1759 = vmatprep.subr.bf16.mxu0 %v1231
    %1760 = vmatpush1.bf16.msra.mxu0 %v1230
    %1761 = vmatprep.subr.bf16.mxu0 %v1229
    %1762 = vmatpush1.bf16.msra.mxu0 %v1228
    %1763 = vmatprep.subr.bf16.mxu0 %v1227
    %1764 = vmatpush1.bf16.msra.mxu0 %v1226
    %1765 = vmatprep.subr.bf16.mxu0 %v1257
    %1766 = vmatpush2.bf16.msra.mxu0 %v1256
    %1767 = vmatprep.subr.bf16.mxu0 %v1255
    %1768 = vmatpush2.bf16.msra.mxu0 %v1254
    %1769 = vmatprep.subr.bf16.mxu0 %v1253
    %1770 = vmatpush2.bf16.msra.mxu0 %v1252
    %1771 = vmatprep.subr.bf16.mxu0 %v1251
    %1772 = vmatpush2.bf16.msra.mxu0 %v1250
    %1773 = vmatprep.subr.bf16.mxu0 %v1249
    %1774 = vmatpush2.bf16.msra.mxu0 %v1248
    %1775 = vmatprep.subr.bf16.mxu0 %v1247
    %1776 = vmatpush2.bf16.msra.mxu0 %v1246
    %1777 = vmatprep.subr.bf16.mxu0 %v1245
    %1778 = vmatpush2.bf16.msra.mxu0 %v1244
    %1779 = vmatprep.subr.bf16.mxu0 %v1243
    %1780 = vmatpush2.bf16.msra.mxu0 %v1242
    %1781 = vmatprep.mubr.bf16.mxu0 %v146
    %1782 = vmatmul.mubr.bf16.gmra.mxu0 %v145
    %v1783 = vpop.f32.mrf.mxu0
    %v1784 = vadd.f32 %v1741, %v1783
    %v1785 = vpop.f32.mrf.mxu0
    %v1786 = vadd.f32 %v1743, %v1785
    %v1787 = vpop.f32.mrf.mxu0
    %v1788 = vadd.f32 %v1745, %v1787
    %v1789 = vpop.f32.mrf.mxu0
    %v1790 = vadd.f32 %v1747, %v1789
    %1791 = vdwg.mxu0
    %1792 = vmatprep.subr.bf16.mxu0 %v1273
    %1793 = vmatpush1.bf16.msra.mxu0 %v1272
    %1794 = vmatprep.subr.bf16.mxu0 %v1271
    %1795 = vmatpush1.bf16.msra.mxu0 %v1270
    %1796 = vmatprep.subr.bf16.mxu0 %v1269
    %1797 = vmatpush1.bf16.msra.mxu0 %v1268
    %1798 = vmatprep.subr.bf16.mxu0 %v1267
    %1799 = vmatpush1.bf16.msra.mxu0 %v1266
    %1800 = vmatprep.subr.bf16.mxu0 %v1265
    %1801 = vmatpush1.bf16.msra.mxu0 %v1264
    %1802 = vmatprep.subr.bf16.mxu0 %v1263
    %1803 = vmatpush1.bf16.msra.mxu0 %v1262
    %1804 = vmatprep.subr.bf16.mxu0 %v1261
    %1805 = vmatpush1.bf16.msra.mxu0 %v1260
    %1806 = vmatprep.subr.bf16.mxu0 %v1259
    %1807 = vmatpush1.bf16.msra.mxu0 %v1258
    %1808 = vmatprep.subr.bf16.mxu0 %v1289
    %1809 = vmatpush2.bf16.msra.mxu0 %v1288
    %1810 = vmatprep.subr.bf16.mxu0 %v1287
    %1811 = vmatpush2.bf16.msra.mxu0 %v1286
    %1812 = vmatprep.subr.bf16.mxu0 %v1285
    %1813 = vmatpush2.bf16.msra.mxu0 %v1284
    %1814 = vmatprep.subr.bf16.mxu0 %v1283
    %1815 = vmatpush2.bf16.msra.mxu0 %v1282
    %1816 = vmatprep.subr.bf16.mxu0 %v1281
    %1817 = vmatpush2.bf16.msra.mxu0 %v1280
    %1818 = vmatprep.subr.bf16.mxu0 %v1279
    %1819 = vmatpush2.bf16.msra.mxu0 %v1278
    %1820 = vmatprep.subr.bf16.mxu0 %v1277
    %1821 = vmatpush2.bf16.msra.mxu0 %v1276
    %1822 = vmatprep.subr.bf16.mxu0 %v1275
    %1823 = vmatpush2.bf16.msra.mxu0 %v1274
    %1824 = vmatprep.mubr.bf16.mxu0 %v148
    %1825 = vmatmul.mubr.bf16.gmra.mxu0 %v147
    %v1826 = vpop.f32.mrf.mxu0
    %v1827 = vadd.f32 %v1784, %v1826
    %v1828 = vpop.f32.mrf.mxu0
    %v1829 = vadd.f32 %v1786, %v1828
    %v1830 = vpop.f32.mrf.mxu0
    %v1831 = vadd.f32 %v1788, %v1830
    %v1832 = vpop.f32.mrf.mxu0
    %v1833 = vadd.f32 %v1790, %v1832
    %1834 = vdwg.mxu0
    %1835 = vmatprep.subr.bf16.mxu0 %v1305
    %1836 = vmatpush1.bf16.msra.mxu0 %v1304
    %1837 = vmatprep.subr.bf16.mxu0 %v1303
    %1838 = vmatpush1.bf16.msra.mxu0 %v1302
    %1839 = vmatprep.subr.bf16.mxu0 %v1301
    %1840 = vmatpush1.bf16.msra.mxu0 %v1300
    %1841 = vmatprep.subr.bf16.mxu0 %v1299
    %1842 = vmatpush1.bf16.msra.mxu0 %v1298
    %1843 = vmatprep.subr.bf16.mxu0 %v1297
    %1844 = vmatpush1.bf16.msra.mxu0 %v1296
    %1845 = vmatprep.subr.bf16.mxu0 %v1295
    %1846 = vmatpush1.bf16.msra.mxu0 %v1294
    %1847 = vmatprep.subr.bf16.mxu0 %v1293
    %1848 = vmatpush1.bf16.msra.mxu0 %v1292
    %1849 = vmatprep.subr.bf16.mxu0 %v1291
    %1850 = vmatpush1.bf16.msra.mxu0 %v1290
    %1851 = vmatprep.subr.bf16.mxu0 %v1321
    %1852 = vmatpush2.bf16.msra.mxu0 %v1320
    %1853 = vmatprep.subr.bf16.mxu0 %v1319
    %1854 = vmatpush2.bf16.msra.mxu0 %v1318
    %1855 = vmatprep.subr.bf16.mxu0 %v1317
    %1856 = vmatpush2.bf16.msra.mxu0 %v1316
    %1857 = vmatprep.subr.bf16.mxu0 %v1315
    %1858 = vmatpush2.bf16.msra.mxu0 %v1314
    %1859 = vmatprep.subr.bf16.mxu0 %v1313
    %1860 = vmatpush2.bf16.msra.mxu0 %v1312
    %1861 = vmatprep.subr.bf16.mxu0 %v1311
    %1862 = vmatpush2.bf16.msra.mxu0 %v1310
    %1863 = vmatprep.subr.bf16.mxu0 %v1309
    %1864 = vmatpush2.bf16.msra.mxu0 %v1308
    %1865 = vmatprep.subr.bf16.mxu0 %v1307
    %1866 = vmatpush2.bf16.msra.mxu0 %v1306
    %1867 = vmatprep.mubr.bf16.mxu0 %v150
    %1868 = vmatmul.mubr.bf16.gmra.mxu0 %v149
    %v1869 = vpop.f32.mrf.mxu0
    %v1870 = vadd.f32 %v1827, %v1869
    %v1871 = vpop.f32.mrf.mxu0
    %v1872 = vadd.f32 %v1829, %v1871
    %v1873 = vpop.f32.mrf.mxu0
    %v1874 = vadd.f32 %v1831, %v1873
    %v1875 = vpop.f32.mrf.mxu0
    %v1876 = vadd.f32 %v1833, %v1875
    %1877 = vdwg.mxu0
    %1878 = vmatprep.subr.bf16.mxu0 %v1337
    %1879 = vmatpush1.bf16.msra.mxu0 %v1336
    %1880 = vmatprep.subr.bf16.mxu0 %v1335
    %1881 = vmatpush1.bf16.msra.mxu0 %v1334
    %1882 = vmatprep.subr.bf16.mxu0 %v1333
    %1883 = vmatpush1.bf16.msra.mxu0 %v1332
    %1884 = vmatprep.subr.bf16.mxu0 %v1331
    %1885 = vmatpush1.bf16.msra.mxu0 %v1330
    %1886 = vmatprep.subr.bf16.mxu0 %v1329
    %1887 = vmatpush1.bf16.msra.mxu0 %v1328
    %1888 = vmatprep.subr.bf16.mxu0 %v1327
    %1889 = vmatpush1.bf16.msra.mxu0 %v1326
    %1890 = vmatprep.subr.bf16.mxu0 %v1325
    %1891 = vmatpush1.bf16.msra.mxu0 %v1324
    %1892 = vmatprep.subr.bf16.mxu0 %v1323
    %1893 = vmatpush1.bf16.msra.mxu0 %v1322
    %1894 = vmatprep.subr.bf16.mxu0 %v1353
    %1895 = vmatpush2.bf16.msra.mxu0 %v1352
    %1896 = vmatprep.subr.bf16.mxu0 %v1351
    %1897 = vmatpush2.bf16.msra.mxu0 %v1350
    %1898 = vmatprep.subr.bf16.mxu0 %v1349
    %1899 = vmatpush2.bf16.msra.mxu0 %v1348
    %1900 = vmatprep.subr.bf16.mxu0 %v1347
    %1901 = vmatpush2.bf16.msra.mxu0 %v1346
    %1902 = vmatprep.subr.bf16.mxu0 %v1345
    %1903 = vmatpush2.bf16.msra.mxu0 %v1344
    %1904 = vmatprep.subr.bf16.mxu0 %v1343
    %1905 = vmatpush2.bf16.msra.mxu0 %v1342
    %1906 = vmatprep.subr.bf16.mxu0 %v1341
    %1907 = vmatpush2.bf16.msra.mxu0 %v1340
    %1908 = vmatprep.subr.bf16.mxu0 %v1339
    %1909 = vmatpush2.bf16.msra.mxu0 %v1338
    %1910 = vmatprep.mubr.bf16.mxu0 %v152
    %1911 = vmatmul.mubr.bf16.gmra.mxu0 %v151
    %v1912 = vpop.f32.mrf.mxu0
    %v1913 = vadd.f32 %v1870, %v1912
    %v1914 = vpop.f32.mrf.mxu0
    %v1915 = vadd.f32 %v1872, %v1914
    %v1916 = vpop.f32.mrf.mxu0
    %v1917 = vadd.f32 %v1874, %v1916
    %v1918 = vpop.f32.mrf.mxu0
    %v1919 = vadd.f32 %v1876, %v1918
    %1920 = vdwg.mxu0
    %1921 = vmatprep.subr.bf16.mxu0 %v1369
    %1922 = vmatpush1.bf16.msra.mxu0 %v1368
    %1923 = vmatprep.subr.bf16.mxu0 %v1367
    %1924 = vmatpush1.bf16.msra.mxu0 %v1366
    %1925 = vmatprep.subr.bf16.mxu0 %v1365
    %1926 = vmatpush1.bf16.msra.mxu0 %v1364
    %1927 = vmatprep.subr.bf16.mxu0 %v1363
    %1928 = vmatpush1.bf16.msra.mxu0 %v1362
    %1929 = vmatprep.subr.bf16.mxu0 %v1361
    %1930 = vmatpush1.bf16.msra.mxu0 %v1360
    %1931 = vmatprep.subr.bf16.mxu0 %v1359
    %1932 = vmatpush1.bf16.msra.mxu0 %v1358
    %1933 = vmatprep.subr.bf16.mxu0 %v1357
    %1934 = vmatpush1.bf16.msra.mxu0 %v1356
    %1935 = vmatprep.subr.bf16.mxu0 %v1355
    %1936 = vmatpush1.bf16.msra.mxu0 %v1354
    %1937 = vmatprep.subr.bf16.mxu0 %v1385
    %1938 = vmatpush2.bf16.msra.mxu0 %v1384
    %1939 = vmatprep.subr.bf16.mxu0 %v1383
    %1940 = vmatpush2.bf16.msra.mxu0 %v1382
    %1941 = vmatprep.subr.bf16.mxu0 %v1381
    %1942 = vmatpush2.bf16.msra.mxu0 %v1380
    %1943 = vmatprep.subr.bf16.mxu0 %v1379
    %1944 = vmatpush2.bf16.msra.mxu0 %v1378
    %1945 = vmatprep.subr.bf16.mxu0 %v1377
    %1946 = vmatpush2.bf16.msra.mxu0 %v1376
    %1947 = vmatprep.subr.bf16.mxu0 %v1375
    %1948 = vmatpush2.bf16.msra.mxu0 %v1374
    %1949 = vmatprep.subr.bf16.mxu0 %v1373
    %1950 = vmatpush2.bf16.msra.mxu0 %v1372
    %1951 = vmatprep.subr.bf16.mxu0 %v1371
    %1952 = vmatpush2.bf16.msra.mxu0 %v1370
    %1953 = vmatprep.mubr.bf16.mxu0 %v154
    %1954 = vmatmul.mubr.bf16.gmra.mxu0 %v153
    %v1955 = vpop.f32.mrf.mxu0
    %v1956 = vadd.f32 %v1913, %v1955
    %v1957 = vpop.f32.mrf.mxu0
    %v1958 = vadd.f32 %v1915, %v1957
    %v1959 = vpop.f32.mrf.mxu0
    %v1960 = vadd.f32 %v1917, %v1959
    %v1961 = vpop.f32.mrf.mxu0
    %v1962 = vadd.f32 %v1919, %v1961
    %1963 = vdwg.mxu0
    %1964 = vmatprep.subr.bf16.mxu0 %v1401
    %1965 = vmatpush1.bf16.msra.mxu0 %v1400
    %1966 = vmatprep.subr.bf16.mxu0 %v1399
    %1967 = vmatpush1.bf16.msra.mxu0 %v1398
    %1968 = vmatprep.subr.bf16.mxu0 %v1397
    %1969 = vmatpush1.bf16.msra.mxu0 %v1396
    %1970 = vmatprep.subr.bf16.mxu0 %v1395
    %1971 = vmatpush1.bf16.msra.mxu0 %v1394
    %1972 = vmatprep.subr.bf16.mxu0 %v1393
    %1973 = vmatpush1.bf16.msra.mxu0 %v1392
    %1974 = vmatprep.subr.bf16.mxu0 %v1391
    %1975 = vmatpush1.bf16.msra.mxu0 %v1390
    %1976 = vmatprep.subr.bf16.mxu0 %v1389
    %1977 = vmatpush1.bf16.msra.mxu0 %v1388
    %1978 = vmatprep.subr.bf16.mxu0 %v1387
    %1979 = vmatpush1.bf16.msra.mxu0 %v1386
    %1980 = vmatprep.subr.bf16.mxu0 %v1417
    %1981 = vmatpush2.bf16.msra.mxu0 %v1416
    %1982 = vmatprep.subr.bf16.mxu0 %v1415
    %1983 = vmatpush2.bf16.msra.mxu0 %v1414
    %1984 = vmatprep.subr.bf16.mxu0 %v1413
    %1985 = vmatpush2.bf16.msra.mxu0 %v1412
    %1986 = vmatprep.subr.bf16.mxu0 %v1411
    %1987 = vmatpush2.bf16.msra.mxu0 %v1410
    %1988 = vmatprep.subr.bf16.mxu0 %v1409
    %1989 = vmatpush2.bf16.msra.mxu0 %v1408
    %1990 = vmatprep.subr.bf16.mxu0 %v1407
    %1991 = vmatpush2.bf16.msra.mxu0 %v1406
    %1992 = vmatprep.subr.bf16.mxu0 %v1405
    %1993 = vmatpush2.bf16.msra.mxu0 %v1404
    %1994 = vmatprep.subr.bf16.mxu0 %v1403
    %1995 = vmatpush2.bf16.msra.mxu0 %v1402
    %1996 = vmatprep.mubr.bf16.mxu0 %v156
    %1997 = vmatmul.mubr.bf16.gmra.mxu0 %v155
    %v1998 = vpop.f32.mrf.mxu0
    %v1999 = vadd.f32 %v1956, %v1998
    %v2000 = vpop.f32.mrf.mxu0
    %v2001 = vadd.f32 %v1958, %v2000
    %v2002 = vpop.f32.mrf.mxu0
    %v2003 = vadd.f32 %v1960, %v2002
    %v2004 = vpop.f32.mrf.mxu0
    %v2005 = vadd.f32 %v1962, %v2004
    %2006 = vdwg.mxu0
    %2007 = vmatprep.subr.bf16.mxu0 %v1433
    %2008 = vmatpush1.bf16.msra.mxu0 %v1432
    %2009 = vmatprep.subr.bf16.mxu0 %v1431
    %2010 = vmatpush1.bf16.msra.mxu0 %v1430
    %2011 = vmatprep.subr.bf16.mxu0 %v1429
    %2012 = vmatpush1.bf16.msra.mxu0 %v1428
    %2013 = vmatprep.subr.bf16.mxu0 %v1427
    %2014 = vmatpush1.bf16.msra.mxu0 %v1426
    %2015 = vmatprep.subr.bf16.mxu0 %v1425
    %2016 = vmatpush1.bf16.msra.mxu0 %v1424
    %2017 = vmatprep.subr.bf16.mxu0 %v1423
    %2018 = vmatpush1.bf16.msra.mxu0 %v1422
    %2019 = vmatprep.subr.bf16.mxu0 %v1421
    %2020 = vmatpush1.bf16.msra.mxu0 %v1420
    %2021 = vmatprep.subr.bf16.mxu0 %v1419
    %2022 = vmatpush1.bf16.msra.mxu0 %v1418
    %2023 = vmatprep.subr.bf16.mxu0 %v1449
    %2024 = vmatpush2.bf16.msra.mxu0 %v1448
    %2025 = vmatprep.subr.bf16.mxu0 %v1447
    %2026 = vmatpush2.bf16.msra.mxu0 %v1446
    %2027 = vmatprep.subr.bf16.mxu0 %v1445
    %2028 = vmatpush2.bf16.msra.mxu0 %v1444
    %2029 = vmatprep.subr.bf16.mxu0 %v1443
    %2030 = vmatpush2.bf16.msra.mxu0 %v1442
    %2031 = vmatprep.subr.bf16.mxu0 %v1441
    %2032 = vmatpush2.bf16.msra.mxu0 %v1440
    %2033 = vmatprep.subr.bf16.mxu0 %v1439
    %2034 = vmatpush2.bf16.msra.mxu0 %v1438
    %2035 = vmatprep.subr.bf16.mxu0 %v1437
    %2036 = vmatpush2.bf16.msra.mxu0 %v1436
    %2037 = vmatprep.subr.bf16.mxu0 %v1435
    %2038 = vmatpush2.bf16.msra.mxu0 %v1434
    %2039 = vmatprep.mubr.bf16.mxu0 %v158
    %2040 = vmatmul.mubr.bf16.gmra.mxu0 %v157
    %v2041 = vpop.f32.mrf.mxu0
    %v2042 = vadd.f32 %v1999, %v2041
    %v2043 = vpop.f32.mrf.mxu0
    %v2044 = vadd.f32 %v2001, %v2043
    %v2045 = vpop.f32.mrf.mxu0
    %v2046 = vadd.f32 %v2003, %v2045
    %v2047 = vpop.f32.mrf.mxu0
    %v2048 = vadd.f32 %v2005, %v2047
    %2049 = vdwg.mxu0
    %v2050 = vmax.f32 %v2042, 0.0
    %v2051 = vmax.f32 %v2044, 0.0
    %v2052 = vmax.f32 %v2046, 0.0
    %v2053 = vmax.f32 %v2048, 0.0
    %v2054 = vpack.c.bf16 %v2052, %v2050
    %v2055 = vpack.c.bf16 %v2053, %v2051
    %v2056 = vld [vmem:[#allocation8] sm:$0xff]
    %v2057 = vld [vmem:[#allocation8 + $0x40] sm:$0xff]
    %v2058 = vld [vmem:[#allocation8 + $0x80] sm:$0xff]
    %v2059 = vld [vmem:[#allocation8 + $0xc0] sm:$0xff]
    %v2060 = vld [vmem:[#allocation8 + $0x100] sm:$0xff]
    %v2061 = vld [vmem:[#allocation8 + $0x140] sm:$0xff]
    %v2062 = vld [vmem:[#allocation8 + $0x180] sm:$0xff]
    %v2063 = vld [vmem:[#allocation8 + $0x1c0] sm:$0xff]
    %v2064 = vld [vmem:[#allocation8 + $0x200] sm:$0xff]
    %v2065 = vld [vmem:[#allocation8 + $0x240] sm:$0xff]
    %v2066 = vld [vmem:[#allocation8 + $0x280] sm:$0xff]
    %v2067 = vld [vmem:[#allocation8 + $0x2c0] sm:$0xff]
    %v2068 = vld [vmem:[#allocation8 + $0x300] sm:$0xff]
    %v2069 = vld [vmem:[#allocation8 + $0x340] sm:$0xff]
    %v2070 = vld [vmem:[#allocation8 + $0x380] sm:$0xff]
    %v2071 = vld [vmem:[#allocation8 + $0x3c0] sm:$0xff]
    %v2072 = vld [vmem:[#allocation8 + $0x400] sm:$0xff]
    %v2073 = vld [vmem:[#allocation8 + $0x440] sm:$0xff]
    %v2074 = vld [vmem:[#allocation8 + $0x480] sm:$0xff]
    %v2075 = vld [vmem:[#allocation8 + $0x4c0] sm:$0xff]
    %v2076 = vld [vmem:[#allocation8 + $0x500] sm:$0xff]
    %v2077 = vld [vmem:[#allocation8 + $0x540] sm:$0xff]
    %v2078 = vld [vmem:[#allocation8 + $0x580] sm:$0xff]
    %v2079 = vld [vmem:[#allocation8 + $0x5c0] sm:$0xff]
    %v2080 = vld [vmem:[#allocation8 + $0x600] sm:$0xff]
    %v2081 = vld [vmem:[#allocation8 + $0x640] sm:$0xff]
    %v2082 = vld [vmem:[#allocation8 + $0x680] sm:$0xff]
    %v2083 = vld [vmem:[#allocation8 + $0x6c0] sm:$0xff]
    %v2084 = vld [vmem:[#allocation8 + $0x700] sm:$0xff]
    %v2085 = vld [vmem:[#allocation8 + $0x740] sm:$0xff]
    %v2086 = vld [vmem:[#allocation8 + $0x780] sm:$0xff]
    %v2087 = vld [vmem:[#allocation8 + $0x7c0] sm:$0xff]
    %v2089 = vlaneseq
    %v2090 = vshrl.u32 %v2089, 7
    %v2091 = vsub.s32 0, %v2090
    %v2092 = vrot.slane %v89, %v2091
    %v2093 = vlaneseq
    %v2094 = vshrl.u32 %v2093, 7
    %v2095 = vsub.s32 1, %v2094
    %v2096 = vrot.slane %v89, %v2095
    %v2131 = vunpack.c.l.b16 %v2056
    %v2132 = vunpack.c.h.b16 %v2056
    %v2133 = vunpack.c.l.b16 %v2057
    %v2134 = vunpack.c.h.b16 %v2057
    %v2135 = vunpack.c.l.b16 %v2058
    %v2136 = vunpack.c.h.b16 %v2058
    %v2137 = vunpack.c.l.b16 %v2059
    %v2138 = vunpack.c.h.b16 %v2059
    %v2139 = vunpack.c.l.b16 %v2060
    %v2140 = vunpack.c.h.b16 %v2060
    %v2141 = vunpack.c.l.b16 %v2061
    %v2142 = vunpack.c.h.b16 %v2061
    %v2143 = vunpack.c.l.b16 %v2062
    %v2144 = vunpack.c.h.b16 %v2062
    %v2145 = vunpack.c.l.b16 %v2063
    %v2146 = vunpack.c.h.b16 %v2063
    %v2147 = vunpack.c.l.b16 %v2064
    %v2148 = vunpack.c.h.b16 %v2064
    %v2149 = vunpack.c.l.b16 %v2065
    %v2150 = vunpack.c.h.b16 %v2065
    %v2151 = vunpack.c.l.b16 %v2066
    %v2152 = vunpack.c.h.b16 %v2066
    %v2153 = vunpack.c.l.b16 %v2067
    %v2154 = vunpack.c.h.b16 %v2067
    %v2155 = vunpack.c.l.b16 %v2068
    %v2156 = vunpack.c.h.b16 %v2068
    %v2157 = vunpack.c.l.b16 %v2069
    %v2158 = vunpack.c.h.b16 %v2069
    %v2159 = vunpack.c.l.b16 %v2070
    %v2160 = vunpack.c.h.b16 %v2070
    %v2161 = vunpack.c.l.b16 %v2071
    %v2162 = vunpack.c.h.b16 %v2071
    %v2163 = vunpack.c.l.b16 %v2072
    %v2164 = vunpack.c.h.b16 %v2072
    %v2165 = vunpack.c.l.b16 %v2073
    %v2166 = vunpack.c.h.b16 %v2073
    %v2167 = vunpack.c.l.b16 %v2074
    %v2168 = vunpack.c.h.b16 %v2074
    %v2169 = vunpack.c.l.b16 %v2075
    %v2170 = vunpack.c.h.b16 %v2075
    %v2171 = vunpack.c.l.b16 %v2076
    %v2172 = vunpack.c.h.b16 %v2076
    %v2173 = vunpack.c.l.b16 %v2077
    %v2174 = vunpack.c.h.b16 %v2077
    %v2175 = vunpack.c.l.b16 %v2078
    %v2176 = vunpack.c.h.b16 %v2078
    %v2177 = vunpack.c.l.b16 %v2079
    %v2178 = vunpack.c.h.b16 %v2079
    %v2179 = vunpack.c.l.b16 %v2080
    %v2180 = vunpack.c.h.b16 %v2080
    %v2181 = vunpack.c.l.b16 %v2081
    %v2182 = vunpack.c.h.b16 %v2081
    %v2183 = vunpack.c.l.b16 %v2082
    %v2184 = vunpack.c.h.b16 %v2082
    %v2185 = vunpack.c.l.b16 %v2083
    %v2186 = vunpack.c.h.b16 %v2083
    %v2187 = vunpack.c.l.b16 %v2084
    %v2188 = vunpack.c.h.b16 %v2084
    %v2189 = vunpack.c.l.b16 %v2085
    %v2190 = vunpack.c.h.b16 %v2085
    %v2191 = vunpack.c.l.b16 %v2086
    %v2192 = vunpack.c.h.b16 %v2086
    %v2193 = vunpack.c.l.b16 %v2087
    %v2194 = vunpack.c.h.b16 %v2087
    %v2195 = vpack.c.b16 %v2133, %v2131
    %v2196 = vpack.c.b16 %v2134, %v2132
    %v2197 = vpack.c.b16 %v2137, %v2135
    %v2198 = vpack.c.b16 %v2138, %v2136
    %v2199 = vpack.c.b16 %v2141, %v2139
    %v2200 = vpack.c.b16 %v2142, %v2140
    %v2201 = vpack.c.b16 %v2145, %v2143
    %v2202 = vpack.c.b16 %v2146, %v2144
    %v2203 = vpack.c.b16 %v2149, %v2147
    %v2204 = vpack.c.b16 %v2150, %v2148
    %v2205 = vpack.c.b16 %v2153, %v2151
    %v2206 = vpack.c.b16 %v2154, %v2152
    %v2207 = vpack.c.b16 %v2157, %v2155
    %v2208 = vpack.c.b16 %v2158, %v2156
    %v2209 = vpack.c.b16 %v2161, %v2159
    %v2210 = vpack.c.b16 %v2162, %v2160
    %v2211 = vpack.c.b16 %v2165, %v2163
    %v2212 = vpack.c.b16 %v2166, %v2164
    %v2213 = vpack.c.b16 %v2169, %v2167
    %v2214 = vpack.c.b16 %v2170, %v2168
    %v2215 = vpack.c.b16 %v2173, %v2171
    %v2216 = vpack.c.b16 %v2174, %v2172
    %v2217 = vpack.c.b16 %v2177, %v2175
    %v2218 = vpack.c.b16 %v2178, %v2176
    %v2219 = vpack.c.b16 %v2181, %v2179
    %v2220 = vpack.c.b16 %v2182, %v2180
    %v2221 = vpack.c.b16 %v2185, %v2183
    %v2222 = vpack.c.b16 %v2186, %v2184
    %v2223 = vpack.c.b16 %v2189, %v2187
    %v2224 = vpack.c.b16 %v2190, %v2188
    %v2225 = vpack.c.b16 %v2193, %v2191
    %v2226 = vpack.c.b16 %v2194, %v2192
    %2259 = vmatprep.subr.bf16.mxu0 %v2210
    %2260 = vmatpush1.bf16.msra.mxu0 %v2209
    %2261 = vmatprep.subr.bf16.mxu0 %v2208
    %2262 = vmatpush1.bf16.msra.mxu0 %v2207
    %2263 = vmatprep.subr.bf16.mxu0 %v2206
    %2264 = vmatpush1.bf16.msra.mxu0 %v2205
    %2265 = vmatprep.subr.bf16.mxu0 %v2204
    %2266 = vmatpush1.bf16.msra.mxu0 %v2203
    %2267 = vmatprep.subr.bf16.mxu0 %v2202
    %2268 = vmatpush1.bf16.msra.mxu0 %v2201
    %2269 = vmatprep.subr.bf16.mxu0 %v2200
    %2270 = vmatpush1.bf16.msra.mxu0 %v2199
    %2271 = vmatprep.subr.bf16.mxu0 %v2198
    %2272 = vmatpush1.bf16.msra.mxu0 %v2197
    %2273 = vmatprep.subr.bf16.mxu0 %v2196
    %2274 = vmatpush1.bf16.msra.mxu0 %v2195
    %2275 = vmatprep.subr.bf16.mxu0 %v2226
    %2276 = vmatpush2.bf16.msra.mxu0 %v2225
    %2277 = vmatprep.subr.bf16.mxu0 %v2224
    %2278 = vmatpush2.bf16.msra.mxu0 %v2223
    %2279 = vmatprep.subr.bf16.mxu0 %v2222
    %2280 = vmatpush2.bf16.msra.mxu0 %v2221
    %2281 = vmatprep.subr.bf16.mxu0 %v2220
    %2282 = vmatpush2.bf16.msra.mxu0 %v2219
    %2283 = vmatprep.subr.bf16.mxu0 %v2218
    %2284 = vmatpush2.bf16.msra.mxu0 %v2217
    %2285 = vmatprep.subr.bf16.mxu0 %v2216
    %2286 = vmatpush2.bf16.msra.mxu0 %v2215
    %2287 = vmatprep.subr.bf16.mxu0 %v2214
    %2288 = vmatpush2.bf16.msra.mxu0 %v2213
    %2289 = vmatprep.subr.bf16.mxu0 %v2212
    %2290 = vmatpush2.bf16.msra.mxu0 %v2211
    %2291 = vmatprep.mubr.bf16.mxu0 %v2055
    %2292 = vmatmul.mubr.bf16.gmra.mxu0 %v2054
    %v2293 = vpop.f32.mrf.mxu0
    %v2294 = vadd.f32 %v2092, %v2293
    %v2295 = vpop.f32.mrf.mxu0
    %v2296 = vadd.f32 %v2096, %v2295
    %v2297 = vpop.f32.mrf.mxu0
    %v2298 = vadd.f32 %v2092, %v2297
    %v2299 = vpop.f32.mrf.mxu0
    %v2300 = vadd.f32 %v2096, %v2299
    %2301 = vdwg.mxu0
    %v2302 = vmax.f32 %v2294, 0.0
    %v2303 = vmax.f32 %v2296, 0.0
    %v2304 = vmax.f32 %v2298, 0.0
    %v2305 = vmax.f32 %v2300, 0.0
    %v2306 = vpack.c.bf16 %v2304, %v2302
    %v2307 = vpack.c.bf16 %v2305, %v2303
    %v2308 = vld [vmem:[#allocation8 + $0x8] sm:$0xff]
    %v2309 = vld [vmem:[#allocation8 + $0x48] sm:$0xff]
    %v2310 = vld [vmem:[#allocation8 + $0x88] sm:$0xff]
    %v2311 = vld [vmem:[#allocation8 + $0xc8] sm:$0xff]
    %v2312 = vld [vmem:[#allocation8 + $0x108] sm:$0xff]
    %v2313 = vld [vmem:[#allocation8 + $0x148] sm:$0xff]
    %v2314 = vld [vmem:[#allocation8 + $0x188] sm:$0xff]
    %v2315 = vld [vmem:[#allocation8 + $0x1c8] sm:$0xff]
    %v2316 = vld [vmem:[#allocation8 + $0x208] sm:$0xff]
    %v2317 = vld [vmem:[#allocation8 + $0x248] sm:$0xff]
    %v2318 = vld [vmem:[#allocation8 + $0x288] sm:$0xff]
    %v2319 = vld [vmem:[#allocation8 + $0x2c8] sm:$0xff]
    %v2320 = vld [vmem:[#allocation8 + $0x308] sm:$0xff]
    %v2321 = vld [vmem:[#allocation8 + $0x348] sm:$0xff]
    %v2322 = vld [vmem:[#allocation8 + $0x388] sm:$0xff]
    %v2323 = vld [vmem:[#allocation8 + $0x3c8] sm:$0xff]
    %v2324 = vld [vmem:[#allocation8 + $0x408] sm:$0xff]
    %v2325 = vld [vmem:[#allocation8 + $0x448] sm:$0xff]
    %v2326 = vld [vmem:[#allocation8 + $0x488] sm:$0xff]
    %v2327 = vld [vmem:[#allocation8 + $0x4c8] sm:$0xff]
    %v2328 = vld [vmem:[#allocation8 + $0x508] sm:$0xff]
    %v2329 = vld [vmem:[#allocation8 + $0x548] sm:$0xff]
    %v2330 = vld [vmem:[#allocation8 + $0x588] sm:$0xff]
    %v2331 = vld [vmem:[#allocation8 + $0x5c8] sm:$0xff]
    %v2332 = vld [vmem:[#allocation8 + $0x608] sm:$0xff]
    %v2333 = vld [vmem:[#allocation8 + $0x648] sm:$0xff]
    %v2334 = vld [vmem:[#allocation8 + $0x688] sm:$0xff]
    %v2335 = vld [vmem:[#allocation8 + $0x6c8] sm:$0xff]
    %v2336 = vld [vmem:[#allocation8 + $0x708] sm:$0xff]
    %v2337 = vld [vmem:[#allocation8 + $0x748] sm:$0xff]
    %v2338 = vld [vmem:[#allocation8 + $0x788] sm:$0xff]
    %v2339 = vld [vmem:[#allocation8 + $0x7c8] sm:$0xff]
    %v2341 = vlaneseq
    %v2342 = vshrl.u32 %v2341, 7
    %v2343 = vsub.s32 0, %v2342
    %v2344 = vrot.slane %v91, %v2343
    %v2345 = vlaneseq
    %v2346 = vshrl.u32 %v2345, 7
    %v2347 = vsub.s32 1, %v2346
    %v2348 = vrot.slane %v91, %v2347
    %v2383 = vunpack.c.l.b16 %v2308
    %v2384 = vunpack.c.h.b16 %v2308
    %v2385 = vunpack.c.l.b16 %v2309
    %v2386 = vunpack.c.h.b16 %v2309
    %v2387 = vunpack.c.l.b16 %v2310
    %v2388 = vunpack.c.h.b16 %v2310
    %v2389 = vunpack.c.l.b16 %v2311
    %v2390 = vunpack.c.h.b16 %v2311
    %v2391 = vunpack.c.l.b16 %v2312
    %v2392 = vunpack.c.h.b16 %v2312
    %v2393 = vunpack.c.l.b16 %v2313
    %v2394 = vunpack.c.h.b16 %v2313
    %v2395 = vunpack.c.l.b16 %v2314
    %v2396 = vunpack.c.h.b16 %v2314
    %v2397 = vunpack.c.l.b16 %v2315
    %v2398 = vunpack.c.h.b16 %v2315
    %v2399 = vunpack.c.l.b16 %v2316
    %v2400 = vunpack.c.h.b16 %v2316
    %v2401 = vunpack.c.l.b16 %v2317
    %v2402 = vunpack.c.h.b16 %v2317
    %v2403 = vunpack.c.l.b16 %v2318
    %v2404 = vunpack.c.h.b16 %v2318
    %v2405 = vunpack.c.l.b16 %v2319
    %v2406 = vunpack.c.h.b16 %v2319
    %v2407 = vunpack.c.l.b16 %v2320
    %v2408 = vunpack.c.h.b16 %v2320
    %v2409 = vunpack.c.l.b16 %v2321
    %v2410 = vunpack.c.h.b16 %v2321
    %v2411 = vunpack.c.l.b16 %v2322
    %v2412 = vunpack.c.h.b16 %v2322
    %v2413 = vunpack.c.l.b16 %v2323
    %v2414 = vunpack.c.h.b16 %v2323
    %v2415 = vunpack.c.l.b16 %v2324
    %v2416 = vunpack.c.h.b16 %v2324
    %v2417 = vunpack.c.l.b16 %v2325
    %v2418 = vunpack.c.h.b16 %v2325
    %v2419 = vunpack.c.l.b16 %v2326
    %v2420 = vunpack.c.h.b16 %v2326
    %v2421 = vunpack.c.l.b16 %v2327
    %v2422 = vunpack.c.h.b16 %v2327
    %v2423 = vunpack.c.l.b16 %v2328
    %v2424 = vunpack.c.h.b16 %v2328
    %v2425 = vunpack.c.l.b16 %v2329
    %v2426 = vunpack.c.h.b16 %v2329
    %v2427 = vunpack.c.l.b16 %v2330
    %v2428 = vunpack.c.h.b16 %v2330
    %v2429 = vunpack.c.l.b16 %v2331
    %v2430 = vunpack.c.h.b16 %v2331
    %v2431 = vunpack.c.l.b16 %v2332
    %v2432 = vunpack.c.h.b16 %v2332
    %v2433 = vunpack.c.l.b16 %v2333
    %v2434 = vunpack.c.h.b16 %v2333
    %v2435 = vunpack.c.l.b16 %v2334
    %v2436 = vunpack.c.h.b16 %v2334
    %v2437 = vunpack.c.l.b16 %v2335
    %v2438 = vunpack.c.h.b16 %v2335
    %v2439 = vunpack.c.l.b16 %v2336
    %v2440 = vunpack.c.h.b16 %v2336
    %v2441 = vunpack.c.l.b16 %v2337
    %v2442 = vunpack.c.h.b16 %v2337
    %v2443 = vunpack.c.l.b16 %v2338
    %v2444 = vunpack.c.h.b16 %v2338
    %v2445 = vunpack.c.l.b16 %v2339
    %v2446 = vunpack.c.h.b16 %v2339
    %v2447 = vpack.c.b16 %v2385, %v2383
    %v2448 = vpack.c.b16 %v2386, %v2384
    %v2449 = vpack.c.b16 %v2389, %v2387
    %v2450 = vpack.c.b16 %v2390, %v2388
    %v2451 = vpack.c.b16 %v2393, %v2391
    %v2452 = vpack.c.b16 %v2394, %v2392
    %v2453 = vpack.c.b16 %v2397, %v2395
    %v2454 = vpack.c.b16 %v2398, %v2396
    %v2455 = vpack.c.b16 %v2401, %v2399
    %v2456 = vpack.c.b16 %v2402, %v2400
    %v2457 = vpack.c.b16 %v2405, %v2403
    %v2458 = vpack.c.b16 %v2406, %v2404
    %v2459 = vpack.c.b16 %v2409, %v2407
    %v2460 = vpack.c.b16 %v2410, %v2408
    %v2461 = vpack.c.b16 %v2413, %v2411
    %v2462 = vpack.c.b16 %v2414, %v2412
    %v2463 = vpack.c.b16 %v2417, %v2415
    %v2464 = vpack.c.b16 %v2418, %v2416
    %v2465 = vpack.c.b16 %v2421, %v2419
    %v2466 = vpack.c.b16 %v2422, %v2420
    %v2467 = vpack.c.b16 %v2425, %v2423
    %v2468 = vpack.c.b16 %v2426, %v2424
    %v2469 = vpack.c.b16 %v2429, %v2427
    %v2470 = vpack.c.b16 %v2430, %v2428
    %v2471 = vpack.c.b16 %v2433, %v2431
    %v2472 = vpack.c.b16 %v2434, %v2432
    %v2473 = vpack.c.b16 %v2437, %v2435
    %v2474 = vpack.c.b16 %v2438, %v2436
    %v2475 = vpack.c.b16 %v2441, %v2439
    %v2476 = vpack.c.b16 %v2442, %v2440
    %v2477 = vpack.c.b16 %v2445, %v2443
    %v2478 = vpack.c.b16 %v2446, %v2444
    %2511 = vmatprep.subr.bf16.mxu0 %v2462
    %2512 = vmatpush1.bf16.msra.mxu0 %v2461
    %2513 = vmatprep.subr.bf16.mxu0 %v2460
    %2514 = vmatpush1.bf16.msra.mxu0 %v2459
    %2515 = vmatprep.subr.bf16.mxu0 %v2458
    %2516 = vmatpush1.bf16.msra.mxu0 %v2457
    %2517 = vmatprep.subr.bf16.mxu0 %v2456
    %2518 = vmatpush1.bf16.msra.mxu0 %v2455
    %2519 = vmatprep.subr.bf16.mxu0 %v2454
    %2520 = vmatpush1.bf16.msra.mxu0 %v2453
    %2521 = vmatprep.subr.bf16.mxu0 %v2452
    %2522 = vmatpush1.bf16.msra.mxu0 %v2451
    %2523 = vmatprep.subr.bf16.mxu0 %v2450
    %2524 = vmatpush1.bf16.msra.mxu0 %v2449
    %2525 = vmatprep.subr.bf16.mxu0 %v2448
    %2526 = vmatpush1.bf16.msra.mxu0 %v2447
    %2527 = vmatprep.subr.bf16.mxu0 %v2478
    %2528 = vmatpush2.bf16.msra.mxu0 %v2477
    %2529 = vmatprep.subr.bf16.mxu0 %v2476
    %2530 = vmatpush2.bf16.msra.mxu0 %v2475
    %2531 = vmatprep.subr.bf16.mxu0 %v2474
    %2532 = vmatpush2.bf16.msra.mxu0 %v2473
    %2533 = vmatprep.subr.bf16.mxu0 %v2472
    %2534 = vmatpush2.bf16.msra.mxu0 %v2471
    %2535 = vmatprep.subr.bf16.mxu0 %v2470
    %2536 = vmatpush2.bf16.msra.mxu0 %v2469
    %2537 = vmatprep.subr.bf16.mxu0 %v2468
    %2538 = vmatpush2.bf16.msra.mxu0 %v2467
    %2539 = vmatprep.subr.bf16.mxu0 %v2466
    %2540 = vmatpush2.bf16.msra.mxu0 %v2465
    %2541 = vmatprep.subr.bf16.mxu0 %v2464
    %2542 = vmatpush2.bf16.msra.mxu0 %v2463
    %2543 = vmatprep.mubr.bf16.mxu0 %v2307
    %2544 = vmatmul.mubr.bf16.gmra.mxu0 %v2306
    %v2545 = vpop.f32.mrf.mxu0
    %v2546 = vadd.f32 %v2344, %v2545
    %v2547 = vpop.f32.mrf.mxu0
    %v2548 = vadd.f32 %v2348, %v2547
    %v2549 = vpop.f32.mrf.mxu0
    %v2550 = vadd.f32 %v2344, %v2549
    %v2551 = vpop.f32.mrf.mxu0
    %v2552 = vadd.f32 %v2348, %v2551
    %2553 = vdwg.mxu0
    %v2554 = vmax.f32 %v2546, 0.0
    %v2555 = vmax.f32 %v2548, 0.0
    %v2556 = vmax.f32 %v2550, 0.0
    %v2557 = vmax.f32 %v2552, 0.0
    %v2558 = vpack.c.bf16 %v2556, %v2554
    %v2559 = vpack.c.bf16 %v2557, %v2555
    %v2560 = vld [vmem:[#allocation8 + $0x10] sm:$0xff]
    %v2561 = vld [vmem:[#allocation8 + $0x18] sm:$0xff]
    %v2562 = vld [vmem:[#allocation8 + $0x20] sm:$0xff]
    %v2563 = vld [vmem:[#allocation8 + $0x50] sm:$0xff]
    %v2564 = vld [vmem:[#allocation8 + $0x58] sm:$0xff]
    %v2565 = vld [vmem:[#allocation8 + $0x60] sm:$0xff]
    %v2566 = vld [vmem:[#allocation8 + $0x90] sm:$0xff]
    %v2567 = vld [vmem:[#allocation8 + $0x98] sm:$0xff]
    %v2568 = vld [vmem:[#allocation8 + $0xa0] sm:$0xff]
    %v2569 = vld [vmem:[#allocation8 + $0xd0] sm:$0xff]
    %v2570 = vld [vmem:[#allocation8 + $0xd8] sm:$0xff]
    %v2571 = vld [vmem:[#allocation8 + $0xe0] sm:$0xff]
    %v2572 = vld [vmem:[#allocation8 + $0x110] sm:$0xff]
    %v2573 = vld [vmem:[#allocation8 + $0x118] sm:$0xff]
    %v2574 = vld [vmem:[#allocation8 + $0x120] sm:$0xff]
    %v2575 = vld [vmem:[#allocation8 + $0x150] sm:$0xff]
    %v2576 = vld [vmem:[#allocation8 + $0x158] sm:$0xff]
    %v2577 = vld [vmem:[#allocation8 + $0x160] sm:$0xff]
    %v2578 = vld [vmem:[#allocation8 + $0x190] sm:$0xff]
    %v2579 = vld [vmem:[#allocation8 + $0x198] sm:$0xff]
    %v2580 = vld [vmem:[#allocation8 + $0x1a0] sm:$0xff]
    %v2581 = vld [vmem:[#allocation8 + $0x1d0] sm:$0xff]
    %v2582 = vld [vmem:[#allocation8 + $0x1d8] sm:$0xff]
    %v2583 = vld [vmem:[#allocation8 + $0x1e0] sm:$0xff]
    %v2584 = vld [vmem:[#allocation8 + $0x210] sm:$0xff]
    %v2585 = vld [vmem:[#allocation8 + $0x218] sm:$0xff]
    %v2586 = vld [vmem:[#allocation8 + $0x220] sm:$0xff]
    %v2587 = vld [vmem:[#allocation8 + $0x250] sm:$0xff]
    %v2588 = vld [vmem:[#allocation8 + $0x258] sm:$0xff]
    %v2589 = vld [vmem:[#allocation8 + $0x260] sm:$0xff]
    %v2590 = vld [vmem:[#allocation8 + $0x290] sm:$0xff]
    %v2591 = vld [vmem:[#allocation8 + $0x298] sm:$0xff]
    %v2592 = vld [vmem:[#allocation8 + $0x2a0] sm:$0xff]
    %v2593 = vld [vmem:[#allocation8 + $0x2d0] sm:$0xff]
    %v2594 = vld [vmem:[#allocation8 + $0x2d8] sm:$0xff]
    %v2595 = vld [vmem:[#allocation8 + $0x2e0] sm:$0xff]
    %v2596 = vld [vmem:[#allocation8 + $0x310] sm:$0xff]
    %v2597 = vld [vmem:[#allocation8 + $0x318] sm:$0xff]
    %v2598 = vld [vmem:[#allocation8 + $0x320] sm:$0xff]
    %v2599 = vld [vmem:[#allocation8 + $0x350] sm:$0xff]
    %v2600 = vld [vmem:[#allocation8 + $0x358] sm:$0xff]
    %v2601 = vld [vmem:[#allocation8 + $0x360] sm:$0xff]
    %v2602 = vld [vmem:[#allocation8 + $0x390] sm:$0xff]
    %v2603 = vld [vmem:[#allocation8 + $0x398] sm:$0xff]
    %v2604 = vld [vmem:[#allocation8 + $0x3a0] sm:$0xff]
    %v2605 = vld [vmem:[#allocation8 + $0x3d0] sm:$0xff]
    %v2606 = vld [vmem:[#allocation8 + $0x3d8] sm:$0xff]
    %v2607 = vld [vmem:[#allocation8 + $0x3e0] sm:$0xff]
    %v2608 = vld [vmem:[#allocation8 + $0x410] sm:$0xff]
    %v2609 = vld [vmem:[#allocation8 + $0x418] sm:$0xff]
    %v2610 = vld [vmem:[#allocation8 + $0x420] sm:$0xff]
    %v2611 = vld [vmem:[#allocation8 + $0x450] sm:$0xff]
    %v2612 = vld [vmem:[#allocation8 + $0x458] sm:$0xff]
    %v2613 = vld [vmem:[#allocation8 + $0x460] sm:$0xff]
    %v2614 = vld [vmem:[#allocation8 + $0x490] sm:$0xff]
    %v2615 = vld [vmem:[#allocation8 + $0x498] sm:$0xff]
    %v2616 = vld [vmem:[#allocation8 + $0x4a0] sm:$0xff]
    %v2617 = vld [vmem:[#allocation8 + $0x4d0] sm:$0xff]
    %v2618 = vld [vmem:[#allocation8 + $0x4d8] sm:$0xff]
    %v2619 = vld [vmem:[#allocation8 + $0x4e0] sm:$0xff]
    %v2620 = vld [vmem:[#allocation8 + $0x510] sm:$0xff]
    %v2621 = vld [vmem:[#allocation8 + $0x518] sm:$0xff]
    %v2622 = vld [vmem:[#allocation8 + $0x520] sm:$0xff]
    %v2623 = vld [vmem:[#allocation8 + $0x550] sm:$0xff]
    %v2624 = vld [vmem:[#allocation8 + $0x558] sm:$0xff]
    %v2625 = vld [vmem:[#allocation8 + $0x560] sm:$0xff]
    %v2626 = vld [vmem:[#allocation8 + $0x590] sm:$0xff]
    %v2627 = vld [vmem:[#allocation8 + $0x598] sm:$0xff]
    %v2628 = vld [vmem:[#allocation8 + $0x5a0] sm:$0xff]
    %v2629 = vld [vmem:[#allocation8 + $0x5d0] sm:$0xff]
    %v2630 = vld [vmem:[#allocation8 + $0x5d8] sm:$0xff]
    %v2631 = vld [vmem:[#allocation8 + $0x5e0] sm:$0xff]
    %v2632 = vld [vmem:[#allocation8 + $0x610] sm:$0xff]
    %v2633 = vld [vmem:[#allocation8 + $0x618] sm:$0xff]
    %v2634 = vld [vmem:[#allocation8 + $0x620] sm:$0xff]
    %v2635 = vld [vmem:[#allocation8 + $0x650] sm:$0xff]
    %v2636 = vld [vmem:[#allocation8 + $0x658] sm:$0xff]
    %v2637 = vld [vmem:[#allocation8 + $0x660] sm:$0xff]
    %v2638 = vld [vmem:[#allocation8 + $0x690] sm:$0xff]
    %v2639 = vld [vmem:[#allocation8 + $0x698] sm:$0xff]
    %v2640 = vld [vmem:[#allocation8 + $0x6a0] sm:$0xff]
    %v2641 = vld [vmem:[#allocation8 + $0x6d0] sm:$0xff]
    %v2642 = vld [vmem:[#allocation8 + $0x6d8] sm:$0xff]
    %v2643 = vld [vmem:[#allocation8 + $0x6e0] sm:$0xff]
    %v2644 = vld [vmem:[#allocation8 + $0x710] sm:$0xff]
    %v2645 = vld [vmem:[#allocation8 + $0x718] sm:$0xff]
    %v2646 = vld [vmem:[#allocation8 + $0x720] sm:$0xff]
    %v2647 = vld [vmem:[#allocation8 + $0x750] sm:$0xff]
    %v2648 = vld [vmem:[#allocation8 + $0x758] sm:$0xff]
    %v2649 = vld [vmem:[#allocation8 + $0x760] sm:$0xff]
    %v2650 = vld [vmem:[#allocation8 + $0x790] sm:$0xff]
    %v2651 = vld [vmem:[#allocation8 + $0x798] sm:$0xff]
    %v2652 = vld [vmem:[#allocation8 + $0x7a0] sm:$0xff]
    %v2653 = vld [vmem:[#allocation8 + $0x7d0] sm:$0xff]
    %v2654 = vld [vmem:[#allocation8 + $0x7d8] sm:$0xff]
    %v2655 = vld [vmem:[#allocation8 + $0x7e0] sm:$0xff]
    %v2657 = vlaneseq
    %v2658 = vshrl.u32 %v2657, 7
    %v2659 = vsub.s32 0, %v2658
    %v2660 = vrot.slane %v95, %v2659
    %v2661 = vlaneseq
    %v2662 = vshrl.u32 %v2661, 7
    %v2663 = vsub.s32 1, %v2662
    %v2664 = vrot.slane %v95, %v2663
    %v2665 = vlaneseq
    %v2666 = vshrl.u32 %v2665, 7
    %v2667 = vsub.s32 2, %v2666
    %v2668 = vrot.slane %v95, %v2667
    %v2669 = vlaneseq
    %v2670 = vshrl.u32 %v2669, 7
    %v2671 = vsub.s32 3, %v2670
    %v2672 = vrot.slane %v95, %v2671
    %v2673 = vlaneseq
    %v2674 = vshrl.u32 %v2673, 7
    %v2675 = vsub.s32 4, %v2674
    %v2676 = vrot.slane %v95, %v2675
    %v2677 = vlaneseq
    %v2678 = vshrl.u32 %v2677, 7
    %v2679 = vsub.s32 5, %v2678
    %v2680 = vrot.slane %v95, %v2679
    %v2783 = vunpack.c.l.b16 %v2560
    %v2784 = vunpack.c.h.b16 %v2560
    %v2785 = vunpack.c.l.b16 %v2561
    %v2786 = vunpack.c.h.b16 %v2561
    %v2787 = vunpack.c.l.b16 %v2562
    %v2788 = vunpack.c.h.b16 %v2562
    %v2789 = vunpack.c.l.b16 %v2563
    %v2790 = vunpack.c.h.b16 %v2563
    %v2791 = vunpack.c.l.b16 %v2564
    %v2792 = vunpack.c.h.b16 %v2564
    %v2793 = vunpack.c.l.b16 %v2565
    %v2794 = vunpack.c.h.b16 %v2565
    %v2795 = vunpack.c.l.b16 %v2566
    %v2796 = vunpack.c.h.b16 %v2566
    %v2797 = vunpack.c.l.b16 %v2567
    %v2798 = vunpack.c.h.b16 %v2567
    %v2799 = vunpack.c.l.b16 %v2568
    %v2800 = vunpack.c.h.b16 %v2568
    %v2801 = vunpack.c.l.b16 %v2569
    %v2802 = vunpack.c.h.b16 %v2569
    %v2803 = vunpack.c.l.b16 %v2570
    %v2804 = vunpack.c.h.b16 %v2570
    %v2805 = vunpack.c.l.b16 %v2571
    %v2806 = vunpack.c.h.b16 %v2571
    %v2807 = vunpack.c.l.b16 %v2572
    %v2808 = vunpack.c.h.b16 %v2572
    %v2809 = vunpack.c.l.b16 %v2573
    %v2810 = vunpack.c.h.b16 %v2573
    %v2811 = vunpack.c.l.b16 %v2574
    %v2812 = vunpack.c.h.b16 %v2574
    %v2813 = vunpack.c.l.b16 %v2575
    %v2814 = vunpack.c.h.b16 %v2575
    %v2815 = vunpack.c.l.b16 %v2576
    %v2816 = vunpack.c.h.b16 %v2576
    %v2817 = vunpack.c.l.b16 %v2577
    %v2818 = vunpack.c.h.b16 %v2577
    %v2819 = vunpack.c.l.b16 %v2578
    %v2820 = vunpack.c.h.b16 %v2578
    %v2821 = vunpack.c.l.b16 %v2579
    %v2822 = vunpack.c.h.b16 %v2579
    %v2823 = vunpack.c.l.b16 %v2580
    %v2824 = vunpack.c.h.b16 %v2580
    %v2825 = vunpack.c.l.b16 %v2581
    %v2826 = vunpack.c.h.b16 %v2581
    %v2827 = vunpack.c.l.b16 %v2582
    %v2828 = vunpack.c.h.b16 %v2582
    %v2829 = vunpack.c.l.b16 %v2583
    %v2830 = vunpack.c.h.b16 %v2583
    %v2831 = vunpack.c.l.b16 %v2584
    %v2832 = vunpack.c.h.b16 %v2584
    %v2833 = vunpack.c.l.b16 %v2585
    %v2834 = vunpack.c.h.b16 %v2585
    %v2835 = vunpack.c.l.b16 %v2586
    %v2836 = vunpack.c.h.b16 %v2586
    %v2837 = vunpack.c.l.b16 %v2587
    %v2838 = vunpack.c.h.b16 %v2587
    %v2839 = vunpack.c.l.b16 %v2588
    %v2840 = vunpack.c.h.b16 %v2588
    %v2841 = vunpack.c.l.b16 %v2589
    %v2842 = vunpack.c.h.b16 %v2589
    %v2843 = vunpack.c.l.b16 %v2590
    %v2844 = vunpack.c.h.b16 %v2590
    %v2845 = vunpack.c.l.b16 %v2591
    %v2846 = vunpack.c.h.b16 %v2591
    %v2847 = vunpack.c.l.b16 %v2592
    %v2848 = vunpack.c.h.b16 %v2592
    %v2849 = vunpack.c.l.b16 %v2593
    %v2850 = vunpack.c.h.b16 %v2593
    %v2851 = vunpack.c.l.b16 %v2594
    %v2852 = vunpack.c.h.b16 %v2594
    %v2853 = vunpack.c.l.b16 %v2595
    %v2854 = vunpack.c.h.b16 %v2595
    %v2855 = vunpack.c.l.b16 %v2596
    %v2856 = vunpack.c.h.b16 %v2596
    %v2857 = vunpack.c.l.b16 %v2597
    %v2858 = vunpack.c.h.b16 %v2597
    %v2859 = vunpack.c.l.b16 %v2598
    %v2860 = vunpack.c.h.b16 %v2598
    %v2861 = vunpack.c.l.b16 %v2599
    %v2862 = vunpack.c.h.b16 %v2599
    %v2863 = vunpack.c.l.b16 %v2600
    %v2864 = vunpack.c.h.b16 %v2600
    %v2865 = vunpack.c.l.b16 %v2601
    %v2866 = vunpack.c.h.b16 %v2601
    %v2867 = vunpack.c.l.b16 %v2602
    %v2868 = vunpack.c.h.b16 %v2602
    %v2869 = vunpack.c.l.b16 %v2603
    %v2870 = vunpack.c.h.b16 %v2603
    %v2871 = vunpack.c.l.b16 %v2604
    %v2872 = vunpack.c.h.b16 %v2604
    %v2873 = vunpack.c.l.b16 %v2605
    %v2874 = vunpack.c.h.b16 %v2605
    %v2875 = vunpack.c.l.b16 %v2606
    %v2876 = vunpack.c.h.b16 %v2606
    %v2877 = vunpack.c.l.b16 %v2607
    %v2878 = vunpack.c.h.b16 %v2607
    %v2879 = vunpack.c.l.b16 %v2608
    %v2880 = vunpack.c.h.b16 %v2608
    %v2881 = vunpack.c.l.b16 %v2609
    %v2882 = vunpack.c.h.b16 %v2609
    %v2883 = vunpack.c.l.b16 %v2610
    %v2884 = vunpack.c.h.b16 %v2610
    %v2885 = vunpack.c.l.b16 %v2611
    %v2886 = vunpack.c.h.b16 %v2611
    %v2887 = vunpack.c.l.b16 %v2612
    %v2888 = vunpack.c.h.b16 %v2612
    %v2889 = vunpack.c.l.b16 %v2613
    %v2890 = vunpack.c.h.b16 %v2613
    %v2891 = vunpack.c.l.b16 %v2614
    %v2892 = vunpack.c.h.b16 %v2614
    %v2893 = vunpack.c.l.b16 %v2615
    %v2894 = vunpack.c.h.b16 %v2615
    %v2895 = vunpack.c.l.b16 %v2616
    %v2896 = vunpack.c.h.b16 %v2616
    %v2897 = vunpack.c.l.b16 %v2617
    %v2898 = vunpack.c.h.b16 %v2617
    %v2899 = vunpack.c.l.b16 %v2618
    %v2900 = vunpack.c.h.b16 %v2618
    %v2901 = vunpack.c.l.b16 %v2619
    %v2902 = vunpack.c.h.b16 %v2619
    %v2903 = vunpack.c.l.b16 %v2620
    %v2904 = vunpack.c.h.b16 %v2620
    %v2905 = vunpack.c.l.b16 %v2621
    %v2906 = vunpack.c.h.b16 %v2621
    %v2907 = vunpack.c.l.b16 %v2622
    %v2908 = vunpack.c.h.b16 %v2622
    %v2909 = vunpack.c.l.b16 %v2623
    %v2910 = vunpack.c.h.b16 %v2623
    %v2911 = vunpack.c.l.b16 %v2624
    %v2912 = vunpack.c.h.b16 %v2624
    %v2913 = vunpack.c.l.b16 %v2625
    %v2914 = vunpack.c.h.b16 %v2625
    %v2915 = vunpack.c.l.b16 %v2626
    %v2916 = vunpack.c.h.b16 %v2626
    %v2917 = vunpack.c.l.b16 %v2627
    %v2918 = vunpack.c.h.b16 %v2627
    %v2919 = vunpack.c.l.b16 %v2628
    %v2920 = vunpack.c.h.b16 %v2628
    %v2921 = vunpack.c.l.b16 %v2629
    %v2922 = vunpack.c.h.b16 %v2629
    %v2923 = vunpack.c.l.b16 %v2630
    %v2924 = vunpack.c.h.b16 %v2630
    %v2925 = vunpack.c.l.b16 %v2631
    %v2926 = vunpack.c.h.b16 %v2631
    %v2927 = vunpack.c.l.b16 %v2632
    %v2928 = vunpack.c.h.b16 %v2632
    %v2929 = vunpack.c.l.b16 %v2633
    %v2930 = vunpack.c.h.b16 %v2633
    %v2931 = vunpack.c.l.b16 %v2634
    %v2932 = vunpack.c.h.b16 %v2634
    %v2933 = vunpack.c.l.b16 %v2635
    %v2934 = vunpack.c.h.b16 %v2635
    %v2935 = vunpack.c.l.b16 %v2636
    %v2936 = vunpack.c.h.b16 %v2636
    %v2937 = vunpack.c.l.b16 %v2637
    %v2938 = vunpack.c.h.b16 %v2637
    %v2939 = vunpack.c.l.b16 %v2638
    %v2940 = vunpack.c.h.b16 %v2638
    %v2941 = vunpack.c.l.b16 %v2639
    %v2942 = vunpack.c.h.b16 %v2639
    %v2943 = vunpack.c.l.b16 %v2640
    %v2944 = vunpack.c.h.b16 %v2640
    %v2945 = vunpack.c.l.b16 %v2641
    %v2946 = vunpack.c.h.b16 %v2641
    %v2947 = vunpack.c.l.b16 %v2642
    %v2948 = vunpack.c.h.b16 %v2642
    %v2949 = vunpack.c.l.b16 %v2643
    %v2950 = vunpack.c.h.b16 %v2643
    %v2951 = vunpack.c.l.b16 %v2644
    %v2952 = vunpack.c.h.b16 %v2644
    %v2953 = vunpack.c.l.b16 %v2645
    %v2954 = vunpack.c.h.b16 %v2645
    %v2955 = vunpack.c.l.b16 %v2646
    %v2956 = vunpack.c.h.b16 %v2646
    %v2957 = vunpack.c.l.b16 %v2647
    %v2958 = vunpack.c.h.b16 %v2647
    %v2959 = vunpack.c.l.b16 %v2648
    %v2960 = vunpack.c.h.b16 %v2648
    %v2961 = vunpack.c.l.b16 %v2649
    %v2962 = vunpack.c.h.b16 %v2649
    %v2963 = vunpack.c.l.b16 %v2650
    %v2964 = vunpack.c.h.b16 %v2650
    %v2965 = vunpack.c.l.b16 %v2651
    %v2966 = vunpack.c.h.b16 %v2651
    %v2967 = vunpack.c.l.b16 %v2652
    %v2968 = vunpack.c.h.b16 %v2652
    %v2969 = vunpack.c.l.b16 %v2653
    %v2970 = vunpack.c.h.b16 %v2653
    %v2971 = vunpack.c.l.b16 %v2654
    %v2972 = vunpack.c.h.b16 %v2654
    %v2973 = vunpack.c.l.b16 %v2655
    %v2974 = vunpack.c.h.b16 %v2655
    %v2975 = vpack.c.b16 %v2789, %v2783
    %v2976 = vpack.c.b16 %v2790, %v2784
    %v2977 = vpack.c.b16 %v2791, %v2785
    %v2978 = vpack.c.b16 %v2792, %v2786
    %v2979 = vpack.c.b16 %v2793, %v2787
    %v2980 = vpack.c.b16 %v2794, %v2788
    %v2981 = vpack.c.b16 %v2801, %v2795
    %v2982 = vpack.c.b16 %v2802, %v2796
    %v2983 = vpack.c.b16 %v2803, %v2797
    %v2984 = vpack.c.b16 %v2804, %v2798
    %v2985 = vpack.c.b16 %v2805, %v2799
    %v2986 = vpack.c.b16 %v2806, %v2800
    %v2987 = vpack.c.b16 %v2813, %v2807
    %v2988 = vpack.c.b16 %v2814, %v2808
    %v2989 = vpack.c.b16 %v2815, %v2809
    %v2990 = vpack.c.b16 %v2816, %v2810
    %v2991 = vpack.c.b16 %v2817, %v2811
    %v2992 = vpack.c.b16 %v2818, %v2812
    %v2993 = vpack.c.b16 %v2825, %v2819
    %v2994 = vpack.c.b16 %v2826, %v2820
    %v2995 = vpack.c.b16 %v2827, %v2821
    %v2996 = vpack.c.b16 %v2828, %v2822
    %v2997 = vpack.c.b16 %v2829, %v2823
    %v2998 = vpack.c.b16 %v2830, %v2824
    %v2999 = vpack.c.b16 %v2837, %v2831
    %v3000 = vpack.c.b16 %v2838, %v2832
    %v3001 = vpack.c.b16 %v2839, %v2833
    %v3002 = vpack.c.b16 %v2840, %v2834
    %v3003 = vpack.c.b16 %v2841, %v2835
    %v3004 = vpack.c.b16 %v2842, %v2836
    %v3005 = vpack.c.b16 %v2849, %v2843
    %v3006 = vpack.c.b16 %v2850, %v2844
    %v3007 = vpack.c.b16 %v2851, %v2845
    %v3008 = vpack.c.b16 %v2852, %v2846
    %v3009 = vpack.c.b16 %v2853, %v2847
    %v3010 = vpack.c.b16 %v2854, %v2848
    %v3011 = vpack.c.b16 %v2861, %v2855
    %v3012 = vpack.c.b16 %v2862, %v2856
    %v3013 = vpack.c.b16 %v2863, %v2857
    %v3014 = vpack.c.b16 %v2864, %v2858
    %v3015 = vpack.c.b16 %v2865, %v2859
    %v3016 = vpack.c.b16 %v2866, %v2860
    %v3017 = vpack.c.b16 %v2873, %v2867
    %v3018 = vpack.c.b16 %v2874, %v2868
    %v3019 = vpack.c.b16 %v2875, %v2869
    %v3020 = vpack.c.b16 %v2876, %v2870
    %v3021 = vpack.c.b16 %v2877, %v2871
    %v3022 = vpack.c.b16 %v2878, %v2872
    %v3023 = vpack.c.b16 %v2885, %v2879
    %v3024 = vpack.c.b16 %v2886, %v2880
    %v3025 = vpack.c.b16 %v2887, %v2881
    %v3026 = vpack.c.b16 %v2888, %v2882
    %v3027 = vpack.c.b16 %v2889, %v2883
    %v3028 = vpack.c.b16 %v2890, %v2884
    %v3029 = vpack.c.b16 %v2897, %v2891
    %v3030 = vpack.c.b16 %v2898, %v2892
    %v3031 = vpack.c.b16 %v2899, %v2893
    %v3032 = vpack.c.b16 %v2900, %v2894
    %v3033 = vpack.c.b16 %v2901, %v2895
    %v3034 = vpack.c.b16 %v2902, %v2896
    %v3035 = vpack.c.b16 %v2909, %v2903
    %v3036 = vpack.c.b16 %v2910, %v2904
    %v3037 = vpack.c.b16 %v2911, %v2905
    %v3038 = vpack.c.b16 %v2912, %v2906
    %v3039 = vpack.c.b16 %v2913, %v2907
    %v3040 = vpack.c.b16 %v2914, %v2908
    %v3041 = vpack.c.b16 %v2921, %v2915
    %v3042 = vpack.c.b16 %v2922, %v2916
    %v3043 = vpack.c.b16 %v2923, %v2917
    %v3044 = vpack.c.b16 %v2924, %v2918
    %v3045 = vpack.c.b16 %v2925, %v2919
    %v3046 = vpack.c.b16 %v2926, %v2920
    %v3047 = vpack.c.b16 %v2933, %v2927
    %v3048 = vpack.c.b16 %v2934, %v2928
    %v3049 = vpack.c.b16 %v2935, %v2929
    %v3050 = vpack.c.b16 %v2936, %v2930
    %v3051 = vpack.c.b16 %v2937, %v2931
    %v3052 = vpack.c.b16 %v2938, %v2932
    %v3053 = vpack.c.b16 %v2945, %v2939
    %v3054 = vpack.c.b16 %v2946, %v2940
    %v3055 = vpack.c.b16 %v2947, %v2941
    %v3056 = vpack.c.b16 %v2948, %v2942
    %v3057 = vpack.c.b16 %v2949, %v2943
    %v3058 = vpack.c.b16 %v2950, %v2944
    %v3059 = vpack.c.b16 %v2957, %v2951
    %v3060 = vpack.c.b16 %v2958, %v2952
    %v3061 = vpack.c.b16 %v2959, %v2953
    %v3062 = vpack.c.b16 %v2960, %v2954
    %v3063 = vpack.c.b16 %v2961, %v2955
    %v3064 = vpack.c.b16 %v2962, %v2956
    %v3065 = vpack.c.b16 %v2969, %v2963
    %v3066 = vpack.c.b16 %v2970, %v2964
    %v3067 = vpack.c.b16 %v2971, %v2965
    %v3068 = vpack.c.b16 %v2972, %v2966
    %v3069 = vpack.c.b16 %v2973, %v2967
    %v3070 = vpack.c.b16 %v2974, %v2968
    %3167 = vmatprep.subr.bf16.mxu0 %v3018
    %3168 = vmatpush1.bf16.msra.mxu0 %v3017
    %3169 = vmatprep.subr.bf16.mxu0 %v3012
    %3170 = vmatpush1.bf16.msra.mxu0 %v3011
    %3171 = vmatprep.subr.bf16.mxu0 %v3006
    %3172 = vmatpush1.bf16.msra.mxu0 %v3005
    %3173 = vmatprep.subr.bf16.mxu0 %v3000
    %3174 = vmatpush1.bf16.msra.mxu0 %v2999
    %3175 = vmatprep.subr.bf16.mxu0 %v2994
    %3176 = vmatpush1.bf16.msra.mxu0 %v2993
    %3177 = vmatprep.subr.bf16.mxu0 %v2988
    %3178 = vmatpush1.bf16.msra.mxu0 %v2987
    %3179 = vmatprep.subr.bf16.mxu0 %v2982
    %3180 = vmatpush1.bf16.msra.mxu0 %v2981
    %3181 = vmatprep.subr.bf16.mxu0 %v2976
    %3182 = vmatpush1.bf16.msra.mxu0 %v2975
    %3183 = vmatprep.subr.bf16.mxu0 %v3066
    %3184 = vmatpush2.bf16.msra.mxu0 %v3065
    %3185 = vmatprep.subr.bf16.mxu0 %v3060
    %3186 = vmatpush2.bf16.msra.mxu0 %v3059
    %3187 = vmatprep.subr.bf16.mxu0 %v3054
    %3188 = vmatpush2.bf16.msra.mxu0 %v3053
    %3189 = vmatprep.subr.bf16.mxu0 %v3048
    %3190 = vmatpush2.bf16.msra.mxu0 %v3047
    %3191 = vmatprep.subr.bf16.mxu0 %v3042
    %3192 = vmatpush2.bf16.msra.mxu0 %v3041
    %3193 = vmatprep.subr.bf16.mxu0 %v3036
    %3194 = vmatpush2.bf16.msra.mxu0 %v3035
    %3195 = vmatprep.subr.bf16.mxu0 %v3030
    %3196 = vmatpush2.bf16.msra.mxu0 %v3029
    %3197 = vmatprep.subr.bf16.mxu0 %v3024
    %3198 = vmatpush2.bf16.msra.mxu0 %v3023
    %3199 = vmatprep.mubr.bf16.mxu0 %v2559
    %3200 = vmatmul.mubr.bf16.gmra.mxu0 %v2558
    %v3201 = vpop.f32.mrf.mxu0
    %v3202 = vadd.f32 %v2660, %v3201
    %v3203 = vpop.f32.mrf.mxu0
    %v3204 = vadd.f32 %v2664, %v3203
    %v3205 = vpop.f32.mrf.mxu0
    %v3206 = vadd.f32 %v2660, %v3205
    %v3207 = vpop.f32.mrf.mxu0
    %v3208 = vadd.f32 %v2664, %v3207
    %3209 = vdwg.mxu0
    %3210 = vmatprep.subr.bf16.mxu0 %v3020
    %3211 = vmatpush1.bf16.msra.mxu0 %v3019
    %3212 = vmatprep.subr.bf16.mxu0 %v3014
    %3213 = vmatpush1.bf16.msra.mxu0 %v3013
    %3214 = vmatprep.subr.bf16.mxu0 %v3008
    %3215 = vmatpush1.bf16.msra.mxu0 %v3007
    %3216 = vmatprep.subr.bf16.mxu0 %v3002
    %3217 = vmatpush1.bf16.msra.mxu0 %v3001
    %3218 = vmatprep.subr.bf16.mxu0 %v2996
    %3219 = vmatpush1.bf16.msra.mxu0 %v2995
    %3220 = vmatprep.subr.bf16.mxu0 %v2990
    %3221 = vmatpush1.bf16.msra.mxu0 %v2989
    %3222 = vmatprep.subr.bf16.mxu0 %v2984
    %3223 = vmatpush1.bf16.msra.mxu0 %v2983
    %3224 = vmatprep.subr.bf16.mxu0 %v2978
    %3225 = vmatpush1.bf16.msra.mxu0 %v2977
    %3226 = vmatprep.subr.bf16.mxu0 %v3068
    %3227 = vmatpush2.bf16.msra.mxu0 %v3067
    %3228 = vmatprep.subr.bf16.mxu0 %v3062
    %3229 = vmatpush2.bf16.msra.mxu0 %v3061
    %3230 = vmatprep.subr.bf16.mxu0 %v3056
    %3231 = vmatpush2.bf16.msra.mxu0 %v3055
    %3232 = vmatprep.subr.bf16.mxu0 %v3050
    %3233 = vmatpush2.bf16.msra.mxu0 %v3049
    %3234 = vmatprep.subr.bf16.mxu0 %v3044
    %3235 = vmatpush2.bf16.msra.mxu0 %v3043
    %3236 = vmatprep.subr.bf16.mxu0 %v3038
    %3237 = vmatpush2.bf16.msra.mxu0 %v3037
    %3238 = vmatprep.subr.bf16.mxu0 %v3032
    %3239 = vmatpush2.bf16.msra.mxu0 %v3031
    %3240 = vmatprep.subr.bf16.mxu0 %v3026
    %3241 = vmatpush2.bf16.msra.mxu0 %v3025
    %3242 = vmatprep.mubr.bf16.mxu0 %v2559
    %3243 = vmatmul.mubr.bf16.gmra.mxu0 %v2558
    %v3244 = vpop.f32.mrf.mxu0
    %v3245 = vadd.f32 %v2668, %v3244
    %v3246 = vpop.f32.mrf.mxu0
    %v3247 = vadd.f32 %v2672, %v3246
    %v3248 = vpop.f32.mrf.mxu0
    %v3249 = vadd.f32 %v2668, %v3248
    %v3250 = vpop.f32.mrf.mxu0
    %v3251 = vadd.f32 %v2672, %v3250
    %3252 = vdwg.mxu0
    %3253 = vmatprep.subr.bf16.mxu0 %v3022
    %3254 = vmatpush1.bf16.msra.mxu0 %v3021
    %3255 = vmatprep.subr.bf16.mxu0 %v3016
    %3256 = vmatpush1.bf16.msra.mxu0 %v3015
    %3257 = vmatprep.subr.bf16.mxu0 %v3010
    %3258 = vmatpush1.bf16.msra.mxu0 %v3009
    %3259 = vmatprep.subr.bf16.mxu0 %v3004
    %3260 = vmatpush1.bf16.msra.mxu0 %v3003
    %3261 = vmatprep.subr.bf16.mxu0 %v2998
    %3262 = vmatpush1.bf16.msra.mxu0 %v2997
    %3263 = vmatprep.subr.bf16.mxu0 %v2992
    %3264 = vmatpush1.bf16.msra.mxu0 %v2991
    %3265 = vmatprep.subr.bf16.mxu0 %v2986
    %3266 = vmatpush1.bf16.msra.mxu0 %v2985
    %3267 = vmatprep.subr.bf16.mxu0 %v2980
    %3268 = vmatpush1.bf16.msra.mxu0 %v2979
    %3269 = vmatprep.subr.bf16.mxu0 %v3070
    %3270 = vmatpush2.bf16.msra.mxu0 %v3069
    %3271 = vmatprep.subr.bf16.mxu0 %v3064
    %3272 = vmatpush2.bf16.msra.mxu0 %v3063
    %3273 = vmatprep.subr.bf16.mxu0 %v3058
    %3274 = vmatpush2.bf16.msra.mxu0 %v3057
    %3275 = vmatprep.subr.bf16.mxu0 %v3052
    %3276 = vmatpush2.bf16.msra.mxu0 %v3051
    %3277 = vmatprep.subr.bf16.mxu0 %v3046
    %3278 = vmatpush2.bf16.msra.mxu0 %v3045
    %3279 = vmatprep.subr.bf16.mxu0 %v3040
    %3280 = vmatpush2.bf16.msra.mxu0 %v3039
    %3281 = vmatprep.subr.bf16.mxu0 %v3034
    %3282 = vmatpush2.bf16.msra.mxu0 %v3033
    %3283 = vmatprep.subr.bf16.mxu0 %v3028
    %3284 = vmatpush2.bf16.msra.mxu0 %v3027
    %3285 = vmatprep.mubr.bf16.mxu0 %v2559
    %3286 = vmatmul.mubr.bf16.gmra.mxu0 %v2558
    %v3287 = vpop.f32.mrf.mxu0
    %v3288 = vadd.f32 %v2676, %v3287
    %v3289 = vpop.f32.mrf.mxu0
    %v3290 = vadd.f32 %v2680, %v3289
    %v3291 = vpop.f32.mrf.mxu0
    %v3292 = vadd.f32 %v2676, %v3291
    %v3293 = vpop.f32.mrf.mxu0
    %v3294 = vadd.f32 %v2680, %v3293
    %3295 = vdwg.mxu0
    %v3296 = vld [vmem:[#allocation9] sm:$0xff]
    %v3297 = vld [vmem:[#allocation9 + $0x8] sm:$0xf]
    %v3298 = vld [vmem:[#allocation9 + $0x18] sm:$0xff]
    %v3299 = vld [vmem:[#allocation9 + $0x20] sm:$0xf]
    %v3300 = vld [vmem:[#allocation9 + $0x30] sm:$0xff]
    %v3301 = vld [vmem:[#allocation9 + $0x38] sm:$0xf]
    %v3302 = vld [vmem:[#allocation9 + $0x48] sm:$0xff]
    %v3303 = vld [vmem:[#allocation9 + $0x50] sm:$0xf]
    %v3304 = vld [vmem:[#allocation9 + $0x60] sm:$0xff]
    %v3305 = vld [vmem:[#allocation9 + $0x68] sm:$0xf]
    %v3306 = vld [vmem:[#allocation9 + $0x78] sm:$0xff]
    %v3307 = vld [vmem:[#allocation9 + $0x80] sm:$0xf]
    %v3308 = vld [vmem:[#allocation9 + $0x90] sm:$0xff]
    %v3309 = vld [vmem:[#allocation9 + $0x98] sm:$0xf]
    %v3310 = vld [vmem:[#allocation9 + $0xa8] sm:$0xff]
    %v3311 = vld [vmem:[#allocation9 + $0xb0] sm:$0xf]
    %v3312 = vld [vmem:[#allocation9 + $0xc0] sm:$0xff]
    %v3313 = vld [vmem:[#allocation9 + $0xc8] sm:$0xf]
    %v3314 = vld [vmem:[#allocation9 + $0xd8] sm:$0xff]
    %v3315 = vld [vmem:[#allocation9 + $0xe0] sm:$0xf]
    %v3316 = vld [vmem:[#allocation9 + $0xf0] sm:$0xff]
    %v3317 = vld [vmem:[#allocation9 + $0xf8] sm:$0xf]
    %v3318 = vld [vmem:[#allocation9 + $0x108] sm:$0xff]
    %v3319 = vld [vmem:[#allocation9 + $0x110] sm:$0xf]
    %v3320 = vld [vmem:[#allocation9 + $0x120] sm:$0xff]
    %v3321 = vld [vmem:[#allocation9 + $0x128] sm:$0xf]
    %v3322 = vld [vmem:[#allocation9 + $0x138] sm:$0xff]
    %v3323 = vld [vmem:[#allocation9 + $0x140] sm:$0xf]
    %v3324 = vld [vmem:[#allocation9 + $0x150] sm:$0xff]
    %v3325 = vld [vmem:[#allocation9 + $0x158] sm:$0xf]
    %v3326 = vld [vmem:[#allocation9 + $0x168] sm:$0xff]
    %v3327 = vld [vmem:[#allocation9 + $0x170] sm:$0xf]
    %v3329 = vlaneseq
    %v3330 = vshrl.u32 %v3329, 7
    %v3331 = vsub.s32 0, %v3330
    %v3332 = vrot.slane %v101, %v3331
    %v3333 = vlaneseq
    %v3334 = vshrl.u32 %v3333, 7
    %v3335 = vsub.s32 1, %v3334
    %v3336 = vrot.slane %v101, %v3335
    %v3337 = vlaneseq
    %v3338 = vshrl.u32 %v3337, 7
    %v3339 = vsub.s32 2, %v3338
    %v3340 = vrot.slane %v101, %v3339
    %v3376 = vunpack.c.l.b16 %v3296
    %v3377 = vunpack.c.h.b16 %v3296
    %v3378 = vunpack.c.l.b16 %v3297
    %v3379 = vunpack.c.l.b16 %v3298
    %v3380 = vunpack.c.h.b16 %v3298
    %v3381 = vunpack.c.l.b16 %v3299
    %v3382 = vunpack.c.l.b16 %v3300
    %v3383 = vunpack.c.h.b16 %v3300
    %v3384 = vunpack.c.l.b16 %v3301
    %v3385 = vunpack.c.l.b16 %v3302
    %v3386 = vunpack.c.h.b16 %v3302
    %v3387 = vunpack.c.l.b16 %v3303
    %v3388 = vunpack.c.l.b16 %v3304
    %v3389 = vunpack.c.h.b16 %v3304
    %v3390 = vunpack.c.l.b16 %v3305
    %v3391 = vunpack.c.l.b16 %v3306
    %v3392 = vunpack.c.h.b16 %v3306
    %v3393 = vunpack.c.l.b16 %v3307
    %v3394 = vunpack.c.l.b16 %v3308
    %v3395 = vunpack.c.h.b16 %v3308
    %v3396 = vunpack.c.l.b16 %v3309
    %v3397 = vunpack.c.l.b16 %v3310
    %v3398 = vunpack.c.h.b16 %v3310
    %v3399 = vunpack.c.l.b16 %v3311
    %v3400 = vunpack.c.l.b16 %v3312
    %v3401 = vunpack.c.h.b16 %v3312
    %v3402 = vunpack.c.l.b16 %v3313
    %v3403 = vunpack.c.l.b16 %v3314
    %v3404 = vunpack.c.h.b16 %v3314
    %v3405 = vunpack.c.l.b16 %v3315
    %v3406 = vunpack.c.l.b16 %v3316
    %v3407 = vunpack.c.h.b16 %v3316
    %v3408 = vunpack.c.l.b16 %v3317
    %v3409 = vunpack.c.l.b16 %v3318
    %v3410 = vunpack.c.h.b16 %v3318
    %v3411 = vunpack.c.l.b16 %v3319
    %v3412 = vunpack.c.l.b16 %v3320
    %v3413 = vunpack.c.h.b16 %v3320
    %v3414 = vunpack.c.l.b16 %v3321
    %v3415 = vunpack.c.l.b16 %v3322
    %v3416 = vunpack.c.h.b16 %v3322
    %v3417 = vunpack.c.l.b16 %v3323
    %v3418 = vunpack.c.l.b16 %v3324
    %v3419 = vunpack.c.h.b16 %v3324
    %v3420 = vunpack.c.l.b16 %v3325
    %v3421 = vunpack.c.l.b16 %v3326
    %v3422 = vunpack.c.h.b16 %v3326
    %v3423 = vunpack.c.l.b16 %v3327
    %v3424 = vpack.c.b16 %v3379, %v3376
    %v3425 = vpack.c.b16 %v3380, %v3377
    %v3426 = vpack.c.b16 %v3381, %v3378
    %v3427 = vpack.c.b16 %v3385, %v3382
    %v3428 = vpack.c.b16 %v3386, %v3383
    %v3429 = vpack.c.b16 %v3387, %v3384
    %v3430 = vpack.c.b16 %v3391, %v3388
    %v3431 = vpack.c.b16 %v3392, %v3389
    %v3432 = vpack.c.b16 %v3393, %v3390
    %v3433 = vpack.c.b16 %v3397, %v3394
    %v3434 = vpack.c.b16 %v3398, %v3395
    %v3435 = vpack.c.b16 %v3399, %v3396
    %v3436 = vpack.c.b16 %v3403, %v3400
    %v3437 = vpack.c.b16 %v3404, %v3401
    %v3438 = vpack.c.b16 %v3405, %v3402
    %v3439 = vpack.c.b16 %v3409, %v3406
    %v3440 = vpack.c.b16 %v3410, %v3407
    %v3441 = vpack.c.b16 %v3411, %v3408
    %v3442 = vpack.c.b16 %v3415, %v3412
    %v3443 = vpack.c.b16 %v3416, %v3413
    %v3444 = vpack.c.b16 %v3417, %v3414
    %v3445 = vpack.c.b16 %v3421, %v3418
    %v3446 = vpack.c.b16 %v3422, %v3419
    %v3447 = vpack.c.b16 %v3423, %v3420
    %3472 = vmatprep.subr.bf16.mxu0 %v3446
    %3473 = vmatpush1.bf16.msra.mxu0 %v3445
    %3474 = vmatprep.subr.bf16.mxu0 %v3443
    %3475 = vmatpush1.bf16.msra.mxu0 %v3442
    %3476 = vmatprep.subr.bf16.mxu0 %v3440
    %3477 = vmatpush1.bf16.msra.mxu0 %v3439
    %3478 = vmatprep.subr.bf16.mxu0 %v3437
    %3479 = vmatpush1.bf16.msra.mxu0 %v3436
    %3480 = vmatprep.subr.bf16.mxu0 %v3434
    %3481 = vmatpush1.bf16.msra.mxu0 %v3433
    %3482 = vmatprep.subr.bf16.mxu0 %v3431
    %3483 = vmatpush1.bf16.msra.mxu0 %v3430
    %3484 = vmatprep.subr.bf16.mxu0 %v3428
    %3485 = vmatpush1.bf16.msra.mxu0 %v3427
    %3486 = vmatprep.subr.bf16.mxu0 %v3425
    %3487 = vmatpush1.bf16.msra.mxu0 %v3424
    %3488 = vmatprep.subr.bf16.mxu0 0
    %3489 = vmatpush2.bf16.msra.mxu0 0
    %3490 = vmatprep.subr.bf16.mxu0 0
    %3491 = vmatpush2.bf16.msra.mxu0 0
    %3492 = vmatprep.subr.bf16.mxu0 0
    %3493 = vmatpush2.bf16.msra.mxu0 0
    %3494 = vmatprep.subr.bf16.mxu0 0
    %3495 = vmatpush2.bf16.msra.mxu0 0
    %3496 = vmatprep.subr.bf16.mxu0 0
    %3497 = vmatpush2.bf16.msra.mxu0 0
    %3498 = vmatprep.subr.bf16.mxu0 0
    %3499 = vmatpush2.bf16.msra.mxu0 0
    %3500 = vmatprep.subr.bf16.mxu0 0
    %3501 = vmatpush2.bf16.msra.mxu0 0
    %3502 = vmatprep.subr.bf16.mxu0 0
    %3503 = vmatpush2.bf16.msra.mxu0 0
    %3504 = vmatprep.mubr.bf16.mxu0 0
    %3505 = vmatmul.mubr.bf16.gmra.mxu0 0
    %v3506 = vpop.f32.mrf.mxu0
    %v3507 = vadd.f32 %v3332, %v3506
    %v3508 = vpop.f32.mrf.mxu0
    %v3509 = vadd.f32 %v3336, %v3508
    %v3510 = vpop.f32.mrf.mxu0
    %v3511 = vpop.f32.mrf.mxu0
    %3512 = vdwg.mxu0
    %3513 = vmatprep.subr.bf16.mxu0 0
    %3514 = vmatpush1.bf16.msra.mxu0 %v3447
    %3515 = vmatprep.subr.bf16.mxu0 0
    %3516 = vmatpush1.bf16.msra.mxu0 %v3444
    %3517 = vmatprep.subr.bf16.mxu0 0
    %3518 = vmatpush1.bf16.msra.mxu0 %v3441
    %3519 = vmatprep.subr.bf16.mxu0 0
    %3520 = vmatpush1.bf16.msra.mxu0 %v3438
    %3521 = vmatprep.subr.bf16.mxu0 0
    %3522 = vmatpush1.bf16.msra.mxu0 %v3435
    %3523 = vmatprep.subr.bf16.mxu0 0
    %3524 = vmatpush1.bf16.msra.mxu0 %v3432
    %3525 = vmatprep.subr.bf16.mxu0 0
    %3526 = vmatpush1.bf16.msra.mxu0 %v3429
    %3527 = vmatprep.subr.bf16.mxu0 0
    %3528 = vmatpush1.bf16.msra.mxu0 %v3426
    %3529 = vmatprep.subr.bf16.mxu0 0
    %3530 = vmatpush2.bf16.msra.mxu0 0
    %3531 = vmatprep.subr.bf16.mxu0 0
    %3532 = vmatpush2.bf16.msra.mxu0 0
    %3533 = vmatprep.subr.bf16.mxu0 0
    %3534 = vmatpush2.bf16.msra.mxu0 0
    %3535 = vmatprep.subr.bf16.mxu0 0
    %3536 = vmatpush2.bf16.msra.mxu0 0
    %3537 = vmatprep.subr.bf16.mxu0 0
    %3538 = vmatpush2.bf16.msra.mxu0 0
    %3539 = vmatprep.subr.bf16.mxu0 0
    %3540 = vmatpush2.bf16.msra.mxu0 0
    %3541 = vmatprep.subr.bf16.mxu0 0
    %3542 = vmatpush2.bf16.msra.mxu0 0
    %3543 = vmatprep.subr.bf16.mxu0 0
    %3544 = vmatpush2.bf16.msra.mxu0 0
    %3545 = vmatprep.mubr.bf16.mxu0 0
    %3546 = vmatmul.mubr.bf16.gmra.mxu0 0
    %v3547 = vpop.f32.mrf.mxu0
    %v3548 = vadd.f32 %v3340, %v3547
    %v3549 = vpop.f32.mrf.mxu0
    %v3550 = vpop.f32.mrf.mxu0
    %v3551 = vpop.f32.mrf.mxu0
    %3552 = vdwg.mxu0
    %v3553 = vadd.f32 %v3202, %v3507
    %v3554 = vxor.u32 %v3553, 2147483648
    %v3555 = vmul.f32 %v3554, 1.442695
    %v3556 = vpow.pop %v3555
    %v3557 = vadd.f32 %v3556, 1.0
    %v3558 = vrcp.pop %v3557
    %v3559 = vmul.f32 1.0, %v3558
    %v3560 = vadd.f32 %v3204, %v3509
    %v3561 = vxor.u32 %v3560, 2147483648
    %v3562 = vmul.f32 %v3561, 1.442695
    %v3563 = vpow.pop %v3562
    %v3564 = vadd.f32 %v3563, 1.0
    %v3565 = vrcp.pop %v3564
    %v3566 = vmul.f32 1.0, %v3565
    %v3567 = vmul.f32 %v3559, %v3548
    %v3568 = vadd.f32 %v3245, %v3567
    %v3569 = vtanh.pop %v3568
    %v3570 = vsub.f32 1.0, %v3566
    %v3571 = vmul.f32 %v3570, %v3569
    %v3572 = vmul.f32 %v3566, 0.0
    %v3573 = vadd.f32 %v3571, %v3572
    %3574 = vst [vmem:[#allocation2] sm:$0xff] %v3573
    %v3575 = vld [vmem:[#allocation9 + $0xc] sm:$0xff]
    %v3576 = vld [vmem:[#allocation9 + $0x14] sm:$0xf]
    %v3577 = vld [vmem:[#allocation9 + $0x24] sm:$0xff]
    %v3578 = vld [vmem:[#allocation9 + $0x2c] sm:$0xf]
    %v3579 = vld [vmem:[#allocation9 + $0x3c] sm:$0xff]
    %v3580 = vld [vmem:[#allocation9 + $0x44] sm:$0xf]
    %v3581 = vld [vmem:[#allocation9 + $0x54] sm:$0xff]
    %v3582 = vld [vmem:[#allocation9 + $0x5c] sm:$0xf]
    %v3583 = vld [vmem:[#allocation9 + $0x6c] sm:$0xff]
    %v3584 = vld [vmem:[#allocation9 + $0x74] sm:$0xf]
    %v3585 = vld [vmem:[#allocation9 + $0x84] sm:$0xff]
    %v3586 = vld [vmem:[#allocation9 + $0x8c] sm:$0xf]
    %v3587 = vld [vmem:[#allocation9 + $0x9c] sm:$0xff]
    %v3588 = vld [vmem:[#allocation9 + $0xa4] sm:$0xf]
    %v3589 = vld [vmem:[#allocation9 + $0xb4] sm:$0xff]
    %v3590 = vld [vmem:[#allocation9 + $0xbc] sm:$0xf]
    %v3591 = vld [vmem:[#allocation9 + $0xcc] sm:$0xff]
    %v3592 = vld [vmem:[#allocation9 + $0xd4] sm:$0xf]
    %v3593 = vld [vmem:[#allocation9 + $0xe4] sm:$0xff]
    %v3594 = vld [vmem:[#allocation9 + $0xec] sm:$0xf]
    %v3595 = vld [vmem:[#allocation9 + $0xfc] sm:$0xff]
    %v3596 = vld [vmem:[#allocation9 + $0x104] sm:$0xf]
    %v3597 = vld [vmem:[#allocation9 + $0x114] sm:$0xff]
    %v3598 = vld [vmem:[#allocation9 + $0x11c] sm:$0xf]
    %v3599 = vld [vmem:[#allocation9 + $0x12c] sm:$0xff]
    %v3600 = vld [vmem:[#allocation9 + $0x134] sm:$0xf]
    %v3601 = vld [vmem:[#allocation9 + $0x144] sm:$0xff]
    %v3602 = vld [vmem:[#allocation9 + $0x14c] sm:$0xf]
    %v3603 = vld [vmem:[#allocation9 + $0x15c] sm:$0xff]
    %v3604 = vld [vmem:[#allocation9 + $0x164] sm:$0xf]
    %v3605 = vld [vmem:[#allocation9 + $0x174] sm:$0xff]
    %v3606 = vld [vmem:[#allocation9 + $0x17c] sm:$0xf]
    %v3608 = vlaneseq
    %v3609 = vshrl.u32 %v3608, 7
    %v3610 = vsub.s32 0, %v3609
    %v3611 = vrot.slane %v103, %v3610
    %v3612 = vlaneseq
    %v3613 = vshrl.u32 %v3612, 7
    %v3614 = vsub.s32 1, %v3613
    %v3615 = vrot.slane %v103, %v3614
    %v3616 = vlaneseq
    %v3617 = vshrl.u32 %v3616, 7
    %v3618 = vsub.s32 2, %v3617
    %v3619 = vrot.slane %v103, %v3618
    %v3655 = vunpack.c.l.b16 %v3575
    %v3656 = vunpack.c.h.b16 %v3575
    %v3657 = vunpack.c.l.b16 %v3576
    %v3658 = vunpack.c.l.b16 %v3577
    %v3659 = vunpack.c.h.b16 %v3577
    %v3660 = vunpack.c.l.b16 %v3578
    %v3661 = vunpack.c.l.b16 %v3579
    %v3662 = vunpack.c.h.b16 %v3579
    %v3663 = vunpack.c.l.b16 %v3580
    %v3664 = vunpack.c.l.b16 %v3581
    %v3665 = vunpack.c.h.b16 %v3581
    %v3666 = vunpack.c.l.b16 %v3582
    %v3667 = vunpack.c.l.b16 %v3583
    %v3668 = vunpack.c.h.b16 %v3583
    %v3669 = vunpack.c.l.b16 %v3584
    %v3670 = vunpack.c.l.b16 %v3585
    %v3671 = vunpack.c.h.b16 %v3585
    %v3672 = vunpack.c.l.b16 %v3586
    %v3673 = vunpack.c.l.b16 %v3587
    %v3674 = vunpack.c.h.b16 %v3587
    %v3675 = vunpack.c.l.b16 %v3588
    %v3676 = vunpack.c.l.b16 %v3589
    %v3677 = vunpack.c.h.b16 %v3589
    %v3678 = vunpack.c.l.b16 %v3590
    %v3679 = vunpack.c.l.b16 %v3591
    %v3680 = vunpack.c.h.b16 %v3591
    %v3681 = vunpack.c.l.b16 %v3592
    %v3682 = vunpack.c.l.b16 %v3593
    %v3683 = vunpack.c.h.b16 %v3593
    %v3684 = vunpack.c.l.b16 %v3594
    %v3685 = vunpack.c.l.b16 %v3595
    %v3686 = vunpack.c.h.b16 %v3595
    %v3687 = vunpack.c.l.b16 %v3596
    %v3688 = vunpack.c.l.b16 %v3597
    %v3689 = vunpack.c.h.b16 %v3597
    %v3690 = vunpack.c.l.b16 %v3598
    %v3691 = vunpack.c.l.b16 %v3599
    %v3692 = vunpack.c.h.b16 %v3599
    %v3693 = vunpack.c.l.b16 %v3600
    %v3694 = vunpack.c.l.b16 %v3601
    %v3695 = vunpack.c.h.b16 %v3601
    %v3696 = vunpack.c.l.b16 %v3602
    %v3697 = vunpack.c.l.b16 %v3603
    %v3698 = vunpack.c.h.b16 %v3603
    %v3699 = vunpack.c.l.b16 %v3604
    %v3700 = vunpack.c.l.b16 %v3605
    %v3701 = vunpack.c.h.b16 %v3605
    %v3702 = vunpack.c.l.b16 %v3606
    %v3703 = vpack.c.b16 %v3658, %v3655
    %v3704 = vpack.c.b16 %v3659, %v3656
    %v3705 = vpack.c.b16 %v3660, %v3657
    %v3706 = vpack.c.b16 %v3664, %v3661
    %v3707 = vpack.c.b16 %v3665, %v3662
    %v3708 = vpack.c.b16 %v3666, %v3663
    %v3709 = vpack.c.b16 %v3670, %v3667
    %v3710 = vpack.c.b16 %v3671, %v3668
    %v3711 = vpack.c.b16 %v3672, %v3669
    %v3712 = vpack.c.b16 %v3676, %v3673
    %v3713 = vpack.c.b16 %v3677, %v3674
    %v3714 = vpack.c.b16 %v3678, %v3675
    %v3715 = vpack.c.b16 %v3682, %v3679
    %v3716 = vpack.c.b16 %v3683, %v3680
    %v3717 = vpack.c.b16 %v3684, %v3681
    %v3718 = vpack.c.b16 %v3688, %v3685
    %v3719 = vpack.c.b16 %v3689, %v3686
    %v3720 = vpack.c.b16 %v3690, %v3687
    %v3721 = vpack.c.b16 %v3694, %v3691
    %v3722 = vpack.c.b16 %v3695, %v3692
    %v3723 = vpack.c.b16 %v3696, %v3693
    %v3724 = vpack.c.b16 %v3700, %v3697
    %v3725 = vpack.c.b16 %v3701, %v3698
    %v3726 = vpack.c.b16 %v3702, %v3699
    %3751 = vmatprep.subr.bf16.mxu0 %v3725
    %3752 = vmatpush1.bf16.msra.mxu0 %v3724
    %3753 = vmatprep.subr.bf16.mxu0 %v3722
    %3754 = vmatpush1.bf16.msra.mxu0 %v3721
    %3755 = vmatprep.subr.bf16.mxu0 %v3719
    %3756 = vmatpush1.bf16.msra.mxu0 %v3718
    %3757 = vmatprep.subr.bf16.mxu0 %v3716
    %3758 = vmatpush1.bf16.msra.mxu0 %v3715
    %3759 = vmatprep.subr.bf16.mxu0 %v3713
    %3760 = vmatpush1.bf16.msra.mxu0 %v3712
    %3761 = vmatprep.subr.bf16.mxu0 %v3710
    %3762 = vmatpush1.bf16.msra.mxu0 %v3709
    %3763 = vmatprep.subr.bf16.mxu0 %v3707
    %3764 = vmatpush1.bf16.msra.mxu0 %v3706
    %3765 = vmatprep.subr.bf16.mxu0 %v3704
    %3766 = vmatpush1.bf16.msra.mxu0 %v3703
    %3767 = vmatprep.subr.bf16.mxu0 0
    %3768 = vmatpush2.bf16.msra.mxu0 0
    %3769 = vmatprep.subr.bf16.mxu0 0
    %3770 = vmatpush2.bf16.msra.mxu0 0
    %3771 = vmatprep.subr.bf16.mxu0 0
    %3772 = vmatpush2.bf16.msra.mxu0 0
    %3773 = vmatprep.subr.bf16.mxu0 0
    %3774 = vmatpush2.bf16.msra.mxu0 0
    %3775 = vmatprep.subr.bf16.mxu0 0
    %3776 = vmatpush2.bf16.msra.mxu0 0
    %3777 = vmatprep.subr.bf16.mxu0 0
    %3778 = vmatpush2.bf16.msra.mxu0 0
    %3779 = vmatprep.subr.bf16.mxu0 0
    %3780 = vmatpush2.bf16.msra.mxu0 0
    %3781 = vmatprep.subr.bf16.mxu0 0
    %3782 = vmatpush2.bf16.msra.mxu0 0
    %3783 = vmatprep.mubr.bf16.mxu0 0
    %3784 = vmatmul.mubr.bf16.gmra.mxu0 0
    %v3785 = vpop.f32.mrf.mxu0
    %v3786 = vadd.f32 %v3611, %v3785
    %v3787 = vpop.f32.mrf.mxu0
    %v3788 = vadd.f32 %v3615, %v3787
    %v3789 = vpop.f32.mrf.mxu0
    %v3790 = vpop.f32.mrf.mxu0
    %3791 = vdwg.mxu0
    %3792 = vmatprep.subr.bf16.mxu0 0
    %3793 = vmatpush1.bf16.msra.mxu0 %v3726
    %3794 = vmatprep.subr.bf16.mxu0 0
    %3795 = vmatpush1.bf16.msra.mxu0 %v3723
    %3796 = vmatprep.subr.bf16.mxu0 0
    %3797 = vmatpush1.bf16.msra.mxu0 %v3720
    %3798 = vmatprep.subr.bf16.mxu0 0
    %3799 = vmatpush1.bf16.msra.mxu0 %v3717
    %3800 = vmatprep.subr.bf16.mxu0 0
    %3801 = vmatpush1.bf16.msra.mxu0 %v3714
    %3802 = vmatprep.subr.bf16.mxu0 0
    %3803 = vmatpush1.bf16.msra.mxu0 %v3711
    %3804 = vmatprep.subr.bf16.mxu0 0
    %3805 = vmatpush1.bf16.msra.mxu0 %v3708
    %3806 = vmatprep.subr.bf16.mxu0 0
    %3807 = vmatpush1.bf16.msra.mxu0 %v3705
    %3808 = vmatprep.subr.bf16.mxu0 0
    %3809 = vmatpush2.bf16.msra.mxu0 0
    %3810 = vmatprep.subr.bf16.mxu0 0
    %3811 = vmatpush2.bf16.msra.mxu0 0
    %3812 = vmatprep.subr.bf16.mxu0 0
    %3813 = vmatpush2.bf16.msra.mxu0 0
    %3814 = vmatprep.subr.bf16.mxu0 0
    %3815 = vmatpush2.bf16.msra.mxu0 0
    %3816 = vmatprep.subr.bf16.mxu0 0
    %3817 = vmatpush2.bf16.msra.mxu0 0
    %3818 = vmatprep.subr.bf16.mxu0 0
    %3819 = vmatpush2.bf16.msra.mxu0 0
    %3820 = vmatprep.subr.bf16.mxu0 0
    %3821 = vmatpush2.bf16.msra.mxu0 0
    %3822 = vmatprep.subr.bf16.mxu0 0
    %3823 = vmatpush2.bf16.msra.mxu0 0
    %3824 = vmatprep.mubr.bf16.mxu0 0
    %3825 = vmatmul.mubr.bf16.gmra.mxu0 0
    %v3826 = vpop.f32.mrf.mxu0
    %v3827 = vadd.f32 %v3619, %v3826
    %v3828 = vpop.f32.mrf.mxu0
    %v3829 = vpop.f32.mrf.mxu0
    %v3830 = vpop.f32.mrf.mxu0
    %3831 = vdwg.mxu0
    %v3832 = vadd.f32 %v3251, %v3786
    %v3833 = vxor.u32 %v3832, 2147483648
    %v3834 = vmul.f32 %v3833, 1.442695
    %v3835 = vpow.pop %v3834
    %v3836 = vadd.f32 %v3835, 1.0
    %v3837 = vrcp.pop %v3836
    %v3838 = vmul.f32 1.0, %v3837
    %v3839 = vadd.f32 %v3292, %v3788
    %v3840 = vxor.u32 %v3839, 2147483648
    %v3841 = vmul.f32 %v3840, 1.442695
    %v3842 = vpow.pop %v3841
    %v3843 = vadd.f32 %v3842, 1.0
    %v3844 = vrcp.pop %v3843
    %v3845 = vmul.f32 1.0, %v3844
    %v3846 = vmul.f32 %v3838, %v3827
    %v3847 = vadd.f32 %v3294, %v3846
    %v3848 = vtanh.pop %v3847
    %v3849 = vsub.f32 1.0, %v3845
    %v3850 = vmul.f32 %v3849, %v3848
    %v3851 = vmul.f32 %v3845, 0.0
    %v3852 = vadd.f32 %v3850, %v3851
    %3853 = vst [vmem:[#allocation2 + $0x18] sm:$0xff] %v3852
    %v3854 = vpack.c.bf16 %v3573, %v3573
    %v3855 = vld [vmem:[#allocation9] sm:$0xff]
    %v3856 = vld [vmem:[#allocation9 + $0x8] sm:$0xf]
    %v3857 = vld [vmem:[#allocation9 + $0x18] sm:$0xff]
    %v3858 = vld [vmem:[#allocation9 + $0x20] sm:$0xf]
    %v3859 = vld [vmem:[#allocation9 + $0x30] sm:$0xff]
    %v3860 = vld [vmem:[#allocation9 + $0x38] sm:$0xf]
    %v3861 = vld [vmem:[#allocation9 + $0x48] sm:$0xff]
    %v3862 = vld [vmem:[#allocation9 + $0x50] sm:$0xf]
    %v3863 = vld [vmem:[#allocation9 + $0x60] sm:$0xff]
    %v3864 = vld [vmem:[#allocation9 + $0x68] sm:$0xf]
    %v3865 = vld [vmem:[#allocation9 + $0x78] sm:$0xff]
    %v3866 = vld [vmem:[#allocation9 + $0x80] sm:$0xf]
    %v3867 = vld [vmem:[#allocation9 + $0x90] sm:$0xff]
    %v3868 = vld [vmem:[#allocation9 + $0x98] sm:$0xf]
    %v3869 = vld [vmem:[#allocation9 + $0xa8] sm:$0xff]
    %v3870 = vld [vmem:[#allocation9 + $0xb0] sm:$0xf]
    %v3871 = vld [vmem:[#allocation9 + $0xc0] sm:$0xff]
    %v3872 = vld [vmem:[#allocation9 + $0xc8] sm:$0xf]
    %v3873 = vld [vmem:[#allocation9 + $0xd8] sm:$0xff]
    %v3874 = vld [vmem:[#allocation9 + $0xe0] sm:$0xf]
    %v3875 = vld [vmem:[#allocation9 + $0xf0] sm:$0xff]
    %v3876 = vld [vmem:[#allocation9 + $0xf8] sm:$0xf]
    %v3877 = vld [vmem:[#allocation9 + $0x108] sm:$0xff]
    %v3878 = vld [vmem:[#allocation9 + $0x110] sm:$0xf]
    %v3879 = vld [vmem:[#allocation9 + $0x120] sm:$0xff]
    %v3880 = vld [vmem:[#allocation9 + $0x128] sm:$0xf]
    %v3881 = vld [vmem:[#allocation9 + $0x138] sm:$0xff]
    %v3882 = vld [vmem:[#allocation9 + $0x140] sm:$0xf]
    %v3883 = vld [vmem:[#allocation9 + $0x150] sm:$0xff]
    %v3884 = vld [vmem:[#allocation9 + $0x158] sm:$0xf]
    %v3885 = vld [vmem:[#allocation9 + $0x168] sm:$0xff]
    %v3886 = vld [vmem:[#allocation9 + $0x170] sm:$0xf]
    %v3919 = vunpack.c.l.b16 %v3855
    %v3920 = vunpack.c.h.b16 %v3855
    %v3921 = vunpack.c.l.b16 %v3856
    %v3922 = vunpack.c.l.b16 %v3857
    %v3923 = vunpack.c.h.b16 %v3857
    %v3924 = vunpack.c.l.b16 %v3858
    %v3925 = vunpack.c.l.b16 %v3859
    %v3926 = vunpack.c.h.b16 %v3859
    %v3927 = vunpack.c.l.b16 %v3860
    %v3928 = vunpack.c.l.b16 %v3861
    %v3929 = vunpack.c.h.b16 %v3861
    %v3930 = vunpack.c.l.b16 %v3862
    %v3931 = vunpack.c.l.b16 %v3863
    %v3932 = vunpack.c.h.b16 %v3863
    %v3933 = vunpack.c.l.b16 %v3864
    %v3934 = vunpack.c.l.b16 %v3865
    %v3935 = vunpack.c.h.b16 %v3865
    %v3936 = vunpack.c.l.b16 %v3866
    %v3937 = vunpack.c.l.b16 %v3867
    %v3938 = vunpack.c.h.b16 %v3867
    %v3939 = vunpack.c.l.b16 %v3868
    %v3940 = vunpack.c.l.b16 %v3869
    %v3941 = vunpack.c.h.b16 %v3869
    %v3942 = vunpack.c.l.b16 %v3870
    %v3943 = vunpack.c.l.b16 %v3871
    %v3944 = vunpack.c.h.b16 %v3871
    %v3945 = vunpack.c.l.b16 %v3872
    %v3946 = vunpack.c.l.b16 %v3873
    %v3947 = vunpack.c.h.b16 %v3873
    %v3948 = vunpack.c.l.b16 %v3874
    %v3949 = vunpack.c.l.b16 %v3875
    %v3950 = vunpack.c.h.b16 %v3875
    %v3951 = vunpack.c.l.b16 %v3876
    %v3952 = vunpack.c.l.b16 %v3877
    %v3953 = vunpack.c.h.b16 %v3877
    %v3954 = vunpack.c.l.b16 %v3878
    %v3955 = vunpack.c.l.b16 %v3879
    %v3956 = vunpack.c.h.b16 %v3879
    %v3957 = vunpack.c.l.b16 %v3880
    %v3958 = vunpack.c.l.b16 %v3881
    %v3959 = vunpack.c.h.b16 %v3881
    %v3960 = vunpack.c.l.b16 %v3882
    %v3961 = vunpack.c.l.b16 %v3883
    %v3962 = vunpack.c.h.b16 %v3883
    %v3963 = vunpack.c.l.b16 %v3884
    %v3964 = vunpack.c.l.b16 %v3885
    %v3965 = vunpack.c.h.b16 %v3885
    %v3966 = vunpack.c.l.b16 %v3886
    %v3967 = vpack.c.b16 %v3922, %v3919
    %v3968 = vpack.c.b16 %v3923, %v3920
    %v3969 = vpack.c.b16 %v3924, %v3921
    %v3970 = vpack.c.b16 %v3928, %v3925
    %v3971 = vpack.c.b16 %v3929, %v3926
    %v3972 = vpack.c.b16 %v3930, %v3927
    %v3973 = vpack.c.b16 %v3934, %v3931
    %v3974 = vpack.c.b16 %v3935, %v3932
    %v3975 = vpack.c.b16 %v3936, %v3933
    %v3976 = vpack.c.b16 %v3940, %v3937
    %v3977 = vpack.c.b16 %v3941, %v3938
    %v3978 = vpack.c.b16 %v3942, %v3939
    %v3979 = vpack.c.b16 %v3946, %v3943
    %v3980 = vpack.c.b16 %v3947, %v3944
    %v3981 = vpack.c.b16 %v3948, %v3945
    %v3982 = vpack.c.b16 %v3952, %v3949
    %v3983 = vpack.c.b16 %v3953, %v3950
    %v3984 = vpack.c.b16 %v3954, %v3951
    %v3985 = vpack.c.b16 %v3958, %v3955
    %v3986 = vpack.c.b16 %v3959, %v3956
    %v3987 = vpack.c.b16 %v3960, %v3957
    %v3988 = vpack.c.b16 %v3964, %v3961
    %v3989 = vpack.c.b16 %v3965, %v3962
    %v3990 = vpack.c.b16 %v3966, %v3963
    %4015 = vmatprep.subr.bf16.mxu0 %v3989
    %4016 = vmatpush1.bf16.msra.mxu0 %v3988
    %4017 = vmatprep.subr.bf16.mxu0 %v3986
    %4018 = vmatpush1.bf16.msra.mxu0 %v3985
    %4019 = vmatprep.subr.bf16.mxu0 %v3983
    %4020 = vmatpush1.bf16.msra.mxu0 %v3982
    %4021 = vmatprep.subr.bf16.mxu0 %v3980
    %4022 = vmatpush1.bf16.msra.mxu0 %v3979
    %4023 = vmatprep.subr.bf16.mxu0 %v3977
    %4024 = vmatpush1.bf16.msra.mxu0 %v3976
    %4025 = vmatprep.subr.bf16.mxu0 %v3974
    %4026 = vmatpush1.bf16.msra.mxu0 %v3973
    %4027 = vmatprep.subr.bf16.mxu0 %v3971
    %4028 = vmatpush1.bf16.msra.mxu0 %v3970
    %4029 = vmatprep.subr.bf16.mxu0 %v3968
    %4030 = vmatpush1.bf16.msra.mxu0 %v3967
    %4031 = vmatprep.subr.bf16.mxu0 0
    %4032 = vmatpush2.bf16.msra.mxu0 0
    %4033 = vmatprep.subr.bf16.mxu0 0
    %4034 = vmatpush2.bf16.msra.mxu0 0
    %4035 = vmatprep.subr.bf16.mxu0 0
    %4036 = vmatpush2.bf16.msra.mxu0 0
    %4037 = vmatprep.subr.bf16.mxu0 0
    %4038 = vmatpush2.bf16.msra.mxu0 0
    %4039 = vmatprep.subr.bf16.mxu0 0
    %4040 = vmatpush2.bf16.msra.mxu0 0
    %4041 = vmatprep.subr.bf16.mxu0 0
    %4042 = vmatpush2.bf16.msra.mxu0 0
    %4043 = vmatprep.subr.bf16.mxu0 0
    %4044 = vmatpush2.bf16.msra.mxu0 0
    %4045 = vmatprep.subr.bf16.mxu0 0
    %4046 = vmatpush2.bf16.msra.mxu0 0
    %4047 = vmatprep.mubr.bf16.mxu0 0
    %4048 = vmatmul.mubr.bf16.gmra.mxu0 %v3854
    %v4049 = vpop.f32.mrf.mxu0
    %v4050 = vadd.f32 %v3332, %v4049
    %v4051 = vpop.f32.mrf.mxu0
    %v4052 = vadd.f32 %v3336, %v4051
    %v4053 = vpop.f32.mrf.mxu0
    %v4054 = vpop.f32.mrf.mxu0
    %4055 = vdwg.mxu0
    %4056 = vmatprep.subr.bf16.mxu0 0
    %4057 = vmatpush1.bf16.msra.mxu0 %v3990
    %4058 = vmatprep.subr.bf16.mxu0 0
    %4059 = vmatpush1.bf16.msra.mxu0 %v3987
    %4060 = vmatprep.subr.bf16.mxu0 0
    %4061 = vmatpush1.bf16.msra.mxu0 %v3984
    %4062 = vmatprep.subr.bf16.mxu0 0
    %4063 = vmatpush1.bf16.msra.mxu0 %v3981
    %4064 = vmatprep.subr.bf16.mxu0 0
    %4065 = vmatpush1.bf16.msra.mxu0 %v3978
    %4066 = vmatprep.subr.bf16.mxu0 0
    %4067 = vmatpush1.bf16.msra.mxu0 %v3975
    %4068 = vmatprep.subr.bf16.mxu0 0
    %4069 = vmatpush1.bf16.msra.mxu0 %v3972
    %4070 = vmatprep.subr.bf16.mxu0 0
    %4071 = vmatpush1.bf16.msra.mxu0 %v3969
    %4072 = vmatprep.subr.bf16.mxu0 0
    %4073 = vmatpush2.bf16.msra.mxu0 0
    %4074 = vmatprep.subr.bf16.mxu0 0
    %4075 = vmatpush2.bf16.msra.mxu0 0
    %4076 = vmatprep.subr.bf16.mxu0 0
    %4077 = vmatpush2.bf16.msra.mxu0 0
    %4078 = vmatprep.subr.bf16.mxu0 0
    %4079 = vmatpush2.bf16.msra.mxu0 0
    %4080 = vmatprep.subr.bf16.mxu0 0
    %4081 = vmatpush2.bf16.msra.mxu0 0
    %4082 = vmatprep.subr.bf16.mxu0 0
    %4083 = vmatpush2.bf16.msra.mxu0 0
    %4084 = vmatprep.subr.bf16.mxu0 0
    %4085 = vmatpush2.bf16.msra.mxu0 0
    %4086 = vmatprep.subr.bf16.mxu0 0
    %4087 = vmatpush2.bf16.msra.mxu0 0
    %4088 = vmatprep.mubr.bf16.mxu0 0
    %4089 = vmatmul.mubr.bf16.gmra.mxu0 %v3854
    %v4090 = vpop.f32.mrf.mxu0
    %v4091 = vadd.f32 %v3340, %v4090
    %v4092 = vpop.f32.mrf.mxu0
    %v4093 = vpop.f32.mrf.mxu0
    %v4094 = vpop.f32.mrf.mxu0
    %4095 = vdwg.mxu0
    %v4096 = vadd.f32 %v3206, %v4050
    %v4097 = vxor.u32 %v4096, 2147483648
    %v4098 = vmul.f32 %v4097, 1.442695
    %v4099 = vpow.pop %v4098
    %v4100 = vadd.f32 %v4099, 1.0
    %v4101 = vrcp.pop %v4100
    %v4102 = vmul.f32 1.0, %v4101
    %v4103 = vadd.f32 %v3208, %v4052
    %v4104 = vxor.u32 %v4103, 2147483648
    %v4105 = vmul.f32 %v4104, 1.442695
    %v4106 = vpow.pop %v4105
    %v4107 = vadd.f32 %v4106, 1.0
    %v4108 = vrcp.pop %v4107
    %v4109 = vmul.f32 1.0, %v4108
    %v4110 = vmul.f32 %v4102, %v4091
    %v4111 = vadd.f32 %v3249, %v4110
    %v4112 = vtanh.pop %v4111
    %v4113 = vsub.f32 1.0, %v4109
    %v4114 = vmul.f32 %v4113, %v4112
    %v4115 = vmul.f32 %v4109, %v3573
    %v4116 = vadd.f32 %v4114, %v4115
    %4117 = vst [vmem:[#allocation2 + $0x10] sm:$0xff] %v4116
    %v4118 = vpack.c.bf16 %v3852, %v3852
    %v4119 = vld [vmem:[#allocation9 + $0xc] sm:$0xff]
    %v4120 = vld [vmem:[#allocation9 + $0x14] sm:$0xf]
    %v4121 = vld [vmem:[#allocation9 + $0x24] sm:$0xff]
    %v4122 = vld [vmem:[#allocation9 + $0x2c] sm:$0xf]
    %v4123 = vld [vmem:[#allocation9 + $0x3c] sm:$0xff]
    %v4124 = vld [vmem:[#allocation9 + $0x44] sm:$0xf]
    %v4125 = vld [vmem:[#allocation9 + $0x54] sm:$0xff]
    %v4126 = vld [vmem:[#allocation9 + $0x5c] sm:$0xf]
    %v4127 = vld [vmem:[#allocation9 + $0x6c] sm:$0xff]
    %v4128 = vld [vmem:[#allocation9 + $0x74] sm:$0xf]
    %v4129 = vld [vmem:[#allocation9 + $0x84] sm:$0xff]
    %v4130 = vld [vmem:[#allocation9 + $0x8c] sm:$0xf]
    %v4131 = vld [vmem:[#allocation9 + $0x9c] sm:$0xff]
    %v4132 = vld [vmem:[#allocation9 + $0xa4] sm:$0xf]
    %v4133 = vld [vmem:[#allocation9 + $0xb4] sm:$0xff]
    %v4134 = vld [vmem:[#allocation9 + $0xbc] sm:$0xf]
    %v4135 = vld [vmem:[#allocation9 + $0xcc] sm:$0xff]
    %v4136 = vld [vmem:[#allocation9 + $0xd4] sm:$0xf]
    %v4137 = vld [vmem:[#allocation9 + $0xe4] sm:$0xff]
    %v4138 = vld [vmem:[#allocation9 + $0xec] sm:$0xf]
    %v4139 = vld [vmem:[#allocation9 + $0xfc] sm:$0xff]
    %v4140 = vld [vmem:[#allocation9 + $0x104] sm:$0xf]
    %v4141 = vld [vmem:[#allocation9 + $0x114] sm:$0xff]
    %v4142 = vld [vmem:[#allocation9 + $0x11c] sm:$0xf]
    %v4143 = vld [vmem:[#allocation9 + $0x12c] sm:$0xff]
    %v4144 = vld [vmem:[#allocation9 + $0x134] sm:$0xf]
    %v4145 = vld [vmem:[#allocation9 + $0x144] sm:$0xff]
    %v4146 = vld [vmem:[#allocation9 + $0x14c] sm:$0xf]
    %v4147 = vld [vmem:[#allocation9 + $0x15c] sm:$0xff]
    %v4148 = vld [vmem:[#allocation9 + $0x164] sm:$0xf]
    %v4149 = vld [vmem:[#allocation9 + $0x174] sm:$0xff]
    %v4150 = vld [vmem:[#allocation9 + $0x17c] sm:$0xf]
    %v4183 = vunpack.c.l.b16 %v4119
    %v4184 = vunpack.c.h.b16 %v4119
    %v4185 = vunpack.c.l.b16 %v4120
    %v4186 = vunpack.c.l.b16 %v4121
    %v4187 = vunpack.c.h.b16 %v4121
    %v4188 = vunpack.c.l.b16 %v4122
    %v4189 = vunpack.c.l.b16 %v4123
    %v4190 = vunpack.c.h.b16 %v4123
    %v4191 = vunpack.c.l.b16 %v4124
    %v4192 = vunpack.c.l.b16 %v4125
    %v4193 = vunpack.c.h.b16 %v4125
    %v4194 = vunpack.c.l.b16 %v4126
    %v4195 = vunpack.c.l.b16 %v4127
    %v4196 = vunpack.c.h.b16 %v4127
    %v4197 = vunpack.c.l.b16 %v4128
    %v4198 = vunpack.c.l.b16 %v4129
    %v4199 = vunpack.c.h.b16 %v4129
    %v4200 = vunpack.c.l.b16 %v4130
    %v4201 = vunpack.c.l.b16 %v4131
    %v4202 = vunpack.c.h.b16 %v4131
    %v4203 = vunpack.c.l.b16 %v4132
    %v4204 = vunpack.c.l.b16 %v4133
    %v4205 = vunpack.c.h.b16 %v4133
    %v4206 = vunpack.c.l.b16 %v4134
    %v4207 = vunpack.c.l.b16 %v4135
    %v4208 = vunpack.c.h.b16 %v4135
    %v4209 = vunpack.c.l.b16 %v4136
    %v4210 = vunpack.c.l.b16 %v4137
    %v4211 = vunpack.c.h.b16 %v4137
    %v4212 = vunpack.c.l.b16 %v4138
    %v4213 = vunpack.c.l.b16 %v4139
    %v4214 = vunpack.c.h.b16 %v4139
    %v4215 = vunpack.c.l.b16 %v4140
    %v4216 = vunpack.c.l.b16 %v4141
    %v4217 = vunpack.c.h.b16 %v4141
    %v4218 = vunpack.c.l.b16 %v4142
    %v4219 = vunpack.c.l.b16 %v4143
    %v4220 = vunpack.c.h.b16 %v4143
    %v4221 = vunpack.c.l.b16 %v4144
    %v4222 = vunpack.c.l.b16 %v4145
    %v4223 = vunpack.c.h.b16 %v4145
    %v4224 = vunpack.c.l.b16 %v4146
    %v4225 = vunpack.c.l.b16 %v4147
    %v4226 = vunpack.c.h.b16 %v4147
    %v4227 = vunpack.c.l.b16 %v4148
    %v4228 = vunpack.c.l.b16 %v4149
    %v4229 = vunpack.c.h.b16 %v4149
    %v4230 = vunpack.c.l.b16 %v4150
    %v4231 = vpack.c.b16 %v4186, %v4183
    %v4232 = vpack.c.b16 %v4187, %v4184
    %v4233 = vpack.c.b16 %v4188, %v4185
    %v4234 = vpack.c.b16 %v4192, %v4189
    %v4235 = vpack.c.b16 %v4193, %v4190
    %v4236 = vpack.c.b16 %v4194, %v4191
    %v4237 = vpack.c.b16 %v4198, %v4195
    %v4238 = vpack.c.b16 %v4199, %v4196
    %v4239 = vpack.c.b16 %v4200, %v4197
    %v4240 = vpack.c.b16 %v4204, %v4201
    %v4241 = vpack.c.b16 %v4205, %v4202
    %v4242 = vpack.c.b16 %v4206, %v4203
    %v4243 = vpack.c.b16 %v4210, %v4207
    %v4244 = vpack.c.b16 %v4211, %v4208
    %v4245 = vpack.c.b16 %v4212, %v4209
    %v4246 = vpack.c.b16 %v4216, %v4213
    %v4247 = vpack.c.b16 %v4217, %v4214
    %v4248 = vpack.c.b16 %v4218, %v4215
    %v4249 = vpack.c.b16 %v4222, %v4219
    %v4250 = vpack.c.b16 %v4223, %v4220
    %v4251 = vpack.c.b16 %v4224, %v4221
    %v4252 = vpack.c.b16 %v4228, %v4225
    %v4253 = vpack.c.b16 %v4229, %v4226
    %v4254 = vpack.c.b16 %v4230, %v4227
    %4279 = vmatprep.subr.bf16.mxu0 %v4253
    %4280 = vmatpush1.bf16.msra.mxu0 %v4252
    %4281 = vmatprep.subr.bf16.mxu0 %v4250
    %4282 = vmatpush1.bf16.msra.mxu0 %v4249
    %4283 = vmatprep.subr.bf16.mxu0 %v4247
    %4284 = vmatpush1.bf16.msra.mxu0 %v4246
    %4285 = vmatprep.subr.bf16.mxu0 %v4244
    %4286 = vmatpush1.bf16.msra.mxu0 %v4243
    %4287 = vmatprep.subr.bf16.mxu0 %v4241
    %4288 = vmatpush1.bf16.msra.mxu0 %v4240
    %4289 = vmatprep.subr.bf16.mxu0 %v4238
    %4290 = vmatpush1.bf16.msra.mxu0 %v4237
    %4291 = vmatprep.subr.bf16.mxu0 %v4235
    %4292 = vmatpush1.bf16.msra.mxu0 %v4234
    %4293 = vmatprep.subr.bf16.mxu0 %v4232
    %4294 = vmatpush1.bf16.msra.mxu0 %v4231
    %4295 = vmatprep.subr.bf16.mxu0 0
    %4296 = vmatpush2.bf16.msra.mxu0 0
    %4297 = vmatprep.subr.bf16.mxu0 0
    %4298 = vmatpush2.bf16.msra.mxu0 0
    %4299 = vmatprep.subr.bf16.mxu0 0
    %4300 = vmatpush2.bf16.msra.mxu0 0
    %4301 = vmatprep.subr.bf16.mxu0 0
    %4302 = vmatpush2.bf16.msra.mxu0 0
    %4303 = vmatprep.subr.bf16.mxu0 0
    %4304 = vmatpush2.bf16.msra.mxu0 0
    %4305 = vmatprep.subr.bf16.mxu0 0
    %4306 = vmatpush2.bf16.msra.mxu0 0
    %4307 = vmatprep.subr.bf16.mxu0 0
    %4308 = vmatpush2.bf16.msra.mxu0 0
    %4309 = vmatprep.subr.bf16.mxu0 0
    %4310 = vmatpush2.bf16.msra.mxu0 0
    %4311 = vmatprep.mubr.bf16.mxu0 0
    %4312 = vmatmul.mubr.bf16.gmra.mxu0 %v4118
    %v4313 = vpop.f32.mrf.mxu0
    %v4314 = vadd.f32 %v3611, %v4313
    %v4315 = vpop.f32.mrf.mxu0
    %v4316 = vadd.f32 %v3615, %v4315
    %v4317 = vpop.f32.mrf.mxu0
    %v4318 = vpop.f32.mrf.mxu0
    %4319 = vdwg.mxu0
    %4320 = vmatprep.subr.bf16.mxu0 0
    %4321 = vmatpush1.bf16.msra.mxu0 %v4254
    %4322 = vmatprep.subr.bf16.mxu0 0
    %4323 = vmatpush1.bf16.msra.mxu0 %v4251
    %4324 = vmatprep.subr.bf16.mxu0 0
    %4325 = vmatpush1.bf16.msra.mxu0 %v4248
    %4326 = vmatprep.subr.bf16.mxu0 0
    %4327 = vmatpush1.bf16.msra.mxu0 %v4245
    %4328 = vmatprep.subr.bf16.mxu0 0
    %4329 = vmatpush1.bf16.msra.mxu0 %v4242
    %4330 = vmatprep.subr.bf16.mxu0 0
    %4331 = vmatpush1.bf16.msra.mxu0 %v4239
    %4332 = vmatprep.subr.bf16.mxu0 0
    %4333 = vmatpush1.bf16.msra.mxu0 %v4236
    %4334 = vmatprep.subr.bf16.mxu0 0
    %4335 = vmatpush1.bf16.msra.mxu0 %v4233
    %4336 = vmatprep.subr.bf16.mxu0 0
    %4337 = vmatpush2.bf16.msra.mxu0 0
    %4338 = vmatprep.subr.bf16.mxu0 0
    %4339 = vmatpush2.bf16.msra.mxu0 0
    %4340 = vmatprep.subr.bf16.mxu0 0
    %4341 = vmatpush2.bf16.msra.mxu0 0
    %4342 = vmatprep.subr.bf16.mxu0 0
    %4343 = vmatpush2.bf16.msra.mxu0 0
    %4344 = vmatprep.subr.bf16.mxu0 0
    %4345 = vmatpush2.bf16.msra.mxu0 0
    %4346 = vmatprep.subr.bf16.mxu0 0
    %4347 = vmatpush2.bf16.msra.mxu0 0
    %4348 = vmatprep.subr.bf16.mxu0 0
    %4349 = vmatpush2.bf16.msra.mxu0 0
    %4350 = vmatprep.subr.bf16.mxu0 0
    %4351 = vmatpush2.bf16.msra.mxu0 0
    %4352 = vmatprep.mubr.bf16.mxu0 0
    %4353 = vmatmul.mubr.bf16.gmra.mxu0 %v4118
    %v4354 = vpop.f32.mrf.mxu0
    %v4355 = vadd.f32 %v3619, %v4354
    %v4356 = vpop.f32.mrf.mxu0
    %v4357 = vpop.f32.mrf.mxu0
    %v4358 = vpop.f32.mrf.mxu0
    %4359 = vdwg.mxu0
    %v4360 = vadd.f32 %v3247, %v4314
    %v4361 = vxor.u32 %v4360, 2147483648
    %v4362 = vmul.f32 %v4361, 1.442695
    %v4363 = vpow.pop %v4362
    %v4364 = vadd.f32 %v4363, 1.0
    %v4365 = vrcp.pop %v4364
    %v4366 = vmul.f32 1.0, %v4365
    %v4367 = vadd.f32 %v3288, %v4316
    %v4368 = vxor.u32 %v4367, 2147483648
    %v4369 = vmul.f32 %v4368, 1.442695
    %v4370 = vpow.pop %v4369
    %v4371 = vadd.f32 %v4370, 1.0
    %v4372 = vrcp.pop %v4371
    %v4373 = vmul.f32 1.0, %v4372
    %v4374 = vmul.f32 %v4366, %v4355
    %v4375 = vadd.f32 %v3290, %v4374
    %v4376 = vtanh.pop %v4375
    %v4377 = vsub.f32 1.0, %v4373
    %v4378 = vmul.f32 %v4377, %v4376
    %v4379 = vmul.f32 %v4373, %v3852
    %v4380 = vadd.f32 %v4378, %v4379
    %4381 = vst [vmem:[#allocation2 + $0x8] sm:$0xff] %v4380
    %v4382 = vld [vmem:[#allocation2] sm:$0xff]
    %v4383 = vld [vmem:[#allocation2 + $0x8] sm:$0xff]
    %v4384 = vld [vmem:[#allocation2 + $0x10] sm:$0xff]
    %v4385 = vld [vmem:[#allocation2 + $0x18] sm:$0xff]
    %v4386 = vpack.c.bf16 %v4384, %v4382
    %v4387 = vpack.c.bf16 %v4385, %v4383
    %v4388 = vld [vmem:[#allocation8 + $0x28] sm:$0xff]
    %v4389 = vld [vmem:[#allocation8 + $0x30] sm:$0xff]
    %v4390 = vld [vmem:[#allocation8 + $0x38] sm:$0xff]
    %v4391 = vld [vmem:[#allocation8 + $0x68] sm:$0xff]
    %v4392 = vld [vmem:[#allocation8 + $0x70] sm:$0xff]
    %v4393 = vld [vmem:[#allocation8 + $0x78] sm:$0xff]
    %v4394 = vld [vmem:[#allocation8 + $0xa8] sm:$0xff]
    %v4395 = vld [vmem:[#allocation8 + $0xb0] sm:$0xff]
    %v4396 = vld [vmem:[#allocation8 + $0xb8] sm:$0xff]
    %v4397 = vld [vmem:[#allocation8 + $0xe8] sm:$0xff]
    %v4398 = vld [vmem:[#allocation8 + $0xf0] sm:$0xff]
    %v4399 = vld [vmem:[#allocation8 + $0xf8] sm:$0xff]
    %v4400 = vld [vmem:[#allocation8 + $0x128] sm:$0xff]
    %v4401 = vld [vmem:[#allocation8 + $0x130] sm:$0xff]
    %v4402 = vld [vmem:[#allocation8 + $0x138] sm:$0xff]
    %v4403 = vld [vmem:[#allocation8 + $0x168] sm:$0xff]
    %v4404 = vld [vmem:[#allocation8 + $0x170] sm:$0xff]
    %v4405 = vld [vmem:[#allocation8 + $0x178] sm:$0xff]
    %v4406 = vld [vmem:[#allocation8 + $0x1a8] sm:$0xff]
    %v4407 = vld [vmem:[#allocation8 + $0x1b0] sm:$0xff]
    %v4408 = vld [vmem:[#allocation8 + $0x1b8] sm:$0xff]
    %v4409 = vld [vmem:[#allocation8 + $0x1e8] sm:$0xff]
    %v4410 = vld [vmem:[#allocation8 + $0x1f0] sm:$0xff]
    %v4411 = vld [vmem:[#allocation8 + $0x1f8] sm:$0xff]
    %v4412 = vld [vmem:[#allocation8 + $0x228] sm:$0xff]
    %v4413 = vld [vmem:[#allocation8 + $0x230] sm:$0xff]
    %v4414 = vld [vmem:[#allocation8 + $0x238] sm:$0xff]
    %v4415 = vld [vmem:[#allocation8 + $0x268] sm:$0xff]
    %v4416 = vld [vmem:[#allocation8 + $0x270] sm:$0xff]
    %v4417 = vld [vmem:[#allocation8 + $0x278] sm:$0xff]
    %v4418 = vld [vmem:[#allocation8 + $0x2a8] sm:$0xff]
    %v4419 = vld [vmem:[#allocation8 + $0x2b0] sm:$0xff]
    %v4420 = vld [vmem:[#allocation8 + $0x2b8] sm:$0xff]
    %v4421 = vld [vmem:[#allocation8 + $0x2e8] sm:$0xff]
    %v4422 = vld [vmem:[#allocation8 + $0x2f0] sm:$0xff]
    %v4423 = vld [vmem:[#allocation8 + $0x2f8] sm:$0xff]
    %v4424 = vld [vmem:[#allocation8 + $0x328] sm:$0xff]
    %v4425 = vld [vmem:[#allocation8 + $0x330] sm:$0xff]
    %v4426 = vld [vmem:[#allocation8 + $0x338] sm:$0xff]
    %v4427 = vld [vmem:[#allocation8 + $0x368] sm:$0xff]
    %v4428 = vld [vmem:[#allocation8 + $0x370] sm:$0xff]
    %v4429 = vld [vmem:[#allocation8 + $0x378] sm:$0xff]
    %v4430 = vld [vmem:[#allocation8 + $0x3a8] sm:$0xff]
    %v4431 = vld [vmem:[#allocation8 + $0x3b0] sm:$0xff]
    %v4432 = vld [vmem:[#allocation8 + $0x3b8] sm:$0xff]
    %v4433 = vld [vmem:[#allocation8 + $0x3e8] sm:$0xff]
    %v4434 = vld [vmem:[#allocation8 + $0x3f0] sm:$0xff]
    %v4435 = vld [vmem:[#allocation8 + $0x3f8] sm:$0xff]
    %v4436 = vld [vmem:[#allocation8 + $0x428] sm:$0xff]
    %v4437 = vld [vmem:[#allocation8 + $0x430] sm:$0xff]
    %v4438 = vld [vmem:[#allocation8 + $0x438] sm:$0xff]
    %v4439 = vld [vmem:[#allocation8 + $0x468] sm:$0xff]
    %v4440 = vld [vmem:[#allocation8 + $0x470] sm:$0xff]
    %v4441 = vld [vmem:[#allocation8 + $0x478] sm:$0xff]
    %v4442 = vld [vmem:[#allocation8 + $0x4a8] sm:$0xff]
    %v4443 = vld [vmem:[#allocation8 + $0x4b0] sm:$0xff]
    %v4444 = vld [vmem:[#allocation8 + $0x4b8] sm:$0xff]
    %v4445 = vld [vmem:[#allocation8 + $0x4e8] sm:$0xff]
    %v4446 = vld [vmem:[#allocation8 + $0x4f0] sm:$0xff]
    %v4447 = vld [vmem:[#allocation8 + $0x4f8] sm:$0xff]
    %v4448 = vld [vmem:[#allocation8 + $0x528] sm:$0xff]
    %v4449 = vld [vmem:[#allocation8 + $0x530] sm:$0xff]
    %v4450 = vld [vmem:[#allocation8 + $0x538] sm:$0xff]
    %v4451 = vld [vmem:[#allocation8 + $0x568] sm:$0xff]
    %v4452 = vld [vmem:[#allocation8 + $0x570] sm:$0xff]
    %v4453 = vld [vmem:[#allocation8 + $0x578] sm:$0xff]
    %v4454 = vld [vmem:[#allocation8 + $0x5a8] sm:$0xff]
    %v4455 = vld [vmem:[#allocation8 + $0x5b0] sm:$0xff]
    %v4456 = vld [vmem:[#allocation8 + $0x5b8] sm:$0xff]
    %v4457 = vld [vmem:[#allocation8 + $0x5e8] sm:$0xff]
    %v4458 = vld [vmem:[#allocation8 + $0x5f0] sm:$0xff]
    %v4459 = vld [vmem:[#allocation8 + $0x5f8] sm:$0xff]
    %v4460 = vld [vmem:[#allocation8 + $0x628] sm:$0xff]
    %v4461 = vld [vmem:[#allocation8 + $0x630] sm:$0xff]
    %v4462 = vld [vmem:[#allocation8 + $0x638] sm:$0xff]
    %v4463 = vld [vmem:[#allocation8 + $0x668] sm:$0xff]
    %v4464 = vld [vmem:[#allocation8 + $0x670] sm:$0xff]
    %v4465 = vld [vmem:[#allocation8 + $0x678] sm:$0xff]
    %v4466 = vld [vmem:[#allocation8 + $0x6a8] sm:$0xff]
    %v4467 = vld [vmem:[#allocation8 + $0x6b0] sm:$0xff]
    %v4468 = vld [vmem:[#allocation8 + $0x6b8] sm:$0xff]
    %v4469 = vld [vmem:[#allocation8 + $0x6e8] sm:$0xff]
    %v4470 = vld [vmem:[#allocation8 + $0x6f0] sm:$0xff]
    %v4471 = vld [vmem:[#allocation8 + $0x6f8] sm:$0xff]
    %v4472 = vld [vmem:[#allocation8 + $0x728] sm:$0xff]
    %v4473 = vld [vmem:[#allocation8 + $0x730] sm:$0xff]
    %v4474 = vld [vmem:[#allocation8 + $0x738] sm:$0xff]
    %v4475 = vld [vmem:[#allocation8 + $0x768] sm:$0xff]
    %v4476 = vld [vmem:[#allocation8 + $0x770] sm:$0xff]
    %v4477 = vld [vmem:[#allocation8 + $0x778] sm:$0xff]
    %v4478 = vld [vmem:[#allocation8 + $0x7a8] sm:$0xff]
    %v4479 = vld [vmem:[#allocation8 + $0x7b0] sm:$0xff]
    %v4480 = vld [vmem:[#allocation8 + $0x7b8] sm:$0xff]
    %v4481 = vld [vmem:[#allocation8 + $0x7e8] sm:$0xff]
    %v4482 = vld [vmem:[#allocation8 + $0x7f0] sm:$0xff]
    %v4483 = vld [vmem:[#allocation8 + $0x7f8] sm:$0xff]
    %v4485 = vlaneseq
    %v4486 = vshrl.u32 %v4485, 7
    %v4487 = vsub.s32 0, %v4486
    %v4488 = vrot.slane %v99, %v4487
    %v4489 = vlaneseq
    %v4490 = vshrl.u32 %v4489, 7
    %v4491 = vsub.s32 1, %v4490
    %v4492 = vrot.slane %v99, %v4491
    %v4493 = vlaneseq
    %v4494 = vshrl.u32 %v4493, 7
    %v4495 = vsub.s32 2, %v4494
    %v4496 = vrot.slane %v99, %v4495
    %v4497 = vlaneseq
    %v4498 = vshrl.u32 %v4497, 7
    %v4499 = vsub.s32 3, %v4498
    %v4500 = vrot.slane %v99, %v4499
    %v4501 = vlaneseq
    %v4502 = vshrl.u32 %v4501, 7
    %v4503 = vsub.s32 4, %v4502
    %v4504 = vrot.slane %v99, %v4503
    %v4505 = vlaneseq
    %v4506 = vshrl.u32 %v4505, 7
    %v4507 = vsub.s32 5, %v4506
    %v4508 = vrot.slane %v99, %v4507
    %v4611 = vunpack.c.l.b16 %v4388
    %v4612 = vunpack.c.h.b16 %v4388
    %v4613 = vunpack.c.l.b16 %v4389
    %v4614 = vunpack.c.h.b16 %v4389
    %v4615 = vunpack.c.l.b16 %v4390
    %v4616 = vunpack.c.h.b16 %v4390
    %v4617 = vunpack.c.l.b16 %v4391
    %v4618 = vunpack.c.h.b16 %v4391
    %v4619 = vunpack.c.l.b16 %v4392
    %v4620 = vunpack.c.h.b16 %v4392
    %v4621 = vunpack.c.l.b16 %v4393
    %v4622 = vunpack.c.h.b16 %v4393
    %v4623 = vunpack.c.l.b16 %v4394
    %v4624 = vunpack.c.h.b16 %v4394
    %v4625 = vunpack.c.l.b16 %v4395
    %v4626 = vunpack.c.h.b16 %v4395
    %v4627 = vunpack.c.l.b16 %v4396
    %v4628 = vunpack.c.h.b16 %v4396
    %v4629 = vunpack.c.l.b16 %v4397
    %v4630 = vunpack.c.h.b16 %v4397
    %v4631 = vunpack.c.l.b16 %v4398
    %v4632 = vunpack.c.h.b16 %v4398
    %v4633 = vunpack.c.l.b16 %v4399
    %v4634 = vunpack.c.h.b16 %v4399
    %v4635 = vunpack.c.l.b16 %v4400
    %v4636 = vunpack.c.h.b16 %v4400
    %v4637 = vunpack.c.l.b16 %v4401
    %v4638 = vunpack.c.h.b16 %v4401
    %v4639 = vunpack.c.l.b16 %v4402
    %v4640 = vunpack.c.h.b16 %v4402
    %v4641 = vunpack.c.l.b16 %v4403
    %v4642 = vunpack.c.h.b16 %v4403
    %v4643 = vunpack.c.l.b16 %v4404
    %v4644 = vunpack.c.h.b16 %v4404
    %v4645 = vunpack.c.l.b16 %v4405
    %v4646 = vunpack.c.h.b16 %v4405
    %v4647 = vunpack.c.l.b16 %v4406
    %v4648 = vunpack.c.h.b16 %v4406
    %v4649 = vunpack.c.l.b16 %v4407
    %v4650 = vunpack.c.h.b16 %v4407
    %v4651 = vunpack.c.l.b16 %v4408
    %v4652 = vunpack.c.h.b16 %v4408
    %v4653 = vunpack.c.l.b16 %v4409
    %v4654 = vunpack.c.h.b16 %v4409
    %v4655 = vunpack.c.l.b16 %v4410
    %v4656 = vunpack.c.h.b16 %v4410
    %v4657 = vunpack.c.l.b16 %v4411
    %v4658 = vunpack.c.h.b16 %v4411
    %v4659 = vunpack.c.l.b16 %v4412
    %v4660 = vunpack.c.h.b16 %v4412
    %v4661 = vunpack.c.l.b16 %v4413
    %v4662 = vunpack.c.h.b16 %v4413
    %v4663 = vunpack.c.l.b16 %v4414
    %v4664 = vunpack.c.h.b16 %v4414
    %v4665 = vunpack.c.l.b16 %v4415
    %v4666 = vunpack.c.h.b16 %v4415
    %v4667 = vunpack.c.l.b16 %v4416
    %v4668 = vunpack.c.h.b16 %v4416
    %v4669 = vunpack.c.l.b16 %v4417
    %v4670 = vunpack.c.h.b16 %v4417
    %v4671 = vunpack.c.l.b16 %v4418
    %v4672 = vunpack.c.h.b16 %v4418
    %v4673 = vunpack.c.l.b16 %v4419
    %v4674 = vunpack.c.h.b16 %v4419
    %v4675 = vunpack.c.l.b16 %v4420
    %v4676 = vunpack.c.h.b16 %v4420
    %v4677 = vunpack.c.l.b16 %v4421
    %v4678 = vunpack.c.h.b16 %v4421
    %v4679 = vunpack.c.l.b16 %v4422
    %v4680 = vunpack.c.h.b16 %v4422
    %v4681 = vunpack.c.l.b16 %v4423
    %v4682 = vunpack.c.h.b16 %v4423
    %v4683 = vunpack.c.l.b16 %v4424
    %v4684 = vunpack.c.h.b16 %v4424
    %v4685 = vunpack.c.l.b16 %v4425
    %v4686 = vunpack.c.h.b16 %v4425
    %v4687 = vunpack.c.l.b16 %v4426
    %v4688 = vunpack.c.h.b16 %v4426
    %v4689 = vunpack.c.l.b16 %v4427
    %v4690 = vunpack.c.h.b16 %v4427
    %v4691 = vunpack.c.l.b16 %v4428
    %v4692 = vunpack.c.h.b16 %v4428
    %v4693 = vunpack.c.l.b16 %v4429
    %v4694 = vunpack.c.h.b16 %v4429
    %v4695 = vunpack.c.l.b16 %v4430
    %v4696 = vunpack.c.h.b16 %v4430
    %v4697 = vunpack.c.l.b16 %v4431
    %v4698 = vunpack.c.h.b16 %v4431
    %v4699 = vunpack.c.l.b16 %v4432
    %v4700 = vunpack.c.h.b16 %v4432
    %v4701 = vunpack.c.l.b16 %v4433
    %v4702 = vunpack.c.h.b16 %v4433
    %v4703 = vunpack.c.l.b16 %v4434
    %v4704 = vunpack.c.h.b16 %v4434
    %v4705 = vunpack.c.l.b16 %v4435
    %v4706 = vunpack.c.h.b16 %v4435
    %v4707 = vunpack.c.l.b16 %v4436
    %v4708 = vunpack.c.h.b16 %v4436
    %v4709 = vunpack.c.l.b16 %v4437
    %v4710 = vunpack.c.h.b16 %v4437
    %v4711 = vunpack.c.l.b16 %v4438
    %v4712 = vunpack.c.h.b16 %v4438
    %v4713 = vunpack.c.l.b16 %v4439
    %v4714 = vunpack.c.h.b16 %v4439
    %v4715 = vunpack.c.l.b16 %v4440
    %v4716 = vunpack.c.h.b16 %v4440
    %v4717 = vunpack.c.l.b16 %v4441
    %v4718 = vunpack.c.h.b16 %v4441
    %v4719 = vunpack.c.l.b16 %v4442
    %v4720 = vunpack.c.h.b16 %v4442
    %v4721 = vunpack.c.l.b16 %v4443
    %v4722 = vunpack.c.h.b16 %v4443
    %v4723 = vunpack.c.l.b16 %v4444
    %v4724 = vunpack.c.h.b16 %v4444
    %v4725 = vunpack.c.l.b16 %v4445
    %v4726 = vunpack.c.h.b16 %v4445
    %v4727 = vunpack.c.l.b16 %v4446
    %v4728 = vunpack.c.h.b16 %v4446
    %v4729 = vunpack.c.l.b16 %v4447
    %v4730 = vunpack.c.h.b16 %v4447
    %v4731 = vunpack.c.l.b16 %v4448
    %v4732 = vunpack.c.h.b16 %v4448
    %v4733 = vunpack.c.l.b16 %v4449
    %v4734 = vunpack.c.h.b16 %v4449
    %v4735 = vunpack.c.l.b16 %v4450
    %v4736 = vunpack.c.h.b16 %v4450
    %v4737 = vunpack.c.l.b16 %v4451
    %v4738 = vunpack.c.h.b16 %v4451
    %v4739 = vunpack.c.l.b16 %v4452
    %v4740 = vunpack.c.h.b16 %v4452
    %v4741 = vunpack.c.l.b16 %v4453
    %v4742 = vunpack.c.h.b16 %v4453
    %v4743 = vunpack.c.l.b16 %v4454
    %v4744 = vunpack.c.h.b16 %v4454
    %v4745 = vunpack.c.l.b16 %v4455
    %v4746 = vunpack.c.h.b16 %v4455
    %v4747 = vunpack.c.l.b16 %v4456
    %v4748 = vunpack.c.h.b16 %v4456
    %v4749 = vunpack.c.l.b16 %v4457
    %v4750 = vunpack.c.h.b16 %v4457
    %v4751 = vunpack.c.l.b16 %v4458
    %v4752 = vunpack.c.h.b16 %v4458
    %v4753 = vunpack.c.l.b16 %v4459
    %v4754 = vunpack.c.h.b16 %v4459
    %v4755 = vunpack.c.l.b16 %v4460
    %v4756 = vunpack.c.h.b16 %v4460
    %v4757 = vunpack.c.l.b16 %v4461
    %v4758 = vunpack.c.h.b16 %v4461
    %v4759 = vunpack.c.l.b16 %v4462
    %v4760 = vunpack.c.h.b16 %v4462
    %v4761 = vunpack.c.l.b16 %v4463
    %v4762 = vunpack.c.h.b16 %v4463
    %v4763 = vunpack.c.l.b16 %v4464
    %v4764 = vunpack.c.h.b16 %v4464
    %v4765 = vunpack.c.l.b16 %v4465
    %v4766 = vunpack.c.h.b16 %v4465
    %v4767 = vunpack.c.l.b16 %v4466
    %v4768 = vunpack.c.h.b16 %v4466
    %v4769 = vunpack.c.l.b16 %v4467
    %v4770 = vunpack.c.h.b16 %v4467
    %v4771 = vunpack.c.l.b16 %v4468
    %v4772 = vunpack.c.h.b16 %v4468
    %v4773 = vunpack.c.l.b16 %v4469
    %v4774 = vunpack.c.h.b16 %v4469
    %v4775 = vunpack.c.l.b16 %v4470
    %v4776 = vunpack.c.h.b16 %v4470
    %v4777 = vunpack.c.l.b16 %v4471
    %v4778 = vunpack.c.h.b16 %v4471
    %v4779 = vunpack.c.l.b16 %v4472
    %v4780 = vunpack.c.h.b16 %v4472
    %v4781 = vunpack.c.l.b16 %v4473
    %v4782 = vunpack.c.h.b16 %v4473
    %v4783 = vunpack.c.l.b16 %v4474
    %v4784 = vunpack.c.h.b16 %v4474
    %v4785 = vunpack.c.l.b16 %v4475
    %v4786 = vunpack.c.h.b16 %v4475
    %v4787 = vunpack.c.l.b16 %v4476
    %v4788 = vunpack.c.h.b16 %v4476
    %v4789 = vunpack.c.l.b16 %v4477
    %v4790 = vunpack.c.h.b16 %v4477
    %v4791 = vunpack.c.l.b16 %v4478
    %v4792 = vunpack.c.h.b16 %v4478
    %v4793 = vunpack.c.l.b16 %v4479
    %v4794 = vunpack.c.h.b16 %v4479
    %v4795 = vunpack.c.l.b16 %v4480
    %v4796 = vunpack.c.h.b16 %v4480
    %v4797 = vunpack.c.l.b16 %v4481
    %v4798 = vunpack.c.h.b16 %v4481
    %v4799 = vunpack.c.l.b16 %v4482
    %v4800 = vunpack.c.h.b16 %v4482
    %v4801 = vunpack.c.l.b16 %v4483
    %v4802 = vunpack.c.h.b16 %v4483
    %v4803 = vpack.c.b16 %v4617, %v4611
    %v4804 = vpack.c.b16 %v4618, %v4612
    %v4805 = vpack.c.b16 %v4619, %v4613
    %v4806 = vpack.c.b16 %v4620, %v4614
    %v4807 = vpack.c.b16 %v4621, %v4615
    %v4808 = vpack.c.b16 %v4622, %v4616
    %v4809 = vpack.c.b16 %v4629, %v4623
    %v4810 = vpack.c.b16 %v4630, %v4624
    %v4811 = vpack.c.b16 %v4631, %v4625
    %v4812 = vpack.c.b16 %v4632, %v4626
    %v4813 = vpack.c.b16 %v4633, %v4627
    %v4814 = vpack.c.b16 %v4634, %v4628
    %v4815 = vpack.c.b16 %v4641, %v4635
    %v4816 = vpack.c.b16 %v4642, %v4636
    %v4817 = vpack.c.b16 %v4643, %v4637
    %v4818 = vpack.c.b16 %v4644, %v4638
    %v4819 = vpack.c.b16 %v4645, %v4639
    %v4820 = vpack.c.b16 %v4646, %v4640
    %v4821 = vpack.c.b16 %v4653, %v4647
    %v4822 = vpack.c.b16 %v4654, %v4648
    %v4823 = vpack.c.b16 %v4655, %v4649
    %v4824 = vpack.c.b16 %v4656, %v4650
    %v4825 = vpack.c.b16 %v4657, %v4651
    %v4826 = vpack.c.b16 %v4658, %v4652
    %v4827 = vpack.c.b16 %v4665, %v4659
    %v4828 = vpack.c.b16 %v4666, %v4660
    %v4829 = vpack.c.b16 %v4667, %v4661
    %v4830 = vpack.c.b16 %v4668, %v4662
    %v4831 = vpack.c.b16 %v4669, %v4663
    %v4832 = vpack.c.b16 %v4670, %v4664
    %v4833 = vpack.c.b16 %v4677, %v4671
    %v4834 = vpack.c.b16 %v4678, %v4672
    %v4835 = vpack.c.b16 %v4679, %v4673
    %v4836 = vpack.c.b16 %v4680, %v4674
    %v4837 = vpack.c.b16 %v4681, %v4675
    %v4838 = vpack.c.b16 %v4682, %v4676
    %v4839 = vpack.c.b16 %v4689, %v4683
    %v4840 = vpack.c.b16 %v4690, %v4684
    %v4841 = vpack.c.b16 %v4691, %v4685
    %v4842 = vpack.c.b16 %v4692, %v4686
    %v4843 = vpack.c.b16 %v4693, %v4687
    %v4844 = vpack.c.b16 %v4694, %v4688
    %v4845 = vpack.c.b16 %v4701, %v4695
    %v4846 = vpack.c.b16 %v4702, %v4696
    %v4847 = vpack.c.b16 %v4703, %v4697
    %v4848 = vpack.c.b16 %v4704, %v4698
    %v4849 = vpack.c.b16 %v4705, %v4699
    %v4850 = vpack.c.b16 %v4706, %v4700
    %v4851 = vpack.c.b16 %v4713, %v4707
    %v4852 = vpack.c.b16 %v4714, %v4708
    %v4853 = vpack.c.b16 %v4715, %v4709
    %v4854 = vpack.c.b16 %v4716, %v4710
    %v4855 = vpack.c.b16 %v4717, %v4711
    %v4856 = vpack.c.b16 %v4718, %v4712
    %v4857 = vpack.c.b16 %v4725, %v4719
    %v4858 = vpack.c.b16 %v4726, %v4720
    %v4859 = vpack.c.b16 %v4727, %v4721
    %v4860 = vpack.c.b16 %v4728, %v4722
    %v4861 = vpack.c.b16 %v4729, %v4723
    %v4862 = vpack.c.b16 %v4730, %v4724
    %v4863 = vpack.c.b16 %v4737, %v4731
    %v4864 = vpack.c.b16 %v4738, %v4732
    %v4865 = vpack.c.b16 %v4739, %v4733
    %v4866 = vpack.c.b16 %v4740, %v4734
    %v4867 = vpack.c.b16 %v4741, %v4735
    %v4868 = vpack.c.b16 %v4742, %v4736
    %v4869 = vpack.c.b16 %v4749, %v4743
    %v4870 = vpack.c.b16 %v4750, %v4744
    %v4871 = vpack.c.b16 %v4751, %v4745
    %v4872 = vpack.c.b16 %v4752, %v4746
    %v4873 = vpack.c.b16 %v4753, %v4747
    %v4874 = vpack.c.b16 %v4754, %v4748
    %v4875 = vpack.c.b16 %v4761, %v4755
    %v4876 = vpack.c.b16 %v4762, %v4756
    %v4877 = vpack.c.b16 %v4763, %v4757
    %v4878 = vpack.c.b16 %v4764, %v4758
    %v4879 = vpack.c.b16 %v4765, %v4759
    %v4880 = vpack.c.b16 %v4766, %v4760
    %v4881 = vpack.c.b16 %v4773, %v4767
    %v4882 = vpack.c.b16 %v4774, %v4768
    %v4883 = vpack.c.b16 %v4775, %v4769
    %v4884 = vpack.c.b16 %v4776, %v4770
    %v4885 = vpack.c.b16 %v4777, %v4771
    %v4886 = vpack.c.b16 %v4778, %v4772
    %v4887 = vpack.c.b16 %v4785, %v4779
    %v4888 = vpack.c.b16 %v4786, %v4780
    %v4889 = vpack.c.b16 %v4787, %v4781
    %v4890 = vpack.c.b16 %v4788, %v4782
    %v4891 = vpack.c.b16 %v4789, %v4783
    %v4892 = vpack.c.b16 %v4790, %v4784
    %v4893 = vpack.c.b16 %v4797, %v4791
    %v4894 = vpack.c.b16 %v4798, %v4792
    %v4895 = vpack.c.b16 %v4799, %v4793
    %v4896 = vpack.c.b16 %v4800, %v4794
    %v4897 = vpack.c.b16 %v4801, %v4795
    %v4898 = vpack.c.b16 %v4802, %v4796
    %4995 = vmatprep.subr.bf16.mxu0 %v4846
    %4996 = vmatpush1.bf16.msra.mxu0 %v4845
    %4997 = vmatprep.subr.bf16.mxu0 %v4840
    %4998 = vmatpush1.bf16.msra.mxu0 %v4839
    %4999 = vmatprep.subr.bf16.mxu0 %v4834
    %5000 = vmatpush1.bf16.msra.mxu0 %v4833
    %5001 = vmatprep.subr.bf16.mxu0 %v4828
    %5002 = vmatpush1.bf16.msra.mxu0 %v4827
    %5003 = vmatprep.subr.bf16.mxu0 %v4822
    %5004 = vmatpush1.bf16.msra.mxu0 %v4821
    %5005 = vmatprep.subr.bf16.mxu0 %v4816
    %5006 = vmatpush1.bf16.msra.mxu0 %v4815
    %5007 = vmatprep.subr.bf16.mxu0 %v4810
    %5008 = vmatpush1.bf16.msra.mxu0 %v4809
    %5009 = vmatprep.subr.bf16.mxu0 %v4804
    %5010 = vmatpush1.bf16.msra.mxu0 %v4803
    %5011 = vmatprep.subr.bf16.mxu0 %v4894
    %5012 = vmatpush2.bf16.msra.mxu0 %v4893
    %5013 = vmatprep.subr.bf16.mxu0 %v4888
    %5014 = vmatpush2.bf16.msra.mxu0 %v4887
    %5015 = vmatprep.subr.bf16.mxu0 %v4882
    %5016 = vmatpush2.bf16.msra.mxu0 %v4881
    %5017 = vmatprep.subr.bf16.mxu0 %v4876
    %5018 = vmatpush2.bf16.msra.mxu0 %v4875
    %5019 = vmatprep.subr.bf16.mxu0 %v4870
    %5020 = vmatpush2.bf16.msra.mxu0 %v4869
    %5021 = vmatprep.subr.bf16.mxu0 %v4864
    %5022 = vmatpush2.bf16.msra.mxu0 %v4863
    %5023 = vmatprep.subr.bf16.mxu0 %v4858
    %5024 = vmatpush2.bf16.msra.mxu0 %v4857
    %5025 = vmatprep.subr.bf16.mxu0 %v4852
    %5026 = vmatpush2.bf16.msra.mxu0 %v4851
    %5027 = vmatprep.mubr.bf16.mxu0 %v4387
    %5028 = vmatmul.mubr.bf16.gmra.mxu0 %v4386
    %v5029 = vpop.f32.mrf.mxu0
    %v5030 = vadd.f32 %v4488, %v5029
    %v5031 = vpop.f32.mrf.mxu0
    %v5032 = vadd.f32 %v4492, %v5031
    %v5033 = vpop.f32.mrf.mxu0
    %v5034 = vadd.f32 %v4488, %v5033
    %v5035 = vpop.f32.mrf.mxu0
    %v5036 = vadd.f32 %v4492, %v5035
    %5037 = vdwg.mxu0
    %5038 = vmatprep.subr.bf16.mxu0 %v4848
    %5039 = vmatpush1.bf16.msra.mxu0 %v4847
    %5040 = vmatprep.subr.bf16.mxu0 %v4842
    %5041 = vmatpush1.bf16.msra.mxu0 %v4841
    %5042 = vmatprep.subr.bf16.mxu0 %v4836
    %5043 = vmatpush1.bf16.msra.mxu0 %v4835
    %5044 = vmatprep.subr.bf16.mxu0 %v4830
    %5045 = vmatpush1.bf16.msra.mxu0 %v4829
    %5046 = vmatprep.subr.bf16.mxu0 %v4824
    %5047 = vmatpush1.bf16.msra.mxu0 %v4823
    %5048 = vmatprep.subr.bf16.mxu0 %v4818
    %5049 = vmatpush1.bf16.msra.mxu0 %v4817
    %5050 = vmatprep.subr.bf16.mxu0 %v4812
    %5051 = vmatpush1.bf16.msra.mxu0 %v4811
    %5052 = vmatprep.subr.bf16.mxu0 %v4806
    %5053 = vmatpush1.bf16.msra.mxu0 %v4805
    %5054 = vmatprep.subr.bf16.mxu0 %v4896
    %5055 = vmatpush2.bf16.msra.mxu0 %v4895
    %5056 = vmatprep.subr.bf16.mxu0 %v4890
    %5057 = vmatpush2.bf16.msra.mxu0 %v4889
    %5058 = vmatprep.subr.bf16.mxu0 %v4884
    %5059 = vmatpush2.bf16.msra.mxu0 %v4883
    %5060 = vmatprep.subr.bf16.mxu0 %v4878
    %5061 = vmatpush2.bf16.msra.mxu0 %v4877
    %5062 = vmatprep.subr.bf16.mxu0 %v4872
    %5063 = vmatpush2.bf16.msra.mxu0 %v4871
    %5064 = vmatprep.subr.bf16.mxu0 %v4866
    %5065 = vmatpush2.bf16.msra.mxu0 %v4865
    %5066 = vmatprep.subr.bf16.mxu0 %v4860
    %5067 = vmatpush2.bf16.msra.mxu0 %v4859
    %5068 = vmatprep.subr.bf16.mxu0 %v4854
    %5069 = vmatpush2.bf16.msra.mxu0 %v4853
    %5070 = vmatprep.mubr.bf16.mxu0 %v4387
    %5071 = vmatmul.mubr.bf16.gmra.mxu0 %v4386
    %v5072 = vpop.f32.mrf.mxu0
    %v5073 = vadd.f32 %v4496, %v5072
    %v5074 = vpop.f32.mrf.mxu0
    %v5075 = vadd.f32 %v4500, %v5074
    %v5076 = vpop.f32.mrf.mxu0
    %v5077 = vadd.f32 %v4496, %v5076
    %v5078 = vpop.f32.mrf.mxu0
    %v5079 = vadd.f32 %v4500, %v5078
    %5080 = vdwg.mxu0
    %5081 = vmatprep.subr.bf16.mxu0 %v4850
    %5082 = vmatpush1.bf16.msra.mxu0 %v4849
    %5083 = vmatprep.subr.bf16.mxu0 %v4844
    %5084 = vmatpush1.bf16.msra.mxu0 %v4843
    %5085 = vmatprep.subr.bf16.mxu0 %v4838
    %5086 = vmatpush1.bf16.msra.mxu0 %v4837
    %5087 = vmatprep.subr.bf16.mxu0 %v4832
    %5088 = vmatpush1.bf16.msra.mxu0 %v4831
    %5089 = vmatprep.subr.bf16.mxu0 %v4826
    %5090 = vmatpush1.bf16.msra.mxu0 %v4825
    %5091 = vmatprep.subr.bf16.mxu0 %v4820
    %5092 = vmatpush1.bf16.msra.mxu0 %v4819
    %5093 = vmatprep.subr.bf16.mxu0 %v4814
    %5094 = vmatpush1.bf16.msra.mxu0 %v4813
    %5095 = vmatprep.subr.bf16.mxu0 %v4808
    %5096 = vmatpush1.bf16.msra.mxu0 %v4807
    %5097 = vmatprep.subr.bf16.mxu0 %v4898
    %5098 = vmatpush2.bf16.msra.mxu0 %v4897
    %5099 = vmatprep.subr.bf16.mxu0 %v4892
    %5100 = vmatpush2.bf16.msra.mxu0 %v4891
    %5101 = vmatprep.subr.bf16.mxu0 %v4886
    %5102 = vmatpush2.bf16.msra.mxu0 %v4885
    %5103 = vmatprep.subr.bf16.mxu0 %v4880
    %5104 = vmatpush2.bf16.msra.mxu0 %v4879
    %5105 = vmatprep.subr.bf16.mxu0 %v4874
    %5106 = vmatpush2.bf16.msra.mxu0 %v4873
    %5107 = vmatprep.subr.bf16.mxu0 %v4868
    %5108 = vmatpush2.bf16.msra.mxu0 %v4867
    %5109 = vmatprep.subr.bf16.mxu0 %v4862
    %5110 = vmatpush2.bf16.msra.mxu0 %v4861
    %5111 = vmatprep.subr.bf16.mxu0 %v4856
    %5112 = vmatpush2.bf16.msra.mxu0 %v4855
    %5113 = vmatprep.mubr.bf16.mxu0 %v4387
    %5114 = vmatmul.mubr.bf16.gmra.mxu0 %v4386
    %v5115 = vpop.f32.mrf.mxu0
    %v5116 = vadd.f32 %v4504, %v5115
    %v5117 = vpop.f32.mrf.mxu0
    %v5118 = vadd.f32 %v4508, %v5117
    %v5119 = vpop.f32.mrf.mxu0
    %v5120 = vadd.f32 %v4504, %v5119
    %v5121 = vpop.f32.mrf.mxu0
    %v5122 = vadd.f32 %v4508, %v5121
    %5123 = vdwg.mxu0
    %v5124 = vld [vmem:[#allocation9 + $0x180] sm:$0xff]
    %v5125 = vld [vmem:[#allocation9 + $0x188] sm:$0xf]
    %v5126 = vld [vmem:[#allocation9 + $0x198] sm:$0xff]
    %v5127 = vld [vmem:[#allocation9 + $0x1a0] sm:$0xf]
    %v5128 = vld [vmem:[#allocation9 + $0x1b0] sm:$0xff]
    %v5129 = vld [vmem:[#allocation9 + $0x1b8] sm:$0xf]
    %v5130 = vld [vmem:[#allocation9 + $0x1c8] sm:$0xff]
    %v5131 = vld [vmem:[#allocation9 + $0x1d0] sm:$0xf]
    %v5132 = vld [vmem:[#allocation9 + $0x1e0] sm:$0xff]
    %v5133 = vld [vmem:[#allocation9 + $0x1e8] sm:$0xf]
    %v5134 = vld [vmem:[#allocation9 + $0x1f8] sm:$0xff]
    %v5135 = vld [vmem:[#allocation9 + $0x200] sm:$0xf]
    %v5136 = vld [vmem:[#allocation9 + $0x210] sm:$0xff]
    %v5137 = vld [vmem:[#allocation9 + $0x218] sm:$0xf]
    %v5138 = vld [vmem:[#allocation9 + $0x228] sm:$0xff]
    %v5139 = vld [vmem:[#allocation9 + $0x230] sm:$0xf]
    %v5140 = vld [vmem:[#allocation9 + $0x240] sm:$0xff]
    %v5141 = vld [vmem:[#allocation9 + $0x248] sm:$0xf]
    %v5142 = vld [vmem:[#allocation9 + $0x258] sm:$0xff]
    %v5143 = vld [vmem:[#allocation9 + $0x260] sm:$0xf]
    %v5144 = vld [vmem:[#allocation9 + $0x270] sm:$0xff]
    %v5145 = vld [vmem:[#allocation9 + $0x278] sm:$0xf]
    %v5146 = vld [vmem:[#allocation9 + $0x288] sm:$0xff]
    %v5147 = vld [vmem:[#allocation9 + $0x290] sm:$0xf]
    %v5148 = vld [vmem:[#allocation9 + $0x2a0] sm:$0xff]
    %v5149 = vld [vmem:[#allocation9 + $0x2a8] sm:$0xf]
    %v5150 = vld [vmem:[#allocation9 + $0x2b8] sm:$0xff]
    %v5151 = vld [vmem:[#allocation9 + $0x2c0] sm:$0xf]
    %v5152 = vld [vmem:[#allocation9 + $0x2d0] sm:$0xff]
    %v5153 = vld [vmem:[#allocation9 + $0x2d8] sm:$0xf]
    %v5154 = vld [vmem:[#allocation9 + $0x2e8] sm:$0xff]
    %v5155 = vld [vmem:[#allocation9 + $0x2f0] sm:$0xf]
    %v5157 = vlaneseq
    %v5158 = vshrl.u32 %v5157, 7
    %v5159 = vsub.s32 0, %v5158
    %v5160 = vrot.slane %v105, %v5159
    %v5161 = vlaneseq
    %v5162 = vshrl.u32 %v5161, 7
    %v5163 = vsub.s32 1, %v5162
    %v5164 = vrot.slane %v105, %v5163
    %v5165 = vlaneseq
    %v5166 = vshrl.u32 %v5165, 7
    %v5167 = vsub.s32 2, %v5166
    %v5168 = vrot.slane %v105, %v5167
    %v5204 = vunpack.c.l.b16 %v5124
    %v5205 = vunpack.c.h.b16 %v5124
    %v5206 = vunpack.c.l.b16 %v5125
    %v5207 = vunpack.c.l.b16 %v5126
    %v5208 = vunpack.c.h.b16 %v5126
    %v5209 = vunpack.c.l.b16 %v5127
    %v5210 = vunpack.c.l.b16 %v5128
    %v5211 = vunpack.c.h.b16 %v5128
    %v5212 = vunpack.c.l.b16 %v5129
    %v5213 = vunpack.c.l.b16 %v5130
    %v5214 = vunpack.c.h.b16 %v5130
    %v5215 = vunpack.c.l.b16 %v5131
    %v5216 = vunpack.c.l.b16 %v5132
    %v5217 = vunpack.c.h.b16 %v5132
    %v5218 = vunpack.c.l.b16 %v5133
    %v5219 = vunpack.c.l.b16 %v5134
    %v5220 = vunpack.c.h.b16 %v5134
    %v5221 = vunpack.c.l.b16 %v5135
    %v5222 = vunpack.c.l.b16 %v5136
    %v5223 = vunpack.c.h.b16 %v5136
    %v5224 = vunpack.c.l.b16 %v5137
    %v5225 = vunpack.c.l.b16 %v5138
    %v5226 = vunpack.c.h.b16 %v5138
    %v5227 = vunpack.c.l.b16 %v5139
    %v5228 = vunpack.c.l.b16 %v5140
    %v5229 = vunpack.c.h.b16 %v5140
    %v5230 = vunpack.c.l.b16 %v5141
    %v5231 = vunpack.c.l.b16 %v5142
    %v5232 = vunpack.c.h.b16 %v5142
    %v5233 = vunpack.c.l.b16 %v5143
    %v5234 = vunpack.c.l.b16 %v5144
    %v5235 = vunpack.c.h.b16 %v5144
    %v5236 = vunpack.c.l.b16 %v5145
    %v5237 = vunpack.c.l.b16 %v5146
    %v5238 = vunpack.c.h.b16 %v5146
    %v5239 = vunpack.c.l.b16 %v5147
    %v5240 = vunpack.c.l.b16 %v5148
    %v5241 = vunpack.c.h.b16 %v5148
    %v5242 = vunpack.c.l.b16 %v5149
    %v5243 = vunpack.c.l.b16 %v5150
    %v5244 = vunpack.c.h.b16 %v5150
    %v5245 = vunpack.c.l.b16 %v5151
    %v5246 = vunpack.c.l.b16 %v5152
    %v5247 = vunpack.c.h.b16 %v5152
    %v5248 = vunpack.c.l.b16 %v5153
    %v5249 = vunpack.c.l.b16 %v5154
    %v5250 = vunpack.c.h.b16 %v5154
    %v5251 = vunpack.c.l.b16 %v5155
    %v5252 = vpack.c.b16 %v5207, %v5204
    %v5253 = vpack.c.b16 %v5208, %v5205
    %v5254 = vpack.c.b16 %v5209, %v5206
    %v5255 = vpack.c.b16 %v5213, %v5210
    %v5256 = vpack.c.b16 %v5214, %v5211
    %v5257 = vpack.c.b16 %v5215, %v5212
    %v5258 = vpack.c.b16 %v5219, %v5216
    %v5259 = vpack.c.b16 %v5220, %v5217
    %v5260 = vpack.c.b16 %v5221, %v5218
    %v5261 = vpack.c.b16 %v5225, %v5222
    %v5262 = vpack.c.b16 %v5226, %v5223
    %v5263 = vpack.c.b16 %v5227, %v5224
    %v5264 = vpack.c.b16 %v5231, %v5228
    %v5265 = vpack.c.b16 %v5232, %v5229
    %v5266 = vpack.c.b16 %v5233, %v5230
    %v5267 = vpack.c.b16 %v5237, %v5234
    %v5268 = vpack.c.b16 %v5238, %v5235
    %v5269 = vpack.c.b16 %v5239, %v5236
    %v5270 = vpack.c.b16 %v5243, %v5240
    %v5271 = vpack.c.b16 %v5244, %v5241
    %v5272 = vpack.c.b16 %v5245, %v5242
    %v5273 = vpack.c.b16 %v5249, %v5246
    %v5274 = vpack.c.b16 %v5250, %v5247
    %v5275 = vpack.c.b16 %v5251, %v5248
    %5300 = vmatprep.subr.bf16.mxu0 %v5274
    %5301 = vmatpush1.bf16.msra.mxu0 %v5273
    %5302 = vmatprep.subr.bf16.mxu0 %v5271
    %5303 = vmatpush1.bf16.msra.mxu0 %v5270
    %5304 = vmatprep.subr.bf16.mxu0 %v5268
    %5305 = vmatpush1.bf16.msra.mxu0 %v5267
    %5306 = vmatprep.subr.bf16.mxu0 %v5265
    %5307 = vmatpush1.bf16.msra.mxu0 %v5264
    %5308 = vmatprep.subr.bf16.mxu0 %v5262
    %5309 = vmatpush1.bf16.msra.mxu0 %v5261
    %5310 = vmatprep.subr.bf16.mxu0 %v5259
    %5311 = vmatpush1.bf16.msra.mxu0 %v5258
    %5312 = vmatprep.subr.bf16.mxu0 %v5256
    %5313 = vmatpush1.bf16.msra.mxu0 %v5255
    %5314 = vmatprep.subr.bf16.mxu0 %v5253
    %5315 = vmatpush1.bf16.msra.mxu0 %v5252
    %5316 = vmatprep.subr.bf16.mxu0 0
    %5317 = vmatpush2.bf16.msra.mxu0 0
    %5318 = vmatprep.subr.bf16.mxu0 0
    %5319 = vmatpush2.bf16.msra.mxu0 0
    %5320 = vmatprep.subr.bf16.mxu0 0
    %5321 = vmatpush2.bf16.msra.mxu0 0
    %5322 = vmatprep.subr.bf16.mxu0 0
    %5323 = vmatpush2.bf16.msra.mxu0 0
    %5324 = vmatprep.subr.bf16.mxu0 0
    %5325 = vmatpush2.bf16.msra.mxu0 0
    %5326 = vmatprep.subr.bf16.mxu0 0
    %5327 = vmatpush2.bf16.msra.mxu0 0
    %5328 = vmatprep.subr.bf16.mxu0 0
    %5329 = vmatpush2.bf16.msra.mxu0 0
    %5330 = vmatprep.subr.bf16.mxu0 0
    %5331 = vmatpush2.bf16.msra.mxu0 0
    %5332 = vmatprep.mubr.bf16.mxu0 0
    %5333 = vmatmul.mubr.bf16.gmra.mxu0 0
    %v5334 = vpop.f32.mrf.mxu0
    %v5335 = vadd.f32 %v5160, %v5334
    %v5336 = vpop.f32.mrf.mxu0
    %v5337 = vadd.f32 %v5164, %v5336
    %v5338 = vpop.f32.mrf.mxu0
    %v5339 = vpop.f32.mrf.mxu0
    %5340 = vdwg.mxu0
    %5341 = vmatprep.subr.bf16.mxu0 0
    %5342 = vmatpush1.bf16.msra.mxu0 %v5275
    %5343 = vmatprep.subr.bf16.mxu0 0
    %5344 = vmatpush1.bf16.msra.mxu0 %v5272
    %5345 = vmatprep.subr.bf16.mxu0 0
    %5346 = vmatpush1.bf16.msra.mxu0 %v5269
    %5347 = vmatprep.subr.bf16.mxu0 0
    %5348 = vmatpush1.bf16.msra.mxu0 %v5266
    %5349 = vmatprep.subr.bf16.mxu0 0
    %5350 = vmatpush1.bf16.msra.mxu0 %v5263
    %5351 = vmatprep.subr.bf16.mxu0 0
    %5352 = vmatpush1.bf16.msra.mxu0 %v5260
    %5353 = vmatprep.subr.bf16.mxu0 0
    %5354 = vmatpush1.bf16.msra.mxu0 %v5257
    %5355 = vmatprep.subr.bf16.mxu0 0
    %5356 = vmatpush1.bf16.msra.mxu0 %v5254
    %5357 = vmatprep.subr.bf16.mxu0 0
    %5358 = vmatpush2.bf16.msra.mxu0 0
    %5359 = vmatprep.subr.bf16.mxu0 0
    %5360 = vmatpush2.bf16.msra.mxu0 0
    %5361 = vmatprep.subr.bf16.mxu0 0
    %5362 = vmatpush2.bf16.msra.mxu0 0
    %5363 = vmatprep.subr.bf16.mxu0 0
    %5364 = vmatpush2.bf16.msra.mxu0 0
    %5365 = vmatprep.subr.bf16.mxu0 0
    %5366 = vmatpush2.bf16.msra.mxu0 0
    %5367 = vmatprep.subr.bf16.mxu0 0
    %5368 = vmatpush2.bf16.msra.mxu0 0
    %5369 = vmatprep.subr.bf16.mxu0 0
    %5370 = vmatpush2.bf16.msra.mxu0 0
    %5371 = vmatprep.subr.bf16.mxu0 0
    %5372 = vmatpush2.bf16.msra.mxu0 0
    %5373 = vmatprep.mubr.bf16.mxu0 0
    %5374 = vmatmul.mubr.bf16.gmra.mxu0 0
    %v5375 = vpop.f32.mrf.mxu0
    %v5376 = vadd.f32 %v5168, %v5375
    %v5377 = vpop.f32.mrf.mxu0
    %v5378 = vpop.f32.mrf.mxu0
    %v5379 = vpop.f32.mrf.mxu0
    %5380 = vdwg.mxu0
    %v5381 = vadd.f32 %v5030, %v5335
    %v5382 = vxor.u32 %v5381, 2147483648
    %v5383 = vmul.f32 %v5382, 1.442695
    %v5384 = vpow.pop %v5383
    %v5385 = vadd.f32 %v5384, 1.0
    %v5386 = vrcp.pop %v5385
    %v5387 = vmul.f32 1.0, %v5386
    %v5388 = vadd.f32 %v5032, %v5337
    %v5389 = vxor.u32 %v5388, 2147483648
    %v5390 = vmul.f32 %v5389, 1.442695
    %v5391 = vpow.pop %v5390
    %v5392 = vadd.f32 %v5391, 1.0
    %v5393 = vrcp.pop %v5392
    %v5394 = vmul.f32 1.0, %v5393
    %v5395 = vmul.f32 %v5387, %v5376
    %v5396 = vadd.f32 %v5073, %v5395
    %v5397 = vtanh.pop %v5396
    %v5398 = vsub.f32 1.0, %v5394
    %v5399 = vmul.f32 %v5398, %v5397
    %v5400 = vmul.f32 %v5394, 0.0
    %v5401 = vadd.f32 %v5399, %v5400
    %5402 = vst [vmem:[#allocation3] sm:$0xff] %v5401
    %v5403 = vld [vmem:[#allocation9 + $0x18c] sm:$0xff]
    %v5404 = vld [vmem:[#allocation9 + $0x194] sm:$0xf]
    %v5405 = vld [vmem:[#allocation9 + $0x1a4] sm:$0xff]
    %v5406 = vld [vmem:[#allocation9 + $0x1ac] sm:$0xf]
    %v5407 = vld [vmem:[#allocation9 + $0x1bc] sm:$0xff]
    %v5408 = vld [vmem:[#allocation9 + $0x1c4] sm:$0xf]
    %v5409 = vld [vmem:[#allocation9 + $0x1d4] sm:$0xff]
    %v5410 = vld [vmem:[#allocation9 + $0x1dc] sm:$0xf]
    %v5411 = vld [vmem:[#allocation9 + $0x1ec] sm:$0xff]
    %v5412 = vld [vmem:[#allocation9 + $0x1f4] sm:$0xf]
    %v5413 = vld [vmem:[#allocation9 + $0x204] sm:$0xff]
    %v5414 = vld [vmem:[#allocation9 + $0x20c] sm:$0xf]
    %v5415 = vld [vmem:[#allocation9 + $0x21c] sm:$0xff]
    %v5416 = vld [vmem:[#allocation9 + $0x224] sm:$0xf]
    %v5417 = vld [vmem:[#allocation9 + $0x234] sm:$0xff]
    %v5418 = vld [vmem:[#allocation9 + $0x23c] sm:$0xf]
    %v5419 = vld [vmem:[#allocation9 + $0x24c] sm:$0xff]
    %v5420 = vld [vmem:[#allocation9 + $0x254] sm:$0xf]
    %v5421 = vld [vmem:[#allocation9 + $0x264] sm:$0xff]
    %v5422 = vld [vmem:[#allocation9 + $0x26c] sm:$0xf]
    %v5423 = vld [vmem:[#allocation9 + $0x27c] sm:$0xff]
    %v5424 = vld [vmem:[#allocation9 + $0x284] sm:$0xf]
    %v5425 = vld [vmem:[#allocation9 + $0x294] sm:$0xff]
    %v5426 = vld [vmem:[#allocation9 + $0x29c] sm:$0xf]
    %v5427 = vld [vmem:[#allocation9 + $0x2ac] sm:$0xff]
    %v5428 = vld [vmem:[#allocation9 + $0x2b4] sm:$0xf]
    %v5429 = vld [vmem:[#allocation9 + $0x2c4] sm:$0xff]
    %v5430 = vld [vmem:[#allocation9 + $0x2cc] sm:$0xf]
    %v5431 = vld [vmem:[#allocation9 + $0x2dc] sm:$0xff]
    %v5432 = vld [vmem:[#allocation9 + $0x2e4] sm:$0xf]
    %v5433 = vld [vmem:[#allocation9 + $0x2f4] sm:$0xff]
    %v5434 = vld [vmem:[#allocation9 + $0x2fc] sm:$0xf]
    %v5436 = vlaneseq
    %v5437 = vshrl.u32 %v5436, 7
    %v5438 = vsub.s32 0, %v5437
    %v5439 = vrot.slane %v107, %v5438
    %v5440 = vlaneseq
    %v5441 = vshrl.u32 %v5440, 7
    %v5442 = vsub.s32 1, %v5441
    %v5443 = vrot.slane %v107, %v5442
    %v5444 = vlaneseq
    %v5445 = vshrl.u32 %v5444, 7
    %v5446 = vsub.s32 2, %v5445
    %v5447 = vrot.slane %v107, %v5446
    %v5483 = vunpack.c.l.b16 %v5403
    %v5484 = vunpack.c.h.b16 %v5403
    %v5485 = vunpack.c.l.b16 %v5404
    %v5486 = vunpack.c.l.b16 %v5405
    %v5487 = vunpack.c.h.b16 %v5405
    %v5488 = vunpack.c.l.b16 %v5406
    %v5489 = vunpack.c.l.b16 %v5407
    %v5490 = vunpack.c.h.b16 %v5407
    %v5491 = vunpack.c.l.b16 %v5408
    %v5492 = vunpack.c.l.b16 %v5409
    %v5493 = vunpack.c.h.b16 %v5409
    %v5494 = vunpack.c.l.b16 %v5410
    %v5495 = vunpack.c.l.b16 %v5411
    %v5496 = vunpack.c.h.b16 %v5411
    %v5497 = vunpack.c.l.b16 %v5412
    %v5498 = vunpack.c.l.b16 %v5413
    %v5499 = vunpack.c.h.b16 %v5413
    %v5500 = vunpack.c.l.b16 %v5414
    %v5501 = vunpack.c.l.b16 %v5415
    %v5502 = vunpack.c.h.b16 %v5415
    %v5503 = vunpack.c.l.b16 %v5416
    %v5504 = vunpack.c.l.b16 %v5417
    %v5505 = vunpack.c.h.b16 %v5417
    %v5506 = vunpack.c.l.b16 %v5418
    %v5507 = vunpack.c.l.b16 %v5419
    %v5508 = vunpack.c.h.b16 %v5419
    %v5509 = vunpack.c.l.b16 %v5420
    %v5510 = vunpack.c.l.b16 %v5421
    %v5511 = vunpack.c.h.b16 %v5421
    %v5512 = vunpack.c.l.b16 %v5422
    %v5513 = vunpack.c.l.b16 %v5423
    %v5514 = vunpack.c.h.b16 %v5423
    %v5515 = vunpack.c.l.b16 %v5424
    %v5516 = vunpack.c.l.b16 %v5425
    %v5517 = vunpack.c.h.b16 %v5425
    %v5518 = vunpack.c.l.b16 %v5426
    %v5519 = vunpack.c.l.b16 %v5427
    %v5520 = vunpack.c.h.b16 %v5427
    %v5521 = vunpack.c.l.b16 %v5428
    %v5522 = vunpack.c.l.b16 %v5429
    %v5523 = vunpack.c.h.b16 %v5429
    %v5524 = vunpack.c.l.b16 %v5430
    %v5525 = vunpack.c.l.b16 %v5431
    %v5526 = vunpack.c.h.b16 %v5431
    %v5527 = vunpack.c.l.b16 %v5432
    %v5528 = vunpack.c.l.b16 %v5433
    %v5529 = vunpack.c.h.b16 %v5433
    %v5530 = vunpack.c.l.b16 %v5434
    %v5531 = vpack.c.b16 %v5486, %v5483
    %v5532 = vpack.c.b16 %v5487, %v5484
    %v5533 = vpack.c.b16 %v5488, %v5485
    %v5534 = vpack.c.b16 %v5492, %v5489
    %v5535 = vpack.c.b16 %v5493, %v5490
    %v5536 = vpack.c.b16 %v5494, %v5491
    %v5537 = vpack.c.b16 %v5498, %v5495
    %v5538 = vpack.c.b16 %v5499, %v5496
    %v5539 = vpack.c.b16 %v5500, %v5497
    %v5540 = vpack.c.b16 %v5504, %v5501
    %v5541 = vpack.c.b16 %v5505, %v5502
    %v5542 = vpack.c.b16 %v5506, %v5503
    %v5543 = vpack.c.b16 %v5510, %v5507
    %v5544 = vpack.c.b16 %v5511, %v5508
    %v5545 = vpack.c.b16 %v5512, %v5509
    %v5546 = vpack.c.b16 %v5516, %v5513
    %v5547 = vpack.c.b16 %v5517, %v5514
    %v5548 = vpack.c.b16 %v5518, %v5515
    %v5549 = vpack.c.b16 %v5522, %v5519
    %v5550 = vpack.c.b16 %v5523, %v5520
    %v5551 = vpack.c.b16 %v5524, %v5521
    %v5552 = vpack.c.b16 %v5528, %v5525
    %v5553 = vpack.c.b16 %v5529, %v5526
    %v5554 = vpack.c.b16 %v5530, %v5527
    %5579 = vmatprep.subr.bf16.mxu0 %v5553
    %5580 = vmatpush1.bf16.msra.mxu0 %v5552
    %5581 = vmatprep.subr.bf16.mxu0 %v5550
    %5582 = vmatpush1.bf16.msra.mxu0 %v5549
    %5583 = vmatprep.subr.bf16.mxu0 %v5547
    %5584 = vmatpush1.bf16.msra.mxu0 %v5546
    %5585 = vmatprep.subr.bf16.mxu0 %v5544
    %5586 = vmatpush1.bf16.msra.mxu0 %v5543
    %5587 = vmatprep.subr.bf16.mxu0 %v5541
    %5588 = vmatpush1.bf16.msra.mxu0 %v5540
    %5589 = vmatprep.subr.bf16.mxu0 %v5538
    %5590 = vmatpush1.bf16.msra.mxu0 %v5537
    %5591 = vmatprep.subr.bf16.mxu0 %v5535
    %5592 = vmatpush1.bf16.msra.mxu0 %v5534
    %5593 = vmatprep.subr.bf16.mxu0 %v5532
    %5594 = vmatpush1.bf16.msra.mxu0 %v5531
    %5595 = vmatprep.subr.bf16.mxu0 0
    %5596 = vmatpush2.bf16.msra.mxu0 0
    %5597 = vmatprep.subr.bf16.mxu0 0
    %5598 = vmatpush2.bf16.msra.mxu0 0
    %5599 = vmatprep.subr.bf16.mxu0 0
    %5600 = vmatpush2.bf16.msra.mxu0 0
    %5601 = vmatprep.subr.bf16.mxu0 0
    %5602 = vmatpush2.bf16.msra.mxu0 0
    %5603 = vmatprep.subr.bf16.mxu0 0
    %5604 = vmatpush2.bf16.msra.mxu0 0
    %5605 = vmatprep.subr.bf16.mxu0 0
    %5606 = vmatpush2.bf16.msra.mxu0 0
    %5607 = vmatprep.subr.bf16.mxu0 0
    %5608 = vmatpush2.bf16.msra.mxu0 0
    %5609 = vmatprep.subr.bf16.mxu0 0
    %5610 = vmatpush2.bf16.msra.mxu0 0
    %5611 = vmatprep.mubr.bf16.mxu0 0
    %5612 = vmatmul.mubr.bf16.gmra.mxu0 0
    %v5613 = vpop.f32.mrf.mxu0
    %v5614 = vadd.f32 %v5439, %v5613
    %v5615 = vpop.f32.mrf.mxu0
    %v5616 = vadd.f32 %v5443, %v5615
    %v5617 = vpop.f32.mrf.mxu0
    %v5618 = vpop.f32.mrf.mxu0
    %5619 = vdwg.mxu0
    %5620 = vmatprep.subr.bf16.mxu0 0
    %5621 = vmatpush1.bf16.msra.mxu0 %v5554
    %5622 = vmatprep.subr.bf16.mxu0 0
    %5623 = vmatpush1.bf16.msra.mxu0 %v5551
    %5624 = vmatprep.subr.bf16.mxu0 0
    %5625 = vmatpush1.bf16.msra.mxu0 %v5548
    %5626 = vmatprep.subr.bf16.mxu0 0
    %5627 = vmatpush1.bf16.msra.mxu0 %v5545
    %5628 = vmatprep.subr.bf16.mxu0 0
    %5629 = vmatpush1.bf16.msra.mxu0 %v5542
    %5630 = vmatprep.subr.bf16.mxu0 0
    %5631 = vmatpush1.bf16.msra.mxu0 %v5539
    %5632 = vmatprep.subr.bf16.mxu0 0
    %5633 = vmatpush1.bf16.msra.mxu0 %v5536
    %5634 = vmatprep.subr.bf16.mxu0 0
    %5635 = vmatpush1.bf16.msra.mxu0 %v5533
    %5636 = vmatprep.subr.bf16.mxu0 0
    %5637 = vmatpush2.bf16.msra.mxu0 0
    %5638 = vmatprep.subr.bf16.mxu0 0
    %5639 = vmatpush2.bf16.msra.mxu0 0
    %5640 = vmatprep.subr.bf16.mxu0 0
    %5641 = vmatpush2.bf16.msra.mxu0 0
    %5642 = vmatprep.subr.bf16.mxu0 0
    %5643 = vmatpush2.bf16.msra.mxu0 0
    %5644 = vmatprep.subr.bf16.mxu0 0
    %5645 = vmatpush2.bf16.msra.mxu0 0
    %5646 = vmatprep.subr.bf16.mxu0 0
    %5647 = vmatpush2.bf16.msra.mxu0 0
    %5648 = vmatprep.subr.bf16.mxu0 0
    %5649 = vmatpush2.bf16.msra.mxu0 0
    %5650 = vmatprep.subr.bf16.mxu0 0
    %5651 = vmatpush2.bf16.msra.mxu0 0
    %5652 = vmatprep.mubr.bf16.mxu0 0
    %5653 = vmatmul.mubr.bf16.gmra.mxu0 0
    %v5654 = vpop.f32.mrf.mxu0
    %v5655 = vadd.f32 %v5447, %v5654
    %v5656 = vpop.f32.mrf.mxu0
    %v5657 = vpop.f32.mrf.mxu0
    %v5658 = vpop.f32.mrf.mxu0
    %5659 = vdwg.mxu0
    %v5660 = vadd.f32 %v5079, %v5614
    %v5661 = vxor.u32 %v5660, 2147483648
    %v5662 = vmul.f32 %v5661, 1.442695
    %v5663 = vpow.pop %v5662
    %v5664 = vadd.f32 %v5663, 1.0
    %v5665 = vrcp.pop %v5664
    %v5666 = vmul.f32 1.0, %v5665
    %v5667 = vadd.f32 %v5120, %v5616
    %v5668 = vxor.u32 %v5667, 2147483648
    %v5669 = vmul.f32 %v5668, 1.442695
    %v5670 = vpow.pop %v5669
    %v5671 = vadd.f32 %v5670, 1.0
    %v5672 = vrcp.pop %v5671
    %v5673 = vmul.f32 1.0, %v5672
    %v5674 = vmul.f32 %v5666, %v5655
    %v5675 = vadd.f32 %v5122, %v5674
    %v5676 = vtanh.pop %v5675
    %v5677 = vsub.f32 1.0, %v5673
    %v5678 = vmul.f32 %v5677, %v5676
    %v5679 = vmul.f32 %v5673, 0.0
    %v5680 = vadd.f32 %v5678, %v5679
    %5681 = vst [vmem:[#allocation3 + $0x18] sm:$0xff] %v5680
    %v5682 = vpack.c.bf16 %v5401, %v5401
    %v5683 = vld [vmem:[#allocation9 + $0x180] sm:$0xff]
    %v5684 = vld [vmem:[#allocation9 + $0x188] sm:$0xf]
    %v5685 = vld [vmem:[#allocation9 + $0x198] sm:$0xff]
    %v5686 = vld [vmem:[#allocation9 + $0x1a0] sm:$0xf]
    %v5687 = vld [vmem:[#allocation9 + $0x1b0] sm:$0xff]
    %v5688 = vld [vmem:[#allocation9 + $0x1b8] sm:$0xf]
    %v5689 = vld [vmem:[#allocation9 + $0x1c8] sm:$0xff]
    %v5690 = vld [vmem:[#allocation9 + $0x1d0] sm:$0xf]
    %v5691 = vld [vmem:[#allocation9 + $0x1e0] sm:$0xff]
    %v5692 = vld [vmem:[#allocation9 + $0x1e8] sm:$0xf]
    %v5693 = vld [vmem:[#allocation9 + $0x1f8] sm:$0xff]
    %v5694 = vld [vmem:[#allocation9 + $0x200] sm:$0xf]
    %v5695 = vld [vmem:[#allocation9 + $0x210] sm:$0xff]
    %v5696 = vld [vmem:[#allocation9 + $0x218] sm:$0xf]
    %v5697 = vld [vmem:[#allocation9 + $0x228] sm:$0xff]
    %v5698 = vld [vmem:[#allocation9 + $0x230] sm:$0xf]
    %v5699 = vld [vmem:[#allocation9 + $0x240] sm:$0xff]
    %v5700 = vld [vmem:[#allocation9 + $0x248] sm:$0xf]
    %v5701 = vld [vmem:[#allocation9 + $0x258] sm:$0xff]
    %v5702 = vld [vmem:[#allocation9 + $0x260] sm:$0xf]
    %v5703 = vld [vmem:[#allocation9 + $0x270] sm:$0xff]
    %v5704 = vld [vmem:[#allocation9 + $0x278] sm:$0xf]
    %v5705 = vld [vmem:[#allocation9 + $0x288] sm:$0xff]
    %v5706 = vld [vmem:[#allocation9 + $0x290] sm:$0xf]
    %v5707 = vld [vmem:[#allocation9 + $0x2a0] sm:$0xff]
    %v5708 = vld [vmem:[#allocation9 + $0x2a8] sm:$0xf]
    %v5709 = vld [vmem:[#allocation9 + $0x2b8] sm:$0xff]
    %v5710 = vld [vmem:[#allocation9 + $0x2c0] sm:$0xf]
    %v5711 = vld [vmem:[#allocation9 + $0x2d0] sm:$0xff]
    %v5712 = vld [vmem:[#allocation9 + $0x2d8] sm:$0xf]
    %v5713 = vld [vmem:[#allocation9 + $0x2e8] sm:$0xff]
    %v5714 = vld [vmem:[#allocation9 + $0x2f0] sm:$0xf]
    %v5747 = vunpack.c.l.b16 %v5683
    %v5748 = vunpack.c.h.b16 %v5683
    %v5749 = vunpack.c.l.b16 %v5684
    %v5750 = vunpack.c.l.b16 %v5685
    %v5751 = vunpack.c.h.b16 %v5685
    %v5752 = vunpack.c.l.b16 %v5686
    %v5753 = vunpack.c.l.b16 %v5687
    %v5754 = vunpack.c.h.b16 %v5687
    %v5755 = vunpack.c.l.b16 %v5688
    %v5756 = vunpack.c.l.b16 %v5689
    %v5757 = vunpack.c.h.b16 %v5689
    %v5758 = vunpack.c.l.b16 %v5690
    %v5759 = vunpack.c.l.b16 %v5691
    %v5760 = vunpack.c.h.b16 %v5691
    %v5761 = vunpack.c.l.b16 %v5692
    %v5762 = vunpack.c.l.b16 %v5693
    %v5763 = vunpack.c.h.b16 %v5693
    %v5764 = vunpack.c.l.b16 %v5694
    %v5765 = vunpack.c.l.b16 %v5695
    %v5766 = vunpack.c.h.b16 %v5695
    %v5767 = vunpack.c.l.b16 %v5696
    %v5768 = vunpack.c.l.b16 %v5697
    %v5769 = vunpack.c.h.b16 %v5697
    %v5770 = vunpack.c.l.b16 %v5698
    %v5771 = vunpack.c.l.b16 %v5699
    %v5772 = vunpack.c.h.b16 %v5699
    %v5773 = vunpack.c.l.b16 %v5700
    %v5774 = vunpack.c.l.b16 %v5701
    %v5775 = vunpack.c.h.b16 %v5701
    %v5776 = vunpack.c.l.b16 %v5702
    %v5777 = vunpack.c.l.b16 %v5703
    %v5778 = vunpack.c.h.b16 %v5703
    %v5779 = vunpack.c.l.b16 %v5704
    %v5780 = vunpack.c.l.b16 %v5705
    %v5781 = vunpack.c.h.b16 %v5705
    %v5782 = vunpack.c.l.b16 %v5706
    %v5783 = vunpack.c.l.b16 %v5707
    %v5784 = vunpack.c.h.b16 %v5707
    %v5785 = vunpack.c.l.b16 %v5708
    %v5786 = vunpack.c.l.b16 %v5709
    %v5787 = vunpack.c.h.b16 %v5709
    %v5788 = vunpack.c.l.b16 %v5710
    %v5789 = vunpack.c.l.b16 %v5711
    %v5790 = vunpack.c.h.b16 %v5711
    %v5791 = vunpack.c.l.b16 %v5712
    %v5792 = vunpack.c.l.b16 %v5713
    %v5793 = vunpack.c.h.b16 %v5713
    %v5794 = vunpack.c.l.b16 %v5714
    %v5795 = vpack.c.b16 %v5750, %v5747
    %v5796 = vpack.c.b16 %v5751, %v5748
    %v5797 = vpack.c.b16 %v5752, %v5749
    %v5798 = vpack.c.b16 %v5756, %v5753
    %v5799 = vpack.c.b16 %v5757, %v5754
    %v5800 = vpack.c.b16 %v5758, %v5755
    %v5801 = vpack.c.b16 %v5762, %v5759
    %v5802 = vpack.c.b16 %v5763, %v5760
    %v5803 = vpack.c.b16 %v5764, %v5761
    %v5804 = vpack.c.b16 %v5768, %v5765
    %v5805 = vpack.c.b16 %v5769, %v5766
    %v5806 = vpack.c.b16 %v5770, %v5767
    %v5807 = vpack.c.b16 %v5774, %v5771
    %v5808 = vpack.c.b16 %v5775, %v5772
    %v5809 = vpack.c.b16 %v5776, %v5773
    %v5810 = vpack.c.b16 %v5780, %v5777
    %v5811 = vpack.c.b16 %v5781, %v5778
    %v5812 = vpack.c.b16 %v5782, %v5779
    %v5813 = vpack.c.b16 %v5786, %v5783
    %v5814 = vpack.c.b16 %v5787, %v5784
    %v5815 = vpack.c.b16 %v5788, %v5785
    %v5816 = vpack.c.b16 %v5792, %v5789
    %v5817 = vpack.c.b16 %v5793, %v5790
    %v5818 = vpack.c.b16 %v5794, %v5791
    %5843 = vmatprep.subr.bf16.mxu0 %v5817
    %5844 = vmatpush1.bf16.msra.mxu0 %v5816
    %5845 = vmatprep.subr.bf16.mxu0 %v5814
    %5846 = vmatpush1.bf16.msra.mxu0 %v5813
    %5847 = vmatprep.subr.bf16.mxu0 %v5811
    %5848 = vmatpush1.bf16.msra.mxu0 %v5810
    %5849 = vmatprep.subr.bf16.mxu0 %v5808
    %5850 = vmatpush1.bf16.msra.mxu0 %v5807
    %5851 = vmatprep.subr.bf16.mxu0 %v5805
    %5852 = vmatpush1.bf16.msra.mxu0 %v5804
    %5853 = vmatprep.subr.bf16.mxu0 %v5802
    %5854 = vmatpush1.bf16.msra.mxu0 %v5801
    %5855 = vmatprep.subr.bf16.mxu0 %v5799
    %5856 = vmatpush1.bf16.msra.mxu0 %v5798
    %5857 = vmatprep.subr.bf16.mxu0 %v5796
    %5858 = vmatpush1.bf16.msra.mxu0 %v5795
    %5859 = vmatprep.subr.bf16.mxu0 0
    %5860 = vmatpush2.bf16.msra.mxu0 0
    %5861 = vmatprep.subr.bf16.mxu0 0
    %5862 = vmatpush2.bf16.msra.mxu0 0
    %5863 = vmatprep.subr.bf16.mxu0 0
    %5864 = vmatpush2.bf16.msra.mxu0 0
    %5865 = vmatprep.subr.bf16.mxu0 0
    %5866 = vmatpush2.bf16.msra.mxu0 0
    %5867 = vmatprep.subr.bf16.mxu0 0
    %5868 = vmatpush2.bf16.msra.mxu0 0
    %5869 = vmatprep.subr.bf16.mxu0 0
    %5870 = vmatpush2.bf16.msra.mxu0 0
    %5871 = vmatprep.subr.bf16.mxu0 0
    %5872 = vmatpush2.bf16.msra.mxu0 0
    %5873 = vmatprep.subr.bf16.mxu0 0
    %5874 = vmatpush2.bf16.msra.mxu0 0
    %5875 = vmatprep.mubr.bf16.mxu0 0
    %5876 = vmatmul.mubr.bf16.gmra.mxu0 %v5682
    %v5877 = vpop.f32.mrf.mxu0
    %v5878 = vadd.f32 %v5160, %v5877
    %v5879 = vpop.f32.mrf.mxu0
    %v5880 = vadd.f32 %v5164, %v5879
    %v5881 = vpop.f32.mrf.mxu0
    %v5882 = vpop.f32.mrf.mxu0
    %5883 = vdwg.mxu0
    %5884 = vmatprep.subr.bf16.mxu0 0
    %5885 = vmatpush1.bf16.msra.mxu0 %v5818
    %5886 = vmatprep.subr.bf16.mxu0 0
    %5887 = vmatpush1.bf16.msra.mxu0 %v5815
    %5888 = vmatprep.subr.bf16.mxu0 0
    %5889 = vmatpush1.bf16.msra.mxu0 %v5812
    %5890 = vmatprep.subr.bf16.mxu0 0
    %5891 = vmatpush1.bf16.msra.mxu0 %v5809
    %5892 = vmatprep.subr.bf16.mxu0 0
    %5893 = vmatpush1.bf16.msra.mxu0 %v5806
    %5894 = vmatprep.subr.bf16.mxu0 0
    %5895 = vmatpush1.bf16.msra.mxu0 %v5803
    %5896 = vmatprep.subr.bf16.mxu0 0
    %5897 = vmatpush1.bf16.msra.mxu0 %v5800
    %5898 = vmatprep.subr.bf16.mxu0 0
    %5899 = vmatpush1.bf16.msra.mxu0 %v5797
    %5900 = vmatprep.subr.bf16.mxu0 0
    %5901 = vmatpush2.bf16.msra.mxu0 0
    %5902 = vmatprep.subr.bf16.mxu0 0
    %5903 = vmatpush2.bf16.msra.mxu0 0
    %5904 = vmatprep.subr.bf16.mxu0 0
    %5905 = vmatpush2.bf16.msra.mxu0 0
    %5906 = vmatprep.subr.bf16.mxu0 0
    %5907 = vmatpush2.bf16.msra.mxu0 0
    %5908 = vmatprep.subr.bf16.mxu0 0
    %5909 = vmatpush2.bf16.msra.mxu0 0
    %5910 = vmatprep.subr.bf16.mxu0 0
    %5911 = vmatpush2.bf16.msra.mxu0 0
    %5912 = vmatprep.subr.bf16.mxu0 0
    %5913 = vmatpush2.bf16.msra.mxu0 0
    %5914 = vmatprep.subr.bf16.mxu0 0
    %5915 = vmatpush2.bf16.msra.mxu0 0
    %5916 = vmatprep.mubr.bf16.mxu0 0
    %5917 = vmatmul.mubr.bf16.gmra.mxu0 %v5682
    %v5918 = vpop.f32.mrf.mxu0
    %v5919 = vadd.f32 %v5168, %v5918
    %v5920 = vpop.f32.mrf.mxu0
    %v5921 = vpop.f32.mrf.mxu0
    %v5922 = vpop.f32.mrf.mxu0
    %5923 = vdwg.mxu0
    %v5924 = vadd.f32 %v5034, %v5878
    %v5925 = vxor.u32 %v5924, 2147483648
    %v5926 = vmul.f32 %v5925, 1.442695
    %v5927 = vpow.pop %v5926
    %v5928 = vadd.f32 %v5927, 1.0
    %v5929 = vrcp.pop %v5928
    %v5930 = vmul.f32 1.0, %v5929
    %v5931 = vadd.f32 %v5036, %v5880
    %v5932 = vxor.u32 %v5931, 2147483648
    %v5933 = vmul.f32 %v5932, 1.442695
    %v5934 = vpow.pop %v5933
    %v5935 = vadd.f32 %v5934, 1.0
    %v5936 = vrcp.pop %v5935
    %v5937 = vmul.f32 1.0, %v5936
    %v5938 = vmul.f32 %v5930, %v5919
    %v5939 = vadd.f32 %v5077, %v5938
    %v5940 = vtanh.pop %v5939
    %v5941 = vsub.f32 1.0, %v5937
    %v5942 = vmul.f32 %v5941, %v5940
    %v5943 = vmul.f32 %v5937, %v5401
    %v5944 = vadd.f32 %v5942, %v5943
    %5945 = vst [vmem:[#allocation3 + $0x10] sm:$0xff] %v5944
    %v5946 = vpack.c.bf16 %v5680, %v5680
    %v5947 = vld [vmem:[#allocation9 + $0x18c] sm:$0xff]
    %v5948 = vld [vmem:[#allocation9 + $0x194] sm:$0xf]
    %v5949 = vld [vmem:[#allocation9 + $0x1a4] sm:$0xff]
    %v5950 = vld [vmem:[#allocation9 + $0x1ac] sm:$0xf]
    %v5951 = vld [vmem:[#allocation9 + $0x1bc] sm:$0xff]
    %v5952 = vld [vmem:[#allocation9 + $0x1c4] sm:$0xf]
    %v5953 = vld [vmem:[#allocation9 + $0x1d4] sm:$0xff]
    %v5954 = vld [vmem:[#allocation9 + $0x1dc] sm:$0xf]
    %v5955 = vld [vmem:[#allocation9 + $0x1ec] sm:$0xff]
    %v5956 = vld [vmem:[#allocation9 + $0x1f4] sm:$0xf]
    %v5957 = vld [vmem:[#allocation9 + $0x204] sm:$0xff]
    %v5958 = vld [vmem:[#allocation9 + $0x20c] sm:$0xf]
    %v5959 = vld [vmem:[#allocation9 + $0x21c] sm:$0xff]
    %v5960 = vld [vmem:[#allocation9 + $0x224] sm:$0xf]
    %v5961 = vld [vmem:[#allocation9 + $0x234] sm:$0xff]
    %v5962 = vld [vmem:[#allocation9 + $0x23c] sm:$0xf]
    %v5963 = vld [vmem:[#allocation9 + $0x24c] sm:$0xff]
    %v5964 = vld [vmem:[#allocation9 + $0x254] sm:$0xf]
    %v5965 = vld [vmem:[#allocation9 + $0x264] sm:$0xff]
    %v5966 = vld [vmem:[#allocation9 + $0x26c] sm:$0xf]
    %v5967 = vld [vmem:[#allocation9 + $0x27c] sm:$0xff]
    %v5968 = vld [vmem:[#allocation9 + $0x284] sm:$0xf]
    %v5969 = vld [vmem:[#allocation9 + $0x294] sm:$0xff]
    %v5970 = vld [vmem:[#allocation9 + $0x29c] sm:$0xf]
    %v5971 = vld [vmem:[#allocation9 + $0x2ac] sm:$0xff]
    %v5972 = vld [vmem:[#allocation9 + $0x2b4] sm:$0xf]
    %v5973 = vld [vmem:[#allocation9 + $0x2c4] sm:$0xff]
    %v5974 = vld [vmem:[#allocation9 + $0x2cc] sm:$0xf]
    %v5975 = vld [vmem:[#allocation9 + $0x2dc] sm:$0xff]
    %v5976 = vld [vmem:[#allocation9 + $0x2e4] sm:$0xf]
    %v5977 = vld [vmem:[#allocation9 + $0x2f4] sm:$0xff]
    %v5978 = vld [vmem:[#allocation9 + $0x2fc] sm:$0xf]
    %v6011 = vunpack.c.l.b16 %v5947
    %v6012 = vunpack.c.h.b16 %v5947
    %v6013 = vunpack.c.l.b16 %v5948
    %v6014 = vunpack.c.l.b16 %v5949
    %v6015 = vunpack.c.h.b16 %v5949
    %v6016 = vunpack.c.l.b16 %v5950
    %v6017 = vunpack.c.l.b16 %v5951
    %v6018 = vunpack.c.h.b16 %v5951
    %v6019 = vunpack.c.l.b16 %v5952
    %v6020 = vunpack.c.l.b16 %v5953
    %v6021 = vunpack.c.h.b16 %v5953
    %v6022 = vunpack.c.l.b16 %v5954
    %v6023 = vunpack.c.l.b16 %v5955
    %v6024 = vunpack.c.h.b16 %v5955
    %v6025 = vunpack.c.l.b16 %v5956
    %v6026 = vunpack.c.l.b16 %v5957
    %v6027 = vunpack.c.h.b16 %v5957
    %v6028 = vunpack.c.l.b16 %v5958
    %v6029 = vunpack.c.l.b16 %v5959
    %v6030 = vunpack.c.h.b16 %v5959
    %v6031 = vunpack.c.l.b16 %v5960
    %v6032 = vunpack.c.l.b16 %v5961
    %v6033 = vunpack.c.h.b16 %v5961
    %v6034 = vunpack.c.l.b16 %v5962
    %v6035 = vunpack.c.l.b16 %v5963
    %v6036 = vunpack.c.h.b16 %v5963
    %v6037 = vunpack.c.l.b16 %v5964
    %v6038 = vunpack.c.l.b16 %v5965
    %v6039 = vunpack.c.h.b16 %v5965
    %v6040 = vunpack.c.l.b16 %v5966
    %v6041 = vunpack.c.l.b16 %v5967
    %v6042 = vunpack.c.h.b16 %v5967
    %v6043 = vunpack.c.l.b16 %v5968
    %v6044 = vunpack.c.l.b16 %v5969
    %v6045 = vunpack.c.h.b16 %v5969
    %v6046 = vunpack.c.l.b16 %v5970
    %v6047 = vunpack.c.l.b16 %v5971
    %v6048 = vunpack.c.h.b16 %v5971
    %v6049 = vunpack.c.l.b16 %v5972
    %v6050 = vunpack.c.l.b16 %v5973
    %v6051 = vunpack.c.h.b16 %v5973
    %v6052 = vunpack.c.l.b16 %v5974
    %v6053 = vunpack.c.l.b16 %v5975
    %v6054 = vunpack.c.h.b16 %v5975
    %v6055 = vunpack.c.l.b16 %v5976
    %v6056 = vunpack.c.l.b16 %v5977
    %v6057 = vunpack.c.h.b16 %v5977
    %v6058 = vunpack.c.l.b16 %v5978
    %v6059 = vpack.c.b16 %v6014, %v6011
    %v6060 = vpack.c.b16 %v6015, %v6012
    %v6061 = vpack.c.b16 %v6016, %v6013
    %v6062 = vpack.c.b16 %v6020, %v6017
    %v6063 = vpack.c.b16 %v6021, %v6018
    %v6064 = vpack.c.b16 %v6022, %v6019
    %v6065 = vpack.c.b16 %v6026, %v6023
    %v6066 = vpack.c.b16 %v6027, %v6024
    %v6067 = vpack.c.b16 %v6028, %v6025
    %v6068 = vpack.c.b16 %v6032, %v6029
    %v6069 = vpack.c.b16 %v6033, %v6030
    %v6070 = vpack.c.b16 %v6034, %v6031
    %v6071 = vpack.c.b16 %v6038, %v6035
    %v6072 = vpack.c.b16 %v6039, %v6036
    %v6073 = vpack.c.b16 %v6040, %v6037
    %v6074 = vpack.c.b16 %v6044, %v6041
    %v6075 = vpack.c.b16 %v6045, %v6042
    %v6076 = vpack.c.b16 %v6046, %v6043
    %v6077 = vpack.c.b16 %v6050, %v6047
    %v6078 = vpack.c.b16 %v6051, %v6048
    %v6079 = vpack.c.b16 %v6052, %v6049
    %v6080 = vpack.c.b16 %v6056, %v6053
    %v6081 = vpack.c.b16 %v6057, %v6054
    %v6082 = vpack.c.b16 %v6058, %v6055
    %6107 = vmatprep.subr.bf16.mxu0 %v6081
    %6108 = vmatpush1.bf16.msra.mxu0 %v6080
    %6109 = vmatprep.subr.bf16.mxu0 %v6078
    %6110 = vmatpush1.bf16.msra.mxu0 %v6077
    %6111 = vmatprep.subr.bf16.mxu0 %v6075
    %6112 = vmatpush1.bf16.msra.mxu0 %v6074
    %6113 = vmatprep.subr.bf16.mxu0 %v6072
    %6114 = vmatpush1.bf16.msra.mxu0 %v6071
    %6115 = vmatprep.subr.bf16.mxu0 %v6069
    %6116 = vmatpush1.bf16.msra.mxu0 %v6068
    %6117 = vmatprep.subr.bf16.mxu0 %v6066
    %6118 = vmatpush1.bf16.msra.mxu0 %v6065
    %6119 = vmatprep.subr.bf16.mxu0 %v6063
    %6120 = vmatpush1.bf16.msra.mxu0 %v6062
    %6121 = vmatprep.subr.bf16.mxu0 %v6060
    %6122 = vmatpush1.bf16.msra.mxu0 %v6059
    %6123 = vmatprep.subr.bf16.mxu0 0
    %6124 = vmatpush2.bf16.msra.mxu0 0
    %6125 = vmatprep.subr.bf16.mxu0 0
    %6126 = vmatpush2.bf16.msra.mxu0 0
    %6127 = vmatprep.subr.bf16.mxu0 0
    %6128 = vmatpush2.bf16.msra.mxu0 0
    %6129 = vmatprep.subr.bf16.mxu0 0
    %6130 = vmatpush2.bf16.msra.mxu0 0
    %6131 = vmatprep.subr.bf16.mxu0 0
    %6132 = vmatpush2.bf16.msra.mxu0 0
    %6133 = vmatprep.subr.bf16.mxu0 0
    %6134 = vmatpush2.bf16.msra.mxu0 0
    %6135 = vmatprep.subr.bf16.mxu0 0
    %6136 = vmatpush2.bf16.msra.mxu0 0
    %6137 = vmatprep.subr.bf16.mxu0 0
    %6138 = vmatpush2.bf16.msra.mxu0 0
    %6139 = vmatprep.mubr.bf16.mxu0 0
    %6140 = vmatmul.mubr.bf16.gmra.mxu0 %v5946
    %v6141 = vpop.f32.mrf.mxu0
    %v6142 = vadd.f32 %v5439, %v6141
    %v6143 = vpop.f32.mrf.mxu0
    %v6144 = vadd.f32 %v5443, %v6143
    %v6145 = vpop.f32.mrf.mxu0
    %v6146 = vpop.f32.mrf.mxu0
    %6147 = vdwg.mxu0
    %6148 = vmatprep.subr.bf16.mxu0 0
    %6149 = vmatpush1.bf16.msra.mxu0 %v6082
    %6150 = vmatprep.subr.bf16.mxu0 0
    %6151 = vmatpush1.bf16.msra.mxu0 %v6079
    %6152 = vmatprep.subr.bf16.mxu0 0
    %6153 = vmatpush1.bf16.msra.mxu0 %v6076
    %6154 = vmatprep.subr.bf16.mxu0 0
    %6155 = vmatpush1.bf16.msra.mxu0 %v6073
    %6156 = vmatprep.subr.bf16.mxu0 0
    %6157 = vmatpush1.bf16.msra.mxu0 %v6070
    %6158 = vmatprep.subr.bf16.mxu0 0
    %6159 = vmatpush1.bf16.msra.mxu0 %v6067
    %6160 = vmatprep.subr.bf16.mxu0 0
    %6161 = vmatpush1.bf16.msra.mxu0 %v6064
    %6162 = vmatprep.subr.bf16.mxu0 0
    %6163 = vmatpush1.bf16.msra.mxu0 %v6061
    %6164 = vmatprep.subr.bf16.mxu0 0
    %6165 = vmatpush2.bf16.msra.mxu0 0
    %6166 = vmatprep.subr.bf16.mxu0 0
    %6167 = vmatpush2.bf16.msra.mxu0 0
    %6168 = vmatprep.subr.bf16.mxu0 0
    %6169 = vmatpush2.bf16.msra.mxu0 0
    %6170 = vmatprep.subr.bf16.mxu0 0
    %6171 = vmatpush2.bf16.msra.mxu0 0
    %6172 = vmatprep.subr.bf16.mxu0 0
    %6173 = vmatpush2.bf16.msra.mxu0 0
    %6174 = vmatprep.subr.bf16.mxu0 0
    %6175 = vmatpush2.bf16.msra.mxu0 0
    %6176 = vmatprep.subr.bf16.mxu0 0
    %6177 = vmatpush2.bf16.msra.mxu0 0
    %6178 = vmatprep.subr.bf16.mxu0 0
    %6179 = vmatpush2.bf16.msra.mxu0 0
    %6180 = vmatprep.mubr.bf16.mxu0 0
    %6181 = vmatmul.mubr.bf16.gmra.mxu0 %v5946
    %v6182 = vpop.f32.mrf.mxu0
    %v6183 = vadd.f32 %v5447, %v6182
    %v6184 = vpop.f32.mrf.mxu0
    %v6185 = vpop.f32.mrf.mxu0
    %v6186 = vpop.f32.mrf.mxu0
    %6187 = vdwg.mxu0
    %v6188 = vadd.f32 %v5075, %v6142
    %v6189 = vxor.u32 %v6188, 2147483648
    %v6190 = vmul.f32 %v6189, 1.442695
    %v6191 = vpow.pop %v6190
    %v6192 = vadd.f32 %v6191, 1.0
    %v6193 = vrcp.pop %v6192
    %v6194 = vmul.f32 1.0, %v6193
    %v6195 = vadd.f32 %v5116, %v6144
    %v6196 = vxor.u32 %v6195, 2147483648
    %v6197 = vmul.f32 %v6196, 1.442695
    %v6198 = vpow.pop %v6197
    %v6199 = vadd.f32 %v6198, 1.0
    %v6200 = vrcp.pop %v6199
    %v6201 = vmul.f32 1.0, %v6200
    %v6202 = vmul.f32 %v6194, %v6183
    %v6203 = vadd.f32 %v5118, %v6202
    %v6204 = vtanh.pop %v6203
    %v6205 = vsub.f32 1.0, %v6201
    %v6206 = vmul.f32 %v6205, %v6204
    %v6207 = vmul.f32 %v6201, %v5680
    %v6208 = vadd.f32 %v6206, %v6207
    %6209 = vst [vmem:[#allocation3 + $0x8] sm:$0xff] %v6208
    %v6210 = vld [vmem:[#allocation3] sm:$0xff]
    %v6211 = vld [vmem:[#allocation3 + $0x8] sm:$0xff]
    %v6212 = vld [vmem:[#allocation3 + $0x10] sm:$0xff]
    %v6213 = vld [vmem:[#allocation3 + $0x18] sm:$0xff]
    %v6215 = vlaneseq
    %v6216 = vshrl.u32 %v6215, 7
    %v6217 = vsub.s32 0, %v6216
    %v6218 = vrot.slane %v109, %v6217
    %v6219 = vlaneseq
    %v6220 = vshrl.u32 %v6219, 7
    %v6221 = vsub.s32 1, %v6220
    %v6222 = vrot.slane %v109, %v6221
    %v6225 = vmul.f32 %v6210, %v6218
    %v6226 = vmul.f32 %v6211, %v6222
    %v6227 = vmul.f32 %v6212, %v6218
    %v6228 = vmul.f32 %v6213, %v6222
    %v6229 = vadd.f32 %v6225, %v6226
    %6230 = vadd.xlane.f32.xlu0 %v6229
    %v6231 = vpop.xlane.xlu0 %6230
    %v6232 = vadd.f32 %v6227, %v6228
    %6233 = vadd.xlane.f32.xlu0 %v6232
    %v6234 = vpop.xlane.xlu0 %6233
    %v6235 = vadd.f32 %v6231, %v110
    %v6236 = vadd.f32 %v6234, %v110
    %vm6237 = vcmask 7168
    %6238 = vst.msk [vmem:[%s5] sm:$0xff] %vm6237, %v6235
    %6239 = vst.msk [vmem:[%s5 + $0x8] sm:$0xff] %vm6237, %v6236
    // Predicated region
    $region42: #{_lambda_.1} parent=1 // pred_check
      _
    $region43: #{_lambda_.1} parent=1 // pred_check_branch
      %6241 = sbr.rel (0) target = $region45
    $region44: #{_lambda_.1} parent=1 // pred_region
      _
    $region45: #{_lambda_.1} parent=1 // pred_fallthru
      _
    // Predicated region
    $region46: #{_lambda_.1} parent=1 // pred_check
      _
    $region47: #{_lambda_.1} parent=1 // pred_check_branch
      %6243 = sbr.rel (0) target = $region49
    $region48: #{_lambda_.1} parent=1 // pred_region
      _
    $region49: #{_lambda_.1} parent=1 // pred_fallthru
      _
    %6244 = vsyncpa [#allocation5], 1
    %6245 = vsyncpa [#allocation7], 1
    %6246 = vsyncpa [#allocation10], 1

</llo_original>
